<compile_context>
chip_gen: v6e
topology: v6e:2x2x1
jax: 0.10.0
libtpu: 0.0.40
codegen_flags: <defaults>
</compile_context>

<pallas_src>
import numpy as np
import jax
import jax.numpy as jnp
from jax.experimental import pallas as pl
from jax.experimental.pallas import tpu as pltpu

Z_DIM = 256
IN_DIM = Z_DIM + 3                                      # 259
D1, D2, D3, D4 = IN_DIM, IN_DIM // 2, IN_DIM // 4, 3    # 259, 129, 64, 3


def _rup(x, m):
    return ((x + m - 1) // m) * m


P_PTS = 128                 # 3 point channels padded to one lane block
P1 = _rup(D1, 128)          # 384
P2 = _rup(D2, 128)          # 256
P3 = _rup(D3, 128)          # 128
P_OUT = 128                 # final 3 channels padded to one lane block


# ----------------------------- Pallas kernel -------------------------------

def implicit_fun_kernel(pts_ref, bias_ref,
                        w1a, w2a, w3a, w4a, w1b, w2b, w3b, w4b,
                        out_ref):
    f32 = jnp.float32
    bf16 = jnp.bfloat16

    x = pts_ref[...]                     # (TN, 128) bf16  (points | zero pad)
    bias = bias_ref[...]                 # (8, 384)  f32   per-batch bias table

    b1a = bias[0:1, :]                   # b1a + z @ W1a[3:, :]  (z-hoisted)
    b2a = bias[1:2, :P2]
    b3a = bias[2:3, :P3]
    b4a = bias[3:4, :P_OUT]
    b1b = bias[4:5, :]                   # b1b + z @ W1b[3:, :]  (z-hoisted)
    b2b = bias[5:6, :P2]
    b3b = bias[6:7, :P3]
    b4b = bias[7:8, :P_OUT]

    def mm(a, w):  # bf16 MXU matmul, f32 accumulation
        return jnp.dot(a.astype(bf16), w[...], preferred_element_type=f32)

    # unfold1 (BatchNorm folded into the weights; z contribution lives in b1a)
    h = jnp.maximum(mm(x, w1a) + b1a, 0.0)
    h = jnp.maximum(mm(h, w2a) + b2a, 0.0)
    h = jnp.maximum(mm(h, w3a) + b3a, 0.0)
    x1 = jnp.tanh(mm(h, w4a) + b4a)      # (TN, 128); lanes >= 3 are exactly 0

    # unfold2 (z contribution lives in b1b; w1b keeps only the 3 x1 rows)
    h = jnp.maximum(mm(x1, w1b) + b1b, 0.0)
    h = jnp.maximum(mm(h, w2b) + b2b, 0.0)
    h = jnp.maximum(mm(h, w3b) + b3b, 0.0)
    out_ref[...] = jnp.tanh(mm(h, w4b) + b4b)


# ------------------------------ glue / wrapper ------------------------------

def _pad2(w, rows, cols, dtype=jnp.bfloat16):
    out = jnp.zeros((rows, cols), jnp.float32)
    out = out.at[: w.shape[0], : w.shape[1]].set(w)
    return out.astype(dtype)


def prepare_params(params_a, params_b):
    """Pad / cast weights and stack constant biases once (not per call)."""
    (W1a, b1a), (W2a, b2a), (W3a, b3a), (W4a, b4a) = params_a
    (W1b, b1b), (W2b, b2b), (W3b, b3b), (W4b, b4b) = params_b

    weights = [
        _pad2(W1a[:3], P_PTS, P1),    # layer-1a: only the 3 point rows
        _pad2(W2a, P1, P2),
        _pad2(W3a, P2, P3),
        _pad2(W4a, P3, P_OUT),        # narrowed: only 3 output channels real
        _pad2(W1b[:3], P_PTS, P1),    # layer-1b: only the 3 x1 rows
        _pad2(W2b, P1, P2),
        _pad2(W3b, P2, P3),
        _pad2(W4b, P3, P_OUT),
    ]

    # constant biases (layers 2..4 of both MLPs); rows 0 / 4 are filled
    # per-call with the z-hoisted layer-1 biases.
    cbias = jnp.zeros((8, P1), jnp.float32)
    cbias = cbias.at[1, :D2].set(b2a).at[2, :D3].set(b3a).at[3, :D4].set(b4a)
    cbias = cbias.at[5, :D2].set(b2b).at[6, :D3].set(b3b).at[7, :D4].set(b4b)

    return dict(weights=weights, cbias=cbias,
                w1a_z=W1a[3:], b1a=b1a, w1b_z=W1b[3:], b1b=b1b)


def implicit_fun_pallas(z, points, prep, tn=256):
    B, N, _ = points.shape

    # point tile: divisible by 8 (sublane), pad N up to a tile multiple
    tn = max(8, min(tn, _rup(N, 8)))
    Np = _rup(N, tn)

    # points padded to one 128-lane block, cast to bf16 for the MXU
    pts = jnp.zeros((B, Np, P_PTS), jnp.bfloat16)
    pts = pts.at[:, :N, :3].set(points.astype(jnp.bfloat16))

    # per-batch bias table (tiny, f32): rows 0/4 = b1 + z @ W1[3:, :]
    bias = jnp.broadcast_to(prep["cbias"][None], (B, 8, P1))
    bias = bias.at[:, 0, :IN_DIM].set(jnp.dot(z, prep["w1a_z"]) + prep["b1a"])
    bias = bias.at[:, 4, :IN_DIM].set(jnp.dot(z, prep["w1b_z"]) + prep["b1b"])

    weights = prep["weights"]
    weight_specs = [pl.BlockSpec(w.shape, lambda i, j: (0, 0)) for w in weights]

    out = pl.pallas_call(
        implicit_fun_kernel,
        out_shape=jax.ShapeDtypeStruct((B, Np, P_OUT), jnp.float32),
        grid_spec=pltpu.PrefetchScalarGridSpec(
            num_scalar_prefetch=0,
            grid=(B, Np // tn),
            in_specs=[pl.BlockSpec((None, tn, P_PTS), lambda i, j: (i, j, 0)),
                      pl.BlockSpec((None, 8, P1), lambda i, j: (i, 0, 0))]
                     + weight_specs,
            out_specs=pl.BlockSpec((None, tn, P_OUT), lambda i, j: (i, j, 0)),
        ),
        compiler_params=pltpu.CompilerParams(
            dimension_semantics=("parallel", "parallel")),
    )(pts, bias, *weights)

    return out[:, :N, :3]


# -------------------- deterministic parameter construction ------------------

def make_mlpadj_params(key, nlatent):
    """Conv1d(k=1) weights stored as (Cin, Cout); BN (eval) folded in."""
    dims = [nlatent, nlatent, nlatent // 2, nlatent // 4, 3]
    layers = []
    for li in range(4):
        cin, cout = dims[li], dims[li + 1]
        key, kw, kb, kg, kbe, km, kv = jax.random.split(key, 7)
        W = jax.random.normal(kw, (cin, cout), jnp.float32) / jnp.sqrt(cin)
        b = jax.random.normal(kb, (cout,), jnp.float32) * 0.05
        if li < 3:  # bn1/bn2/bn3, eval-mode affine fold
            gamma = jax.random.uniform(kg, (cout,), jnp.float32, 0.5, 1.5)
            beta = jax.random.normal(kbe, (cout,), jnp.float32) * 0.05
            mean = jax.random.normal(km, (cout,), jnp.float32) * 0.05
            var = jax.random.uniform(kv, (cout,), jnp.float32, 0.5, 1.5)
            scale = gamma / jnp.sqrt(var + 1e-5)
            W = W * scale[None, :]
            b = (b - mean) * scale + beta
        layers.append((W, b))
    return layers


# ------------------------- plain-JAX reference check ------------------------

def mlpadj_ref(x, layers):
    for li, (W, b) in enumerate(layers):
        x = x @ W + b
        x = jnp.maximum(x, 0.0) if li < 3 else jnp.tanh(x)
    return x


def implicit_fun_ref(z, points, params_a, params_b):
    B, N, _ = points.shape
    zz = jnp.broadcast_to(z[:, None, :], (B, N, Z_DIM))
    ptz = jnp.concatenate([points, zz], axis=2)
    x1 = mlpadj_ref(ptz, params_a)
    x2 = jnp.concatenate([x1, zz], axis=2)
    return mlpadj_ref(x2, params_b)


# ----------------------------------- main -----------------------------------

if __name__ == "__main__":
    key = jax.random.PRNGKey(0)
    kz, kp, ka, kb = jax.random.split(key, 4)

    B, N = 2, 256
    z = jax.random.normal(kz, (B, Z_DIM), jnp.float32)
    points = jax.random.normal(kp, (B, N, 3), jnp.float32)

    params_a = make_mlpadj_params(ka, IN_DIM)   # unfold1
    params_b = make_mlpadj_params(kb, IN_DIM)   # unfold2

    prep = prepare_params(params_a, params_b)   # pad/cast once
    out = implicit_fun_pallas(z, points, prep, tn=256)
    out = jax.block_until_ready(out)
    assert out.shape == (B, N, 3)

    ref = implicit_fun_ref(z, points, params_a, params_b)
    # bf16 matmul operands + z-hoist change summation order/precision:
    # tolerance loosened accordingly (f32 accumulation keeps error ~1e-2).
    np.testing.assert_allclose(np.asarray(out), np.asarray(ref),
                               atol=2e-2, rtol=2e-2)

    print("KERNEL_OK")
</pallas_src>

<mosaic_0001>
module attributes {stable_mosaic.version = 11 : i64} {
  func.func @implicit_fun_kernel(%arg0: i32, %arg1: i32, %arg2: memref<1x256x128xbf16, #tpu.memory_space<vmem>>, %arg3: memref<1x8x384xf32, #tpu.memory_space<vmem>>, %arg4: memref<128x384xbf16, #tpu.memory_space<vmem>>, %arg5: memref<384x256xbf16, #tpu.memory_space<vmem>>, %arg6: memref<256x128xbf16, #tpu.memory_space<vmem>>, %arg7: memref<128x128xbf16, #tpu.memory_space<vmem>>, %arg8: memref<128x384xbf16, #tpu.memory_space<vmem>>, %arg9: memref<384x256xbf16, #tpu.memory_space<vmem>>, %arg10: memref<256x128xbf16, #tpu.memory_space<vmem>>, %arg11: memref<128x128xbf16, #tpu.memory_space<vmem>>, %arg12: memref<1x256x128xf32, #tpu.memory_space<vmem>>) attributes {dimension_semantics = [#tpu.dimension_semantics<parallel>, #tpu.dimension_semantics<parallel>], iteration_bounds = array<i64: 2, 1>, scalar_prefetch = 0 : i64, scratch_operands = 0 : i64, tpu.core_type = #tpu.core_type<tc>, window_params = [{transform_indices = @transform_0, window_bounds = array<i64: 1, 256, 128>}, {transform_indices = @transform_1, window_bounds = array<i64: 1, 8, 384>}, {pipeline_mode = #tpu.pipeline_mode<synchronous>, transform_indices = @transform_2, window_bounds = array<i64: 128, 384>}, {pipeline_mode = #tpu.pipeline_mode<synchronous>, transform_indices = @transform_3, window_bounds = array<i64: 384, 256>}, {pipeline_mode = #tpu.pipeline_mode<synchronous>, transform_indices = @transform_4, window_bounds = array<i64: 256, 128>}, {pipeline_mode = #tpu.pipeline_mode<synchronous>, transform_indices = @transform_5, window_bounds = array<i64: 128, 128>}, {pipeline_mode = #tpu.pipeline_mode<synchronous>, transform_indices = @transform_6, window_bounds = array<i64: 128, 384>}, {pipeline_mode = #tpu.pipeline_mode<synchronous>, transform_indices = @transform_7, window_bounds = array<i64: 384, 256>}, {pipeline_mode = #tpu.pipeline_mode<synchronous>, transform_indices = @transform_8, window_bounds = array<i64: 256, 128>}, {pipeline_mode = #tpu.pipeline_mode<synchronous>, transform_indices = @transform_9, window_bounds = array<i64: 128, 128>}, {transform_indices = @transform_10, window_bounds = array<i64: 1, 256, 128>}]} {
    %c0 = arith.constant 0 : index
    %c0_0 = arith.constant 0 : index
    %c0_1 = arith.constant 0 : index
    %0 = vector.load %arg2[%c0, %c0_0, %c0_1] : memref<1x256x128xbf16, #tpu.memory_space<vmem>>, vector<1x256x128xbf16>
    %1 = vector.shape_cast %0 : vector<1x256x128xbf16> to vector<256x128xbf16>
    %c0_2 = arith.constant 0 : index
    %c0_3 = arith.constant 0 : index
    %c0_4 = arith.constant 0 : index
    %2 = vector.load %arg3[%c0_2, %c0_3, %c0_4] : memref<1x8x384xf32, #tpu.memory_space<vmem>>, vector<1x8x384xf32>
    %3 = vector.shape_cast %2 : vector<1x8x384xf32> to vector<8x384xf32>
    %4 = vector.extract_strided_slice %3 {offsets = [0, 0], sizes = [1, 384], strides = [1, 1]} : vector<8x384xf32> to vector<1x384xf32>
    %5 = vector.extract_strided_slice %3 {offsets = [1, 0], sizes = [1, 256], strides = [1, 1]} : vector<8x384xf32> to vector<1x256xf32>
    %6 = vector.extract_strided_slice %3 {offsets = [2, 0], sizes = [1, 128], strides = [1, 1]} : vector<8x384xf32> to vector<1x128xf32>
    %7 = vector.extract_strided_slice %3 {offsets = [3, 0], sizes = [1, 128], strides = [1, 1]} : vector<8x384xf32> to vector<1x128xf32>
    %8 = vector.extract_strided_slice %3 {offsets = [4, 0], sizes = [1, 384], strides = [1, 1]} : vector<8x384xf32> to vector<1x384xf32>
    %9 = vector.extract_strided_slice %3 {offsets = [5, 0], sizes = [1, 256], strides = [1, 1]} : vector<8x384xf32> to vector<1x256xf32>
    %10 = vector.extract_strided_slice %3 {offsets = [6, 0], sizes = [1, 128], strides = [1, 1]} : vector<8x384xf32> to vector<1x128xf32>
    %11 = vector.extract_strided_slice %3 {offsets = [7, 0], sizes = [1, 128], strides = [1, 1]} : vector<8x384xf32> to vector<1x128xf32>
    %c0_5 = arith.constant 0 : index
    %c0_6 = arith.constant 0 : index
    %12 = vector.load %arg4[%c0_5, %c0_6] : memref<128x384xbf16, #tpu.memory_space<vmem>>, vector<128x384xbf16>
    %cst = arith.constant dense<0.000000e+00> : vector<256x384xf32>
    %13 = tpu.matmul %1, %12, %cst {dimension_numbers = #tpu.dot_dimension_numbers<[1], [0], [0], [1], [0, 0, 1, 1], [], []>} : vector<256x128xbf16>, vector<128x384xbf16>, vector<256x384xf32> -> vector<256x384xf32>
    %14 = vector.broadcast %4 : vector<1x384xf32> to vector<256x384xf32>
    %15 = arith.addf %13, %14 : vector<256x384xf32>
    %cst_7 = arith.constant 0.000000e+00 : f32
    %16 = vector.broadcast %cst_7 : f32 to vector<256x384xf32>
    %17 = arith.maximumf %15, %16 : vector<256x384xf32>
    %18 = arith.truncf %17 : vector<256x384xf32> to vector<256x384xbf16>
    %c0_8 = arith.constant 0 : index
    %c0_9 = arith.constant 0 : index
    %19 = vector.load %arg5[%c0_8, %c0_9] : memref<384x256xbf16, #tpu.memory_space<vmem>>, vector<384x256xbf16>
    %cst_10 = arith.constant dense<0.000000e+00> : vector<256x256xf32>
    %20 = tpu.matmul %18, %19, %cst_10 {dimension_numbers = #tpu.dot_dimension_numbers<[1], [0], [0], [1], [0, 0, 1, 1], [], []>} : vector<256x384xbf16>, vector<384x256xbf16>, vector<256x256xf32> -> vector<256x256xf32>
    %21 = vector.broadcast %5 : vector<1x256xf32> to vector<256x256xf32>
    %22 = arith.addf %20, %21 : vector<256x256xf32>
    %cst_11 = arith.constant 0.000000e+00 : f32
    %23 = vector.broadcast %cst_11 : f32 to vector<256x256xf32>
    %24 = arith.maximumf %22, %23 : vector<256x256xf32>
    %25 = arith.truncf %24 : vector<256x256xf32> to vector<256x256xbf16>
    %c0_12 = arith.constant 0 : index
    %c0_13 = arith.constant 0 : index
    %26 = vector.load %arg6[%c0_12, %c0_13] : memref<256x128xbf16, #tpu.memory_space<vmem>>, vector<256x128xbf16>
    %cst_14 = arith.constant dense<0.000000e+00> : vector<256x128xf32>
    %27 = tpu.matmul %25, %26, %cst_14 {dimension_numbers = #tpu.dot_dimension_numbers<[1], [0], [0], [1], [0, 0, 1, 1], [], []>} : vector<256x256xbf16>, vector<256x128xbf16>, vector<256x128xf32> -> vector<256x128xf32>
    %28 = vector.broadcast %6 : vector<1x128xf32> to vector<256x128xf32>
    %29 = arith.addf %27, %28 : vector<256x128xf32>
    %cst_15 = arith.constant 0.000000e+00 : f32
    %30 = vector.broadcast %cst_15 : f32 to vector<256x128xf32>
    %31 = arith.maximumf %29, %30 : vector<256x128xf32>
    %32 = arith.truncf %31 : vector<256x128xf32> to vector<256x128xbf16>
    %c0_16 = arith.constant 0 : index
    %c0_17 = arith.constant 0 : index
    %33 = vector.load %arg7[%c0_16, %c0_17] : memref<128x128xbf16, #tpu.memory_space<vmem>>, vector<128x128xbf16>
    %cst_18 = arith.constant dense<0.000000e+00> : vector<256x128xf32>
    %34 = tpu.matmul %32, %33, %cst_18 {dimension_numbers = #tpu.dot_dimension_numbers<[1], [0], [0], [1], [0, 0, 1, 1], [], []>} : vector<256x128xbf16>, vector<128x128xbf16>, vector<256x128xf32> -> vector<256x128xf32>
    %35 = vector.broadcast %7 : vector<1x128xf32> to vector<256x128xf32>
    %36 = arith.addf %34, %35 : vector<256x128xf32>
    %37 = math.tanh %36 : vector<256x128xf32>
    %38 = arith.truncf %37 : vector<256x128xf32> to vector<256x128xbf16>
    %c0_19 = arith.constant 0 : index
    %c0_20 = arith.constant 0 : index
    %39 = vector.load %arg8[%c0_19, %c0_20] : memref<128x384xbf16, #tpu.memory_space<vmem>>, vector<128x384xbf16>
    %cst_21 = arith.constant dense<0.000000e+00> : vector<256x384xf32>
    %40 = tpu.matmul %38, %39, %cst_21 {dimension_numbers = #tpu.dot_dimension_numbers<[1], [0], [0], [1], [0, 0, 1, 1], [], []>} : vector<256x128xbf16>, vector<128x384xbf16>, vector<256x384xf32> -> vector<256x384xf32>
    %41 = vector.broadcast %8 : vector<1x384xf32> to vector<256x384xf32>
    %42 = arith.addf %40, %41 : vector<256x384xf32>
    %cst_22 = arith.constant 0.000000e+00 : f32
    %43 = vector.broadcast %cst_22 : f32 to vector<256x384xf32>
    %44 = arith.maximumf %42, %43 : vector<256x384xf32>
    %45 = arith.truncf %44 : vector<256x384xf32> to vector<256x384xbf16>
    %c0_23 = arith.constant 0 : index
    %c0_24 = arith.constant 0 : index
    %46 = vector.load %arg9[%c0_23, %c0_24] : memref<384x256xbf16, #tpu.memory_space<vmem>>, vector<384x256xbf16>
    %cst_25 = arith.constant dense<0.000000e+00> : vector<256x256xf32>
    %47 = tpu.matmul %45, %46, %cst_25 {dimension_numbers = #tpu.dot_dimension_numbers<[1], [0], [0], [1], [0, 0, 1, 1], [], []>} : vector<256x384xbf16>, vector<384x256xbf16>, vector<256x256xf32> -> vector<256x256xf32>
    %48 = vector.broadcast %9 : vector<1x256xf32> to vector<256x256xf32>
    %49 = arith.addf %47, %48 : vector<256x256xf32>
    %cst_26 = arith.constant 0.000000e+00 : f32
    %50 = vector.broadcast %cst_26 : f32 to vector<256x256xf32>
    %51 = arith.maximumf %49, %50 : vector<256x256xf32>
    %52 = arith.truncf %51 : vector<256x256xf32> to vector<256x256xbf16>
    %c0_27 = arith.constant 0 : index
    %c0_28 = arith.constant 0 : index
    %53 = vector.load %arg10[%c0_27, %c0_28] : memref<256x128xbf16, #tpu.memory_space<vmem>>, vector<256x128xbf16>
    %cst_29 = arith.constant dense<0.000000e+00> : vector<256x128xf32>
    %54 = tpu.matmul %52, %53, %cst_29 {dimension_numbers = #tpu.dot_dimension_numbers<[1], [0], [0], [1], [0, 0, 1, 1], [], []>} : vector<256x256xbf16>, vector<256x128xbf16>, vector<256x128xf32> -> vector<256x128xf32>
    %55 = vector.broadcast %10 : vector<1x128xf32> to vector<256x128xf32>
    %56 = arith.addf %54, %55 : vector<256x128xf32>
    %cst_30 = arith.constant 0.000000e+00 : f32
    %57 = vector.broadcast %cst_30 : f32 to vector<256x128xf32>
    %58 = arith.maximumf %56, %57 : vector<256x128xf32>
    %59 = arith.truncf %58 : vector<256x128xf32> to vector<256x128xbf16>
    %c0_31 = arith.constant 0 : index
    %c0_32 = arith.constant 0 : index
    %60 = vector.load %arg11[%c0_31, %c0_32] : memref<128x128xbf16, #tpu.memory_space<vmem>>, vector<128x128xbf16>
    %cst_33 = arith.constant dense<0.000000e+00> : vector<256x128xf32>
    %61 = tpu.matmul %59, %60, %cst_33 {dimension_numbers = #tpu.dot_dimension_numbers<[1], [0], [0], [1], [0, 0, 1, 1], [], []>} : vector<256x128xbf16>, vector<128x128xbf16>, vector<256x128xf32> -> vector<256x128xf32>
    %62 = vector.broadcast %11 : vector<1x128xf32> to vector<256x128xf32>
    %63 = arith.addf %61, %62 : vector<256x128xf32>
    %64 = math.tanh %63 : vector<256x128xf32>
    %c0_34 = arith.constant 0 : index
    %c0_35 = arith.constant 0 : index
    %c0_36 = arith.constant 0 : index
    %65 = vector.load %arg12[%c0_34, %c0_35, %c0_36] : memref<1x256x128xf32, #tpu.memory_space<vmem>>, vector<1x256x128xf32>
    %66 = vector.shape_cast %65 : vector<1x256x128xf32> to vector<256x128xf32>
    %67 = vector.shape_cast %64 : vector<256x128xf32> to vector<1x256x128xf32>
    tpu.vector_store %arg12[%c0_34, %c0_35, %c0_36], %67 {strides = array<i32>} : memref<1x256x128xf32, #tpu.memory_space<vmem>>, vector<1x256x128xf32>,
    return
  }
  func.func @transform_0(%arg0: i32, %arg1: i32) -> (i32, i32, i32) {
    %c0_i32 = arith.constant 0 : i32
    %c0_i32_0 = arith.constant 0 : i32
    return %arg0, %arg1, %c0_i32 : i32, i32, i32
  }
  func.func @transform_1(%arg0: i32, %arg1: i32) -> (i32, i32, i32) {
    %c0_i32 = arith.constant 0 : i32
    %c0_i32_0 = arith.constant 0 : i32
    %c0_i32_1 = arith.constant 0 : i32
    return %arg0, %c0_i32, %c0_i32_0 : i32, i32, i32
  }
  func.func @transform_2(%arg0: i32, %arg1: i32) -> (i32, i32) {
    %c0_i32 = arith.constant 0 : i32
    %c0_i32_0 = arith.constant 0 : i32
    %c0_i32_1 = arith.constant 0 : i32
    return %c0_i32, %c0_i32_0 : i32, i32
  }
  func.func @transform_3(%arg0: i32, %arg1: i32) -> (i32, i32) {
    %c0_i32 = arith.constant 0 : i32
    %c0_i32_0 = arith.constant 0 : i32
    %c0_i32_1 = arith.constant 0 : i32
    return %c0_i32, %c0_i32_0 : i32, i32
  }
  func.func @transform_4(%arg0: i32, %arg1: i32) -> (i32, i32) {
    %c0_i32 = arith.constant 0 : i32
    %c0_i32_0 = arith.constant 0 : i32
    %c0_i32_1 = arith.constant 0 : i32
    return %c0_i32, %c0_i32_0 : i32, i32
  }
  func.func @transform_5(%arg0: i32, %arg1: i32) -> (i32, i32) {
    %c0_i32 = arith.constant 0 : i32
    %c0_i32_0 = arith.constant 0 : i32
    %c0_i32_1 = arith.constant 0 : i32
    return %c0_i32, %c0_i32_0 : i32, i32
  }
  func.func @transform_6(%arg0: i32, %arg1: i32) -> (i32, i32) {
    %c0_i32 = arith.constant 0 : i32
    %c0_i32_0 = arith.constant 0 : i32
    %c0_i32_1 = arith.constant 0 : i32
    return %c0_i32, %c0_i32_0 : i32, i32
  }
  func.func @transform_7(%arg0: i32, %arg1: i32) -> (i32, i32) {
    %c0_i32 = arith.constant 0 : i32
    %c0_i32_0 = arith.constant 0 : i32
    %c0_i32_1 = arith.constant 0 : i32
    return %c0_i32, %c0_i32_0 : i32, i32
  }
  func.func @transform_8(%arg0: i32, %arg1: i32) -> (i32, i32) {
    %c0_i32 = arith.constant 0 : i32
    %c0_i32_0 = arith.constant 0 : i32
    %c0_i32_1 = arith.constant 0 : i32
    return %c0_i32, %c0_i32_0 : i32, i32
  }
  func.func @transform_9(%arg0: i32, %arg1: i32) -> (i32, i32) {
    %c0_i32 = arith.constant 0 : i32
    %c0_i32_0 = arith.constant 0 : i32
    %c0_i32_1 = arith.constant 0 : i32
    return %c0_i32, %c0_i32_0 : i32, i32
  }
  func.func @transform_10(%arg0: i32, %arg1: i32) -> (i32, i32, i32) {
    %c0_i32 = arith.constant 0 : i32
    %c0_i32_0 = arith.constant 0 : i32
    return %arg0, %arg1, %c0_i32 : i32, i32, i32
  }
}

</mosaic_0001>

<llo_original>
// kernel: tpu_custom_call.1
$region0: #{tpu_custom_call.1}
  #allocation0 [shape = 'u32[]', space=smem, size = 0x4, offset = 0x4, fixed_abs, tag = 'smem constant byte address 0x4 - core index']
  #allocation1 [shape = 'u32[144,128]{1,0:T(1,128)}', space=vmem, size = 0x12000, scoped, tag = 'internal scratch']
  %s0 = inlined_call_operand.hbm [shape: bf16[2,256,128], index: 0, kind: input, shape index: {}]
  %s1 = inlined_call_operand.hbm [shape: f32[2,8,384], index: 1, kind: input, shape index: {}]
  %s2 = inlined_call_operand.hbm [shape: bf16[128,384], index: 2, kind: input, shape index: {}]
  %s3 = inlined_call_operand.hbm [shape: bf16[384,256], index: 3, kind: input, shape index: {}]
  %s4 = inlined_call_operand.hbm [shape: bf16[256,128], index: 4, kind: input, shape index: {}]
  %s5 = inlined_call_operand.hbm [shape: bf16[128,128], index: 5, kind: input, shape index: {}]
  %s6 = inlined_call_operand.hbm [shape: bf16[128,384], index: 6, kind: input, shape index: {}]
  %s7 = inlined_call_operand.hbm [shape: bf16[384,256], index: 7, kind: input, shape index: {}]
  %s8 = inlined_call_operand.hbm [shape: bf16[256,128], index: 8, kind: input, shape index: {}]
  %s9 = inlined_call_operand.hbm [shape: bf16[128,128], index: 9, kind: input, shape index: {}]
  %s10 = inlined_call_operand.hbm [shape: f32[2,256,128], index: 10, kind: output, shape index: {}]
  %s11 = sld [smem:[#allocation0]]
  $region113: #{tpu_custom_call.1} parent=0
    _
  %s13 = ssub.s32 1, %s11
  %s14 = scalar_select 0, %s13, %s11
  $region1: #{tpu_custom_call.1} parent=0
    #allocation2 [shape = 'u8[131072]{0}', space=vmem, size = 0x20000, scoped, tag = 'input window, operand 0']
    #allocation3 [shape = 's32[2]{0}', space=sflag, size = 0x8, scoped, tag = 'scoped memory for tpu_custom_call.1']
    #allocation4 [shape = 's32[2]{0}', space=sflag, size = 0x8, scoped, tag = 'scoped memory for tpu_custom_call.1']
    #allocation5 [shape = 'u8[24576]{0}', space=vmem, size = 0x6000, scoped, tag = 'input window, operand 1']
    #allocation6 [shape = 's32[2]{0}', space=sflag, size = 0x8, scoped, tag = 'scoped memory for tpu_custom_call.1']
    #allocation7 [shape = 'u8[98304]{0}', space=vmem, size = 0x18000, scoped, tag = 'input window, operand 2, single buffered']
    #allocation8 [shape = 'u8[196608]{0}', space=vmem, size = 0x30000, scoped, tag = 'input window, operand 3, single buffered']
    #allocation9 [shape = 's32[1]{0}', space=sflag, size = 0x4, scoped, tag = 'scoped memory for tpu_custom_call.1']
    #allocation10 [shape = 'u8[65536]{0}', space=vmem, size = 0x10000, scoped, tag = 'input window, operand 4, single buffered']
    #allocation11 [shape = 'u8[32768]{0}', space=vmem, size = 0x8000, scoped, tag = 'input window, operand 5, single buffered']
    #allocation12 [shape = 's32[1]{0}', space=sflag, size = 0x4, scoped, tag = 'scoped memory for tpu_custom_call.1']
    #allocation13 [shape = 'u8[98304]{0}', space=vmem, size = 0x18000, scoped, tag = 'input window, operand 6, single buffered']
    #allocation14 [shape = 'u8[196608]{0}', space=vmem, size = 0x30000, scoped, tag = 'input window, operand 7, single buffered']
    #allocation15 [shape = 's32[1]{0}', space=sflag, size = 0x4, scoped, tag = 'scoped memory for tpu_custom_call.1']
    #allocation16 [shape = 'u8[65536]{0}', space=vmem, size = 0x10000, scoped, tag = 'input window, operand 8, single buffered']
    #allocation17 [shape = 'u8[32768]{0}', space=vmem, size = 0x8000, scoped, tag = 'input window, operand 9, single buffered']
    #allocation18 [shape = 's32[1]{0}', space=sflag, size = 0x4, scoped, tag = 'scoped memory for tpu_custom_call.1']
    #allocation19 [shape = 'u8[262144]{0}', space=vmem, size = 0x40000, scoped, tag = 'output window, operand 0']
    %15 = vsyncpa [#allocation3], 0
    %s16 = scalar_lea.sflag [#allocation3], 1
    %17 = vsyncpa %s16, 0
    %18 = vsyncpa [#allocation6], 0
    %s19 = scalar_lea.sflag [#allocation6], 1
    %20 = vsyncpa %s19, 0
    %21 = vsyncpa [#allocation9], 0
    %22 = vsyncpa [#allocation12], 0
    %23 = vsyncpa [#allocation15], 0
    %24 = vsyncpa [#allocation18], 0
    %25 = vsyncpa [#allocation4], 0
    %s26 = scalar_lea.sflag [#allocation4], 1
    %27 = vsyncpa %s26, 0
    loop: start=0, step=1, limit=4
    $region2: #{tpu_custom_call.1} parent=1 // loop_pre_header
      _
    $region3: #{tpu_custom_call.1} parent=1 // loop_header
      %s29 = sphi 0, %s33
      %p30 = scmp.ge.s32.totalorder %s29, 4
      %s36 = sphi 0, %s48
      %s37 = sphi 0, %s44
      %s38 = sphi 0, %s36
      %s39 = sphi 0, %s37
      %s40 = sphi 0, %s38
      %s41 = sphi 0, %s39
      %s53 = sphi 0, %s55
      %s56 = sphi 0, %s53
      %s57 = sphi 0, %s56
      %s73 = sphi 0, %s57
      %s79 = sphi 0, %s81
      %s82 = sphi 0, %s79
      %s83 = sphi 0, %s82
      %s99 = sphi 0, %s83
      %s103 = sphi 0, %s103
      %s105 = sphi 0, %s103
      %s106 = sphi 0, %s105
      %s120 = sphi 0, %s106
      %s124 = sphi 0, %s124
      %s126 = sphi 0, %s124
      %s127 = sphi 0, %s126
      %s141 = sphi 0, %s127
      %s145 = sphi 0, %s145
      %s147 = sphi 0, %s145
      %s148 = sphi 0, %s147
      %s162 = sphi 0, %s148
      %s166 = sphi 0, %s166
      %s168 = sphi 0, %s166
      %s169 = sphi 0, %s168
      %s183 = sphi 0, %s169
      %s187 = sphi 0, %s187
      %s189 = sphi 0, %s187
      %s190 = sphi 0, %s189
      %s204 = sphi 0, %s190
      %s208 = sphi 0, %s208
      %s210 = sphi 0, %s208
      %s211 = sphi 0, %s210
      %s225 = sphi 0, %s211
      %s229 = sphi 0, %s229
      %s231 = sphi 0, %s229
      %s232 = sphi 0, %s231
      %s246 = sphi 0, %s232
      %s250 = sphi 0, %s250
      %s252 = sphi 0, %s250
      %s253 = sphi 0, %s252
      %s267 = sphi 0, %s253
      %s275 = sphi 0, %s277
      %s278 = sphi 0, %s275
      %s279 = sphi 0, %s278
      %s295 = sphi 0, %s279
    $region4: #{tpu_custom_call.1} parent=1 // loop_header_branch
      %32 = sbr.rel (%p30) target = $region8
    $region5: #{tpu_custom_call.1} parent=1 // loop_body
      %s34 = ssub.s32 %s29, 1
      %s35 = ssub.s32 %s29, 2
      %s42 = sadd.s32 1, %s37
      %p43 = scmp.ge.s32.totalorder %s42, 1
      %s44 = scalar_select %p43, 0, %s42
      %s45 = sadd.s32 1, %s36
      %s46 = scalar_select %p43, %s45, %s36
      %p47 = scmp.ge.s32.totalorder %s46, 2
      %s48 = scalar_select %p47, 0, %s46
      %s49 = ssub.s32 %s36, %s48
      %s50 = ssub.s32 %s37, %s44
      %s51 = sor.u32 %s49, %s50
      %p52 = scmp.eq.s32.totalorder %s51, 0
      %s54 = sadd.s32 %s53, 1
      %s55 = scalar_select %p52, %s53, %s54
      %p58 = pneg %p52
      %p59 = scmp.eq.s32.totalorder %s29, 1
      %p60 = por %p58, %p59
      %p61 = scmp.ne.s32.totalorder %s53, %s56
      %p62 = scmp.eq.s32.totalorder %s29, 0
      %p63 = por %p61, %p62
      %p64 = scmp.ne.s32.totalorder %s53, %s56
      %p65 = scmp.eq.s32.totalorder %s34, 1
      %p66 = por %p64, %p65
      %p67 = scmp.ne.s32.totalorder %s56, %s57
      %p68 = scmp.eq.s32.totalorder %s34, 0
      %p69 = por %p67, %p68
      %p70 = scmp.ne.s32.totalorder %s56, %s57
      %p71 = scmp.eq.s32.totalorder %s35, 1
      %p72 = por %p70, %p71
      %p74 = scmp.ne.s32.totalorder %s57, %s73
      %p75 = scmp.eq.s32.totalorder %s35, 0
      %p76 = por %p74, %p75
      %s77 = ssub.s32 %s36, %s48
      %p78 = scmp.eq.s32.totalorder %s77, 0
      %s80 = sadd.s32 %s79, 1
      %s81 = scalar_select %p78, %s79, %s80
      %p84 = pneg %p78
      %p85 = scmp.eq.s32.totalorder %s29, 1
      %p86 = por %p84, %p85
      %p87 = scmp.ne.s32.totalorder %s79, %s82
      %p88 = scmp.eq.s32.totalorder %s29, 0
      %p89 = por %p87, %p88
      %p90 = scmp.ne.s32.totalorder %s79, %s82
      %p91 = scmp.eq.s32.totalorder %s34, 1
      %p92 = por %p90, %p91
      %p93 = scmp.ne.s32.totalorder %s82, %s83
      %p94 = scmp.eq.s32.totalorder %s34, 0
      %p95 = por %p93, %p94
      %p96 = scmp.ne.s32.totalorder %s82, %s83
      %p97 = scmp.eq.s32.totalorder %s35, 1
      %p98 = por %p96, %p97
      %p100 = scmp.ne.s32.totalorder %s83, %s99
      %p101 = scmp.eq.s32.totalorder %s35, 0
      %p102 = por %p100, %p101
      %s104 = sadd.s32 %s103, 1
      %p107 = scmp.eq.s32.totalorder %s29, 1
      %p108 = scmp.ne.s32.totalorder %s103, %s105
      %p109 = scmp.eq.s32.totalorder %s29, 0
      %p110 = por %p108, %p109
      %p111 = scmp.ne.s32.totalorder %s103, %s105
      %p112 = scmp.eq.s32.totalorder %s34, 1
      %p113 = por %p111, %p112
      %p114 = scmp.ne.s32.totalorder %s105, %s106
      %p115 = scmp.eq.s32.totalorder %s34, 0
      %p116 = por %p114, %p115
      %p117 = scmp.ne.s32.totalorder %s105, %s106
      %p118 = scmp.eq.s32.totalorder %s35, 1
      %p119 = por %p117, %p118
      %p121 = scmp.ne.s32.totalorder %s106, %s120
      %p122 = scmp.eq.s32.totalorder %s35, 0
      %p123 = por %p121, %p122
      %s125 = sadd.s32 %s124, 1
      %p128 = scmp.eq.s32.totalorder %s29, 1
      %p129 = scmp.ne.s32.totalorder %s124, %s126
      %p130 = scmp.eq.s32.totalorder %s29, 0
      %p131 = por %p129, %p130
      %p132 = scmp.ne.s32.totalorder %s124, %s126
      %p133 = scmp.eq.s32.totalorder %s34, 1
      %p134 = por %p132, %p133
      %p135 = scmp.ne.s32.totalorder %s126, %s127
      %p136 = scmp.eq.s32.totalorder %s34, 0
      %p137 = por %p135, %p136
      %p138 = scmp.ne.s32.totalorder %s126, %s127
      %p139 = scmp.eq.s32.totalorder %s35, 1
      %p140 = por %p138, %p139
      %p142 = scmp.ne.s32.totalorder %s127, %s141
      %p143 = scmp.eq.s32.totalorder %s35, 0
      %p144 = por %p142, %p143
      %s146 = sadd.s32 %s145, 1
      %p149 = scmp.eq.s32.totalorder %s29, 1
      %p150 = scmp.ne.s32.totalorder %s145, %s147
      %p151 = scmp.eq.s32.totalorder %s29, 0
      %p152 = por %p150, %p151
      %p153 = scmp.ne.s32.totalorder %s145, %s147
      %p154 = scmp.eq.s32.totalorder %s34, 1
      %p155 = por %p153, %p154
      %p156 = scmp.ne.s32.totalorder %s147, %s148
      %p157 = scmp.eq.s32.totalorder %s34, 0
      %p158 = por %p156, %p157
      %p159 = scmp.ne.s32.totalorder %s147, %s148
      %p160 = scmp.eq.s32.totalorder %s35, 1
      %p161 = por %p159, %p160
      %p163 = scmp.ne.s32.totalorder %s148, %s162
      %p164 = scmp.eq.s32.totalorder %s35, 0
      %p165 = por %p163, %p164
      %s167 = sadd.s32 %s166, 1
      %p170 = scmp.eq.s32.totalorder %s29, 1
      %p171 = scmp.ne.s32.totalorder %s166, %s168
      %p172 = scmp.eq.s32.totalorder %s29, 0
      %p173 = por %p171, %p172
      %p174 = scmp.ne.s32.totalorder %s166, %s168
      %p175 = scmp.eq.s32.totalorder %s34, 1
      %p176 = por %p174, %p175
      %p177 = scmp.ne.s32.totalorder %s168, %s169
      %p178 = scmp.eq.s32.totalorder %s34, 0
      %p179 = por %p177, %p178
      %p180 = scmp.ne.s32.totalorder %s168, %s169
      %p181 = scmp.eq.s32.totalorder %s35, 1
      %p182 = por %p180, %p181
      %p184 = scmp.ne.s32.totalorder %s169, %s183
      %p185 = scmp.eq.s32.totalorder %s35, 0
      %p186 = por %p184, %p185
      %s188 = sadd.s32 %s187, 1
      %p191 = scmp.eq.s32.totalorder %s29, 1
      %p192 = scmp.ne.s32.totalorder %s187, %s189
      %p193 = scmp.eq.s32.totalorder %s29, 0
      %p194 = por %p192, %p193
      %p195 = scmp.ne.s32.totalorder %s187, %s189
      %p196 = scmp.eq.s32.totalorder %s34, 1
      %p197 = por %p195, %p196
      %p198 = scmp.ne.s32.totalorder %s189, %s190
      %p199 = scmp.eq.s32.totalorder %s34, 0
      %p200 = por %p198, %p199
      %p201 = scmp.ne.s32.totalorder %s189, %s190
      %p202 = scmp.eq.s32.totalorder %s35, 1
      %p203 = por %p201, %p202
      %p205 = scmp.ne.s32.totalorder %s190, %s204
      %p206 = scmp.eq.s32.totalorder %s35, 0
      %p207 = por %p205, %p206
      %s209 = sadd.s32 %s208, 1
      %p212 = scmp.eq.s32.totalorder %s29, 1
      %p213 = scmp.ne.s32.totalorder %s208, %s210
      %p214 = scmp.eq.s32.totalorder %s29, 0
      %p215 = por %p213, %p214
      %p216 = scmp.ne.s32.totalorder %s208, %s210
      %p217 = scmp.eq.s32.totalorder %s34, 1
      %p218 = por %p216, %p217
      %p219 = scmp.ne.s32.totalorder %s210, %s211
      %p220 = scmp.eq.s32.totalorder %s34, 0
      %p221 = por %p219, %p220
      %p222 = scmp.ne.s32.totalorder %s210, %s211
      %p223 = scmp.eq.s32.totalorder %s35, 1
      %p224 = por %p222, %p223
      %p226 = scmp.ne.s32.totalorder %s211, %s225
      %p227 = scmp.eq.s32.totalorder %s35, 0
      %p228 = por %p226, %p227
      %s230 = sadd.s32 %s229, 1
      %p233 = scmp.eq.s32.totalorder %s29, 1
      %p234 = scmp.ne.s32.totalorder %s229, %s231
      %p235 = scmp.eq.s32.totalorder %s29, 0
      %p236 = por %p234, %p235
      %p237 = scmp.ne.s32.totalorder %s229, %s231
      %p238 = scmp.eq.s32.totalorder %s34, 1
      %p239 = por %p237, %p238
      %p240 = scmp.ne.s32.totalorder %s231, %s232
      %p241 = scmp.eq.s32.totalorder %s34, 0
      %p242 = por %p240, %p241
      %p243 = scmp.ne.s32.totalorder %s231, %s232
      %p244 = scmp.eq.s32.totalorder %s35, 1
      %p245 = por %p243, %p244
      %p247 = scmp.ne.s32.totalorder %s232, %s246
      %p248 = scmp.eq.s32.totalorder %s35, 0
      %p249 = por %p247, %p248
      %s251 = sadd.s32 %s250, 1
      %p254 = scmp.eq.s32.totalorder %s29, 1
      %p255 = scmp.ne.s32.totalorder %s250, %s252
      %p256 = scmp.eq.s32.totalorder %s29, 0
      %p257 = por %p255, %p256
      %p258 = scmp.ne.s32.totalorder %s250, %s252
      %p259 = scmp.eq.s32.totalorder %s34, 1
      %p260 = por %p258, %p259
      %p261 = scmp.ne.s32.totalorder %s252, %s253
      %p262 = scmp.eq.s32.totalorder %s34, 0
      %p263 = por %p261, %p262
      %p264 = scmp.ne.s32.totalorder %s252, %s253
      %p265 = scmp.eq.s32.totalorder %s35, 1
      %p266 = por %p264, %p265
      %p268 = scmp.ne.s32.totalorder %s253, %s267
      %p269 = scmp.eq.s32.totalorder %s35, 0
      %p270 = por %p268, %p269
      %s271 = ssub.s32 %s36, %s48
      %s272 = ssub.s32 %s37, %s44
      %s273 = sor.u32 %s271, %s272
      %p274 = scmp.eq.s32.totalorder %s273, 0
      %s276 = sadd.s32 %s275, 1
      %s277 = scalar_select %p274, %s275, %s276
      %p280 = pneg %p274
      %p281 = scmp.eq.s32.totalorder %s29, 1
      %p282 = por %p280, %p281
      %p283 = scmp.ne.s32.totalorder %s275, %s278
      %p284 = scmp.eq.s32.totalorder %s29, 0
      %p285 = por %p283, %p284
      %p286 = scmp.ne.s32.totalorder %s275, %s278
      %p287 = scmp.eq.s32.totalorder %s34, 1
      %p288 = por %p286, %p287
      %p289 = scmp.ne.s32.totalorder %s278, %s279
      %p290 = scmp.eq.s32.totalorder %s34, 0
      %p291 = por %p289, %p290
      %p292 = scmp.ne.s32.totalorder %s278, %s279
      %p293 = scmp.eq.s32.totalorder %s35, 1
      %p294 = por %p292, %p293
      %p296 = scmp.ne.s32.totalorder %s279, %s295
      %p297 = scmp.eq.s32.totalorder %s35, 0
      %p298 = por %p296, %p297
      %p299 = scmp.le.s32.totalorder 1, %s29
      %p300 = scmp.lt.s32.totalorder %s29, 3
      %p301 = pnand %p299, %p300
      %p302 = pneg %p301
      // Predicated region
      $region9: #{tpu_custom_call.1} parent=5 // pred_check
        _
      $region10: #{tpu_custom_call.1} parent=5 // pred_check_branch
        %304 = sbr.rel (%p301) target = $region12
      $region11: #{tpu_custom_call.1} parent=5 // pred_region
        %s305 = ssub.s32 %s29, 1
        // Predicated region
        $region13: #{tpu_custom_call.1} parent=11 // pred_check
          %p306 = pneg %p116
        $region14: #{tpu_custom_call.1} parent=11 // pred_check_branch
          %308 = sbr.rel (%p306) target = $region16
        $region15: #{tpu_custom_call.1} parent=11 // pred_region
          %s310 = ssub.s32 3072, 3072
          %311 = vsyncadd [#allocation6], %s310
          %s312 = sshll.u32 [#allocation7], 4
          %s313 = int_to_ptr.vmem [resolvable:$true] %s312
          %318 = dma.hbm_to_vmem [thread:$0]  %s2, 3072, %s313, [#allocation6], 192, 192, 12
        $region16: #{tpu_custom_call.1} parent=11 // pred_fallthru
          _
        // Predicated region
        $region17: #{tpu_custom_call.1} parent=11 // pred_check
          %p319 = pneg %p137
        $region18: #{tpu_custom_call.1} parent=11 // pred_check_branch
          %321 = sbr.rel (%p319) target = $region20
        $region19: #{tpu_custom_call.1} parent=11 // pred_region
          %s323 = ssub.s32 6144, 6144
          %324 = vsyncadd [#allocation9], %s323
          %s325 = sshll.u32 [#allocation8], 4
          %s326 = int_to_ptr.vmem [resolvable:$true] %s325
          %331 = dma.hbm_to_vmem [thread:$0]  %s3, 6144, %s326, [#allocation9], 128, 128, 8
        $region20: #{tpu_custom_call.1} parent=11 // pred_fallthru
          _
        // Predicated region
        $region21: #{tpu_custom_call.1} parent=11 // pred_check
          %p332 = pneg %p158
        $region22: #{tpu_custom_call.1} parent=11 // pred_check_branch
          %334 = sbr.rel (%p332) target = $region24
        $region23: #{tpu_custom_call.1} parent=11 // pred_region
          %s336 = ssub.s32 2048, 2048
          %337 = vsyncadd [#allocation9], %s336
          %s338 = sshll.u32 [#allocation10], 4
          %s339 = int_to_ptr.vmem [resolvable:$true] %s338
          %344 = dma.hbm_to_vmem [thread:$0]  %s4, 2048, %s339, [#allocation9], 64, 64, 4
        $region24: #{tpu_custom_call.1} parent=11 // pred_fallthru
          _
        // Predicated region
        $region25: #{tpu_custom_call.1} parent=11 // pred_check
          %p345 = pneg %p179
        $region26: #{tpu_custom_call.1} parent=11 // pred_check_branch
          %347 = sbr.rel (%p345) target = $region28
        $region27: #{tpu_custom_call.1} parent=11 // pred_region
          %s349 = ssub.s32 1024, 1024
          %350 = vsyncadd [#allocation12], %s349
          %s351 = sshll.u32 [#allocation11], 4
          %s352 = int_to_ptr.vmem [resolvable:$true] %s351
          %357 = dma.hbm_to_vmem [thread:$0]  %s5, 1024, %s352, [#allocation12], 64, 64, 4
        $region28: #{tpu_custom_call.1} parent=11 // pred_fallthru
          _
        // Predicated region
        $region29: #{tpu_custom_call.1} parent=11 // pred_check
          %p358 = pneg %p200
        $region30: #{tpu_custom_call.1} parent=11 // pred_check_branch
          %360 = sbr.rel (%p358) target = $region32
        $region31: #{tpu_custom_call.1} parent=11 // pred_region
          %s362 = ssub.s32 3072, 3072
          %363 = vsyncadd [#allocation12], %s362
          %s364 = sshll.u32 [#allocation13], 4
          %s365 = int_to_ptr.vmem [resolvable:$true] %s364
          %370 = dma.hbm_to_vmem [thread:$0]  %s6, 3072, %s365, [#allocation12], 192, 192, 12
        $region32: #{tpu_custom_call.1} parent=11 // pred_fallthru
          _
        // Predicated region
        $region33: #{tpu_custom_call.1} parent=11 // pred_check
          %p371 = pneg %p221
        $region34: #{tpu_custom_call.1} parent=11 // pred_check_branch
          %373 = sbr.rel (%p371) target = $region36
        $region35: #{tpu_custom_call.1} parent=11 // pred_region
          %s375 = ssub.s32 6144, 6144
          %376 = vsyncadd [#allocation15], %s375
          %s377 = sshll.u32 [#allocation14], 4
          %s378 = int_to_ptr.vmem [resolvable:$true] %s377
          %383 = dma.hbm_to_vmem [thread:$0]  %s7, 6144, %s378, [#allocation15], 128, 128, 8
        $region36: #{tpu_custom_call.1} parent=11 // pred_fallthru
          _
        // Predicated region
        $region37: #{tpu_custom_call.1} parent=11 // pred_check
          %p384 = pneg %p242
        $region38: #{tpu_custom_call.1} parent=11 // pred_check_branch
          %386 = sbr.rel (%p384) target = $region40
        $region39: #{tpu_custom_call.1} parent=11 // pred_region
          %s388 = ssub.s32 2048, 2048
          %389 = vsyncadd [#allocation15], %s388
          %s390 = sshll.u32 [#allocation16], 4
          %s391 = int_to_ptr.vmem [resolvable:$true] %s390
          %396 = dma.hbm_to_vmem [thread:$0]  %s8, 2048, %s391, [#allocation15], 64, 64, 4
        $region40: #{tpu_custom_call.1} parent=11 // pred_fallthru
          _
        // Predicated region
        $region41: #{tpu_custom_call.1} parent=11 // pred_check
          %p397 = pneg %p263
        $region42: #{tpu_custom_call.1} parent=11 // pred_check_branch
          %399 = sbr.rel (%p397) target = $region44
        $region43: #{tpu_custom_call.1} parent=11 // pred_region
          %s401 = ssub.s32 1024, 1024
          %402 = vsyncadd [#allocation18], %s401
          %s403 = sshll.u32 [#allocation17], 4
          %s404 = int_to_ptr.vmem [resolvable:$true] %s403
          %409 = dma.hbm_to_vmem [thread:$0]  %s9, 1024, %s404, [#allocation18], 64, 64, 4
        $region44: #{tpu_custom_call.1} parent=11 // pred_fallthru
          _
      $region12: #{tpu_custom_call.1} parent=5 // pred_fallthru
        _
      %p410 = scmp.lt.s32.totalorder %s29, 2
      // Predicated region
      $region45: #{tpu_custom_call.1} parent=5 // pred_check
        %p411 = pneg %p410
      $region46: #{tpu_custom_call.1} parent=5 // pred_check_branch
        %413 = sbr.rel (%p411) target = $region48
      $region47: #{tpu_custom_call.1} parent=5 // pred_region
        // Predicated region
        $region49: #{tpu_custom_call.1} parent=47 // pred_check
          %p414 = pneg %p63
        $region50: #{tpu_custom_call.1} parent=47 // pred_check_branch
          %416 = sbr.rel (%p414) target = $region52
        $region51: #{tpu_custom_call.1} parent=47 // pred_region
          %s417 = sand.u32 %s53, 1
          %s418 = scalar_lea.sflag [#allocation3], %s417
          %s419 = sand.u32 %s53, 1
          %s420 = smul.addr %s419, 128
          %s421 = scalar_lea.vmem [#allocation2], %s420
          %s422 = smul.u32 32, %s37
          %s424 = ssub.s32 2048, 2048
          %425 = vsyncadd %s418, %s424
          %s426 = smul.addr %s36, 32
          %s427 = sadd.s32 %s422, %s426
          %s428 = smul.addr %s427, 64
          %s429 = scalar_lea.hbm %s0, %s428
          %s430 = sshll.u32 %s421, 4
          %s431 = int_to_ptr.vmem [resolvable:$true] %s430
          %436 = dma.hbm_to_vmem [thread:$0]  %s429, 2048, %s431, %s418, 64, 64, 4
        $region52: #{tpu_custom_call.1} parent=47 // pred_fallthru
          _
        // Predicated region
        $region53: #{tpu_custom_call.1} parent=47 // pred_check
          %p437 = pneg %p89
        $region54: #{tpu_custom_call.1} parent=47 // pred_check_branch
          %439 = sbr.rel (%p437) target = $region56
        $region55: #{tpu_custom_call.1} parent=47 // pred_region
          %s440 = sand.u32 %s29, 1
          %s441 = scalar_lea.sflag [#allocation6], %s440
          %s442 = sand.u32 %s79, 1
          %s443 = smul.addr %s442, 24
          %s444 = scalar_lea.vmem [#allocation5], %s443
          %s446 = ssub.s32 384, 384
          %447 = vsyncadd %s441, %s446
          %s448 = smul.addr %s36, 3
          %s449 = smul.addr %s448, 128
          %s450 = scalar_lea.hbm %s1, %s449
          %s452 = sshll.u32 %s444, 4
          %s453 = int_to_ptr.vmem [resolvable:$true] %s452
          %455 = dma.hbm_to_vmem [thread:$0]  %s450, 384, %s453, %s441
        $region56: #{tpu_custom_call.1} parent=47 // pred_fallthru
          _
      $region48: #{tpu_custom_call.1} parent=5 // pred_fallthru
        _
      %p456 = scmp.le.s32.totalorder 1, %s29
      %p457 = scmp.lt.s32.totalorder %s29, 3
      %p458 = pnand %p456, %p457
      %p459 = pneg %p458
      // Predicated region
      $region57: #{tpu_custom_call.1} parent=5 // pred_check
        _
      $region58: #{tpu_custom_call.1} parent=5 // pred_check_branch
        %461 = sbr.rel (%p458) target = $region60
      $region59: #{tpu_custom_call.1} parent=5 // pred_region
        %s462 = ssub.s32 %s29, 1
        %s463 = sand.u32 %s56, 1
        %s464 = scalar_lea.sflag [#allocation3], %s463
        %s465 = sand.u32 %s56, 1
        %s466 = smul.addr %s465, 128
        %s467 = scalar_lea.vmem [#allocation2], %s466
        // Predicated region
        $region61: #{tpu_custom_call.1} parent=59 // pred_check
          %p468 = pneg %p69
        $region62: #{tpu_custom_call.1} parent=59 // pred_check_branch
          %470 = sbr.rel (%p468) target = $region64
        $region63: #{tpu_custom_call.1} parent=59 // pred_region
          %471 = dma.done %s464, 2048
        $region64: #{tpu_custom_call.1} parent=59 // pred_fallthru
          _
        %s472 = sand.u32 %s34, 1
        %s473 = scalar_lea.sflag [#allocation6], %s472
        %s474 = sand.u32 %s82, 1
        %s475 = smul.addr %s474, 24
        %s476 = scalar_lea.vmem [#allocation5], %s475
        // Predicated region
        $region65: #{tpu_custom_call.1} parent=59 // pred_check
          %p477 = pneg %p95
        $region66: #{tpu_custom_call.1} parent=59 // pred_check_branch
          %479 = sbr.rel (%p477) target = $region68
        $region67: #{tpu_custom_call.1} parent=59 // pred_region
          %480 = dma.done %s473, 384
        $region68: #{tpu_custom_call.1} parent=59 // pred_fallthru
          _
        // Predicated region
        $region69: #{tpu_custom_call.1} parent=59 // pred_check
          %p481 = pneg %p116
        $region70: #{tpu_custom_call.1} parent=59 // pred_check_branch
          %483 = sbr.rel (%p481) target = $region72
        $region71: #{tpu_custom_call.1} parent=59 // pred_region
          %484 = dma.done [#allocation6], 3072
        $region72: #{tpu_custom_call.1} parent=59 // pred_fallthru
          _
        // Predicated region
        $region73: #{tpu_custom_call.1} parent=59 // pred_check
          %p485 = pneg %p137
        $region74: #{tpu_custom_call.1} parent=59 // pred_check_branch
          %487 = sbr.rel (%p485) target = $region76
        $region75: #{tpu_custom_call.1} parent=59 // pred_region
          %488 = dma.done [#allocation9], 6144
        $region76: #{tpu_custom_call.1} parent=59 // pred_fallthru
          _
        // Predicated region
        $region77: #{tpu_custom_call.1} parent=59 // pred_check
          %p489 = pneg %p158
        $region78: #{tpu_custom_call.1} parent=59 // pred_check_branch
          %491 = sbr.rel (%p489) target = $region80
        $region79: #{tpu_custom_call.1} parent=59 // pred_region
          %492 = dma.done [#allocation9], 2048
        $region80: #{tpu_custom_call.1} parent=59 // pred_fallthru
          _
        // Predicated region
        $region81: #{tpu_custom_call.1} parent=59 // pred_check
          %p493 = pneg %p179
        $region82: #{tpu_custom_call.1} parent=59 // pred_check_branch
          %495 = sbr.rel (%p493) target = $region84
        $region83: #{tpu_custom_call.1} parent=59 // pred_region
          %496 = dma.done [#allocation12], 1024
        $region84: #{tpu_custom_call.1} parent=59 // pred_fallthru
          _
        // Predicated region
        $region85: #{tpu_custom_call.1} parent=59 // pred_check
          %p497 = pneg %p200
        $region86: #{tpu_custom_call.1} parent=59 // pred_check_branch
          %499 = sbr.rel (%p497) target = $region88
        $region87: #{tpu_custom_call.1} parent=59 // pred_region
          %500 = dma.done [#allocation12], 3072
        $region88: #{tpu_custom_call.1} parent=59 // pred_fallthru
          _
        // Predicated region
        $region89: #{tpu_custom_call.1} parent=59 // pred_check
          %p501 = pneg %p221
        $region90: #{tpu_custom_call.1} parent=59 // pred_check_branch
          %503 = sbr.rel (%p501) target = $region92
        $region91: #{tpu_custom_call.1} parent=59 // pred_region
          %504 = dma.done [#allocation15], 6144
        $region92: #{tpu_custom_call.1} parent=59 // pred_fallthru
          _
        // Predicated region
        $region93: #{tpu_custom_call.1} parent=59 // pred_check
          %p505 = pneg %p242
        $region94: #{tpu_custom_call.1} parent=59 // pred_check_branch
          %507 = sbr.rel (%p505) target = $region96
        $region95: #{tpu_custom_call.1} parent=59 // pred_region
          %508 = dma.done [#allocation15], 2048
        $region96: #{tpu_custom_call.1} parent=59 // pred_fallthru
          _
        // Predicated region
        $region97: #{tpu_custom_call.1} parent=59 // pred_check
          %p509 = pneg %p263
        $region98: #{tpu_custom_call.1} parent=59 // pred_check_branch
          %511 = sbr.rel (%p509) target = $region100
        $region99: #{tpu_custom_call.1} parent=59 // pred_region
          %512 = dma.done [#allocation18], 1024
        $region100: #{tpu_custom_call.1} parent=59 // pred_fallthru
          _
        %s513 = sand.u32 %s56, 1
        %s514 = scalar_lea.sflag [#allocation3], %s513
        %s515 = sand.u32 %s56, 1
        %s516 = smul.addr %s515, 128
        %s517 = scalar_lea.vmem [#allocation2], %s516
        %p518 = pneg %p69
        %p519 = pneg %p66
        %s520 = sand.u32 %s34, 1
        %s521 = scalar_lea.sflag [#allocation6], %s520
        %s522 = sand.u32 %s82, 1
        %s523 = smul.addr %s522, 24
        %s524 = scalar_lea.vmem [#allocation5], %s523
        %p525 = pneg %p95
        %p526 = pneg %p92
        %p527 = pneg %p116
        %p528 = pneg %p113
        %p529 = pneg %p137
        %p530 = pneg %p134
        %p531 = pneg %p158
        %p532 = pneg %p155
        %p533 = pneg %p179
        %p534 = pneg %p176
        %p535 = pneg %p200
        %p536 = pneg %p197
        %p537 = pneg %p221
        %p538 = pneg %p218
        %p539 = pneg %p242
        %p540 = pneg %p239
        %p541 = pneg %p263
        %p542 = pneg %p260
        %p543 = pneg %p291
        %p544 = pneg %p288
        %s545 = sand.u32 %s278, 1
        %s546 = scalar_lea.sflag [#allocation4], %s545
        %s547 = sand.u32 %s278, 1
        %s548 = smul.addr %s547, 256
        %s549 = scalar_lea.vmem [#allocation19], %s548
        %s550 = smul.u32 32, %s39
        %s551 = smul.u32 32, %s39
        %v553 = vld [vmem:[%s467] sm:$0xf]
        %v554 = vld [vmem:[%s467 + $0x4] sm:$0xf]
        %v555 = vld [vmem:[%s467 + $0x8] sm:$0xf]
        %v556 = vld [vmem:[%s467 + $0xc] sm:$0xf]
        %v557 = vld [vmem:[%s467 + $0x10] sm:$0xf]
        %v558 = vld [vmem:[%s467 + $0x14] sm:$0xf]
        %v559 = vld [vmem:[%s467 + $0x18] sm:$0xf]
        %v560 = vld [vmem:[%s467 + $0x1c] sm:$0xf]
        %v561 = vld [vmem:[%s467 + $0x20] sm:$0xf]
        %v562 = vld [vmem:[%s467 + $0x24] sm:$0xf]
        %v563 = vld [vmem:[%s467 + $0x28] sm:$0xf]
        %v564 = vld [vmem:[%s467 + $0x2c] sm:$0xf]
        %v565 = vld [vmem:[%s467 + $0x30] sm:$0xf]
        %v566 = vld [vmem:[%s467 + $0x34] sm:$0xf]
        %v567 = vld [vmem:[%s467 + $0x38] sm:$0xf]
        %v568 = vld [vmem:[%s467 + $0x3c] sm:$0xf]
        %v569 = vld [vmem:[%s467 + $0x40] sm:$0xf]
        %v570 = vld [vmem:[%s467 + $0x44] sm:$0xf]
        %v571 = vld [vmem:[%s467 + $0x48] sm:$0xf]
        %v572 = vld [vmem:[%s467 + $0x4c] sm:$0xf]
        %v573 = vld [vmem:[%s467 + $0x50] sm:$0xf]
        %v574 = vld [vmem:[%s467 + $0x54] sm:$0xf]
        %v575 = vld [vmem:[%s467 + $0x58] sm:$0xf]
        %v576 = vld [vmem:[%s467 + $0x5c] sm:$0xf]
        %v577 = vld [vmem:[%s467 + $0x60] sm:$0xf]
        %v578 = vld [vmem:[%s467 + $0x64] sm:$0xf]
        %v579 = vld [vmem:[%s467 + $0x68] sm:$0xf]
        %v580 = vld [vmem:[%s467 + $0x6c] sm:$0xf]
        %v581 = vld [vmem:[%s467 + $0x70] sm:$0xf]
        %v582 = vld [vmem:[%s467 + $0x74] sm:$0xf]
        %v583 = vld [vmem:[%s467 + $0x78] sm:$0xf]
        %v584 = vld [vmem:[%s467 + $0x7c] sm:$0xf]
        %v585 = vld [vmem:[%s476] sm:$0xff]
        %v586 = vld [vmem:[%s476 + $0x8] sm:$0xff]
        %v587 = vld [vmem:[%s476 + $0x10] sm:$0xff]
        %v588 = vld [vmem:[#allocation7] sm:$0xff]
        %v589 = vld [vmem:[#allocation7 + $0x8] sm:$0xf]
        %v590 = vld [vmem:[#allocation7 + $0xc] sm:$0xff]
        %v591 = vld [vmem:[#allocation7 + $0x14] sm:$0xf]
        %v592 = vld [vmem:[#allocation7 + $0x18] sm:$0xff]
        %v593 = vld [vmem:[#allocation7 + $0x20] sm:$0xf]
        %v594 = vld [vmem:[#allocation7 + $0x24] sm:$0xff]
        %v595 = vld [vmem:[#allocation7 + $0x2c] sm:$0xf]
        %v596 = vld [vmem:[#allocation7 + $0x30] sm:$0xff]
        %v597 = vld [vmem:[#allocation7 + $0x38] sm:$0xf]
        %v598 = vld [vmem:[#allocation7 + $0x3c] sm:$0xff]
        %v599 = vld [vmem:[#allocation7 + $0x44] sm:$0xf]
        %v600 = vld [vmem:[#allocation7 + $0x48] sm:$0xff]
        %v601 = vld [vmem:[#allocation7 + $0x50] sm:$0xf]
        %v602 = vld [vmem:[#allocation7 + $0x54] sm:$0xff]
        %v603 = vld [vmem:[#allocation7 + $0x5c] sm:$0xf]
        %v604 = vld [vmem:[#allocation7 + $0x60] sm:$0xff]
        %v605 = vld [vmem:[#allocation7 + $0x68] sm:$0xf]
        %v606 = vld [vmem:[#allocation7 + $0x6c] sm:$0xff]
        %v607 = vld [vmem:[#allocation7 + $0x74] sm:$0xf]
        %v608 = vld [vmem:[#allocation7 + $0x78] sm:$0xff]
        %v609 = vld [vmem:[#allocation7 + $0x80] sm:$0xf]
        %v610 = vld [vmem:[#allocation7 + $0x84] sm:$0xff]
        %v611 = vld [vmem:[#allocation7 + $0x8c] sm:$0xf]
        %v612 = vld [vmem:[#allocation7 + $0x90] sm:$0xff]
        %v613 = vld [vmem:[#allocation7 + $0x98] sm:$0xf]
        %v614 = vld [vmem:[#allocation7 + $0x9c] sm:$0xff]
        %v615 = vld [vmem:[#allocation7 + $0xa4] sm:$0xf]
        %v616 = vld [vmem:[#allocation7 + $0xa8] sm:$0xff]
        %v617 = vld [vmem:[#allocation7 + $0xb0] sm:$0xf]
        %v618 = vld [vmem:[#allocation7 + $0xb4] sm:$0xff]
        %v619 = vld [vmem:[#allocation7 + $0xbc] sm:$0xf]
        %v620 = vlaneseq
        %v621 = vshrl.u32 %v620, 7
        %v622 = vsub.s32 0, %v621
        %v623 = vrot.slane %v585, %v622
        %v624 = vlaneseq
        %v625 = vshrl.u32 %v624, 7
        %v626 = vsub.s32 0, %v625
        %v627 = vrot.slane %v586, %v626
        %v628 = vlaneseq
        %v629 = vshrl.u32 %v628, 7
        %v630 = vsub.s32 0, %v629
        %v631 = vrot.slane %v587, %v630
        %v664 = vunpack.c.l.b16 %v553
        %v665 = vunpack.c.l.b16 %v554
        %v666 = vunpack.c.l.b16 %v555
        %v667 = vunpack.c.l.b16 %v556
        %v668 = vunpack.c.l.b16 %v557
        %v669 = vunpack.c.l.b16 %v558
        %v670 = vunpack.c.l.b16 %v559
        %v671 = vunpack.c.l.b16 %v560
        %v672 = vunpack.c.l.b16 %v561
        %v673 = vunpack.c.l.b16 %v562
        %v674 = vunpack.c.l.b16 %v563
        %v675 = vunpack.c.l.b16 %v564
        %v676 = vunpack.c.l.b16 %v565
        %v677 = vunpack.c.l.b16 %v566
        %v678 = vunpack.c.l.b16 %v567
        %v679 = vunpack.c.l.b16 %v568
        %v680 = vunpack.c.l.b16 %v569
        %v681 = vunpack.c.l.b16 %v570
        %v682 = vunpack.c.l.b16 %v571
        %v683 = vunpack.c.l.b16 %v572
        %v684 = vunpack.c.l.b16 %v573
        %v685 = vunpack.c.l.b16 %v574
        %v686 = vunpack.c.l.b16 %v575
        %v687 = vunpack.c.l.b16 %v576
        %v688 = vunpack.c.l.b16 %v577
        %v689 = vunpack.c.l.b16 %v578
        %v690 = vunpack.c.l.b16 %v579
        %v691 = vunpack.c.l.b16 %v580
        %v692 = vunpack.c.l.b16 %v581
        %v693 = vunpack.c.l.b16 %v582
        %v694 = vunpack.c.l.b16 %v583
        %v695 = vunpack.c.l.b16 %v584
        %v696 = vpack.c.b16 %v665, %v664
        %v697 = vpack.c.b16 %v667, %v666
        %v698 = vpack.c.b16 %v669, %v668
        %v699 = vpack.c.b16 %v671, %v670
        %v700 = vpack.c.b16 %v673, %v672
        %v701 = vpack.c.b16 %v675, %v674
        %v702 = vpack.c.b16 %v677, %v676
        %v703 = vpack.c.b16 %v679, %v678
        %v704 = vpack.c.b16 %v681, %v680
        %v705 = vpack.c.b16 %v683, %v682
        %v706 = vpack.c.b16 %v685, %v684
        %v707 = vpack.c.b16 %v687, %v686
        %v708 = vpack.c.b16 %v689, %v688
        %v709 = vpack.c.b16 %v691, %v690
        %v710 = vpack.c.b16 %v693, %v692
        %v711 = vpack.c.b16 %v695, %v694
        %v760 = vunpack.c.l.b16 %v588
        %v761 = vunpack.c.h.b16 %v588
        %v762 = vunpack.c.l.b16 %v589
        %v763 = vunpack.c.l.b16 %v590
        %v764 = vunpack.c.h.b16 %v590
        %v765 = vunpack.c.l.b16 %v591
        %v766 = vunpack.c.l.b16 %v592
        %v767 = vunpack.c.h.b16 %v592
        %v768 = vunpack.c.l.b16 %v593
        %v769 = vunpack.c.l.b16 %v594
        %v770 = vunpack.c.h.b16 %v594
        %v771 = vunpack.c.l.b16 %v595
        %v772 = vunpack.c.l.b16 %v596
        %v773 = vunpack.c.h.b16 %v596
        %v774 = vunpack.c.l.b16 %v597
        %v775 = vunpack.c.l.b16 %v598
        %v776 = vunpack.c.h.b16 %v598
        %v777 = vunpack.c.l.b16 %v599
        %v778 = vunpack.c.l.b16 %v600
        %v779 = vunpack.c.h.b16 %v600
        %v780 = vunpack.c.l.b16 %v601
        %v781 = vunpack.c.l.b16 %v602
        %v782 = vunpack.c.h.b16 %v602
        %v783 = vunpack.c.l.b16 %v603
        %v784 = vunpack.c.l.b16 %v604
        %v785 = vunpack.c.h.b16 %v604
        %v786 = vunpack.c.l.b16 %v605
        %v787 = vunpack.c.l.b16 %v606
        %v788 = vunpack.c.h.b16 %v606
        %v789 = vunpack.c.l.b16 %v607
        %v790 = vunpack.c.l.b16 %v608
        %v791 = vunpack.c.h.b16 %v608
        %v792 = vunpack.c.l.b16 %v609
        %v793 = vunpack.c.l.b16 %v610
        %v794 = vunpack.c.h.b16 %v610
        %v795 = vunpack.c.l.b16 %v611
        %v796 = vunpack.c.l.b16 %v612
        %v797 = vunpack.c.h.b16 %v612
        %v798 = vunpack.c.l.b16 %v613
        %v799 = vunpack.c.l.b16 %v614
        %v800 = vunpack.c.h.b16 %v614
        %v801 = vunpack.c.l.b16 %v615
        %v802 = vunpack.c.l.b16 %v616
        %v803 = vunpack.c.h.b16 %v616
        %v804 = vunpack.c.l.b16 %v617
        %v805 = vunpack.c.l.b16 %v618
        %v806 = vunpack.c.h.b16 %v618
        %v807 = vunpack.c.l.b16 %v619
        %v808 = vpack.c.b16 %v763, %v760
        %v809 = vpack.c.b16 %v764, %v761
        %v810 = vpack.c.b16 %v765, %v762
        %v811 = vpack.c.b16 %v769, %v766
        %v812 = vpack.c.b16 %v770, %v767
        %v813 = vpack.c.b16 %v771, %v768
        %v814 = vpack.c.b16 %v775, %v772
        %v815 = vpack.c.b16 %v776, %v773
        %v816 = vpack.c.b16 %v777, %v774
        %v817 = vpack.c.b16 %v781, %v778
        %v818 = vpack.c.b16 %v782, %v779
        %v819 = vpack.c.b16 %v783, %v780
        %v820 = vpack.c.b16 %v787, %v784
        %v821 = vpack.c.b16 %v788, %v785
        %v822 = vpack.c.b16 %v789, %v786
        %v823 = vpack.c.b16 %v793, %v790
        %v824 = vpack.c.b16 %v794, %v791
        %v825 = vpack.c.b16 %v795, %v792
        %v826 = vpack.c.b16 %v799, %v796
        %v827 = vpack.c.b16 %v800, %v797
        %v828 = vpack.c.b16 %v801, %v798
        %v829 = vpack.c.b16 %v805, %v802
        %v830 = vpack.c.b16 %v806, %v803
        %v831 = vpack.c.b16 %v807, %v804
        %856 = vmatprep.subr.bf16.mxu0 %v830
        %857 = vmatpush1.bf16.msra.mxu0 %v829
        %858 = vmatprep.subr.bf16.mxu0 %v827
        %859 = vmatpush1.bf16.msra.mxu0 %v826
        %860 = vmatprep.subr.bf16.mxu0 %v824
        %861 = vmatpush1.bf16.msra.mxu0 %v823
        %862 = vmatprep.subr.bf16.mxu0 %v821
        %863 = vmatpush1.bf16.msra.mxu0 %v820
        %864 = vmatprep.subr.bf16.mxu0 %v818
        %865 = vmatpush1.bf16.msra.mxu0 %v817
        %866 = vmatprep.subr.bf16.mxu0 %v815
        %867 = vmatpush1.bf16.msra.mxu0 %v814
        %868 = vmatprep.subr.bf16.mxu0 %v812
        %869 = vmatpush1.bf16.msra.mxu0 %v811
        %870 = vmatprep.subr.bf16.mxu0 %v809
        %871 = vmatpush1.bf16.msra.mxu0 %v808
        %872 = vmatprep.subr.bf16.mxu0 0
        %873 = vmatpush2.bf16.msra.mxu0 0
        %874 = vmatprep.subr.bf16.mxu0 0
        %875 = vmatpush2.bf16.msra.mxu0 0
        %876 = vmatprep.subr.bf16.mxu0 0
        %877 = vmatpush2.bf16.msra.mxu0 0
        %878 = vmatprep.subr.bf16.mxu0 0
        %879 = vmatpush2.bf16.msra.mxu0 0
        %880 = vmatprep.subr.bf16.mxu0 0
        %881 = vmatpush2.bf16.msra.mxu0 0
        %882 = vmatprep.subr.bf16.mxu0 0
        %883 = vmatpush2.bf16.msra.mxu0 0
        %884 = vmatprep.subr.bf16.mxu0 0
        %885 = vmatpush2.bf16.msra.mxu0 0
        %886 = vmatprep.subr.bf16.mxu0 0
        %887 = vmatpush2.bf16.msra.mxu0 0
        %888 = vmatprep.mubr.bf16.mxu0 0
        %889 = vmatmul.mubr.bf16.gmra.mxu0 %v696
        %v890 = vpop.f32.mrf.mxu0
        %v891 = vadd.f32 %v623, %v890
        %v892 = vpop.f32.mrf.mxu0
        %v893 = vadd.f32 %v627, %v892
        %v894 = vpop.f32.mrf.mxu0
        %v895 = vadd.f32 %v623, %v894
        %v896 = vpop.f32.mrf.mxu0
        %v897 = vadd.f32 %v627, %v896
        %898 = vmatprep.mubr.bf16.mxu0 0
        %899 = vmatmul.mubr.bf16.gmra.mxu0 %v697
        %v900 = vpop.f32.mrf.mxu0
        %v901 = vadd.f32 %v623, %v900
        %v902 = vpop.f32.mrf.mxu0
        %v903 = vadd.f32 %v627, %v902
        %v904 = vpop.f32.mrf.mxu0
        %v905 = vadd.f32 %v623, %v904
        %v906 = vpop.f32.mrf.mxu0
        %v907 = vadd.f32 %v627, %v906
        %908 = vmatprep.mubr.bf16.mxu0 0
        %909 = vmatmul.mubr.bf16.gmra.mxu0 %v698
        %v910 = vpop.f32.mrf.mxu0
        %v911 = vadd.f32 %v623, %v910
        %v912 = vpop.f32.mrf.mxu0
        %v913 = vadd.f32 %v627, %v912
        %v914 = vpop.f32.mrf.mxu0
        %v915 = vadd.f32 %v623, %v914
        %v916 = vpop.f32.mrf.mxu0
        %v917 = vadd.f32 %v627, %v916
        %918 = vmatprep.mubr.bf16.mxu0 0
        %919 = vmatmul.mubr.bf16.gmra.mxu0 %v699
        %v920 = vpop.f32.mrf.mxu0
        %v921 = vadd.f32 %v623, %v920
        %v922 = vpop.f32.mrf.mxu0
        %v923 = vadd.f32 %v627, %v922
        %v924 = vpop.f32.mrf.mxu0
        %v925 = vadd.f32 %v623, %v924
        %v926 = vpop.f32.mrf.mxu0
        %v927 = vadd.f32 %v627, %v926
        %928 = vmatprep.mubr.bf16.mxu0 0
        %929 = vmatmul.mubr.bf16.gmra.mxu0 %v700
        %v930 = vpop.f32.mrf.mxu0
        %v931 = vadd.f32 %v623, %v930
        %v932 = vpop.f32.mrf.mxu0
        %v933 = vadd.f32 %v627, %v932
        %v934 = vpop.f32.mrf.mxu0
        %v935 = vadd.f32 %v623, %v934
        %v936 = vpop.f32.mrf.mxu0
        %v937 = vadd.f32 %v627, %v936
        %938 = vmatprep.mubr.bf16.mxu0 0
        %939 = vmatmul.mubr.bf16.gmra.mxu0 %v701
        %v940 = vpop.f32.mrf.mxu0
        %v941 = vadd.f32 %v623, %v940
        %v942 = vpop.f32.mrf.mxu0
        %v943 = vadd.f32 %v627, %v942
        %v944 = vpop.f32.mrf.mxu0
        %v945 = vadd.f32 %v623, %v944
        %v946 = vpop.f32.mrf.mxu0
        %v947 = vadd.f32 %v627, %v946
        %948 = vmatprep.mubr.bf16.mxu0 0
        %949 = vmatmul.mubr.bf16.gmra.mxu0 %v702
        %v950 = vpop.f32.mrf.mxu0
        %v951 = vadd.f32 %v623, %v950
        %v952 = vpop.f32.mrf.mxu0
        %v953 = vadd.f32 %v627, %v952
        %v954 = vpop.f32.mrf.mxu0
        %v955 = vadd.f32 %v623, %v954
        %v956 = vpop.f32.mrf.mxu0
        %v957 = vadd.f32 %v627, %v956
        %958 = vmatprep.mubr.bf16.mxu0 0
        %959 = vmatmul.mubr.bf16.gmra.mxu0 %v703
        %v960 = vpop.f32.mrf.mxu0
        %v961 = vadd.f32 %v623, %v960
        %v962 = vpop.f32.mrf.mxu0
        %v963 = vadd.f32 %v627, %v962
        %v964 = vpop.f32.mrf.mxu0
        %v965 = vadd.f32 %v623, %v964
        %v966 = vpop.f32.mrf.mxu0
        %v967 = vadd.f32 %v627, %v966
        %968 = vmatprep.mubr.bf16.mxu0 0
        %969 = vmatmul.mubr.bf16.gmra.mxu0 %v704
        %v970 = vpop.f32.mrf.mxu0
        %v971 = vadd.f32 %v623, %v970
        %v972 = vpop.f32.mrf.mxu0
        %v973 = vadd.f32 %v627, %v972
        %v974 = vpop.f32.mrf.mxu0
        %v975 = vadd.f32 %v623, %v974
        %v976 = vpop.f32.mrf.mxu0
        %v977 = vadd.f32 %v627, %v976
        %978 = vmatprep.mubr.bf16.mxu0 0
        %979 = vmatmul.mubr.bf16.gmra.mxu0 %v705
        %v980 = vpop.f32.mrf.mxu0
        %v981 = vadd.f32 %v623, %v980
        %v982 = vpop.f32.mrf.mxu0
        %v983 = vadd.f32 %v627, %v982
        %v984 = vpop.f32.mrf.mxu0
        %v985 = vadd.f32 %v623, %v984
        %v986 = vpop.f32.mrf.mxu0
        %v987 = vadd.f32 %v627, %v986
        %988 = vmatprep.mubr.bf16.mxu0 0
        %989 = vmatmul.mubr.bf16.gmra.mxu0 %v706
        %v990 = vpop.f32.mrf.mxu0
        %v991 = vadd.f32 %v623, %v990
        %v992 = vpop.f32.mrf.mxu0
        %v993 = vadd.f32 %v627, %v992
        %v994 = vpop.f32.mrf.mxu0
        %v995 = vadd.f32 %v623, %v994
        %v996 = vpop.f32.mrf.mxu0
        %v997 = vadd.f32 %v627, %v996
        %998 = vmatprep.mubr.bf16.mxu0 0
        %999 = vmatmul.mubr.bf16.gmra.mxu0 %v707
        %v1000 = vpop.f32.mrf.mxu0
        %v1001 = vadd.f32 %v623, %v1000
        %v1002 = vpop.f32.mrf.mxu0
        %v1003 = vadd.f32 %v627, %v1002
        %v1004 = vpop.f32.mrf.mxu0
        %v1005 = vadd.f32 %v623, %v1004
        %v1006 = vpop.f32.mrf.mxu0
        %v1007 = vadd.f32 %v627, %v1006
        %1008 = vmatprep.mubr.bf16.mxu0 0
        %1009 = vmatmul.mubr.bf16.gmra.mxu0 %v708
        %v1010 = vpop.f32.mrf.mxu0
        %v1011 = vadd.f32 %v623, %v1010
        %v1012 = vpop.f32.mrf.mxu0
        %v1013 = vadd.f32 %v627, %v1012
        %v1014 = vpop.f32.mrf.mxu0
        %v1015 = vadd.f32 %v623, %v1014
        %v1016 = vpop.f32.mrf.mxu0
        %v1017 = vadd.f32 %v627, %v1016
        %1018 = vmatprep.mubr.bf16.mxu0 0
        %1019 = vmatmul.mubr.bf16.gmra.mxu0 %v709
        %v1020 = vpop.f32.mrf.mxu0
        %v1021 = vadd.f32 %v623, %v1020
        %v1022 = vpop.f32.mrf.mxu0
        %v1023 = vadd.f32 %v627, %v1022
        %v1024 = vpop.f32.mrf.mxu0
        %v1025 = vadd.f32 %v623, %v1024
        %v1026 = vpop.f32.mrf.mxu0
        %v1027 = vadd.f32 %v627, %v1026
        %1028 = vmatprep.mubr.bf16.mxu0 0
        %1029 = vmatmul.mubr.bf16.gmra.mxu0 %v710
        %v1030 = vpop.f32.mrf.mxu0
        %v1031 = vadd.f32 %v623, %v1030
        %v1032 = vpop.f32.mrf.mxu0
        %v1033 = vadd.f32 %v627, %v1032
        %v1034 = vpop.f32.mrf.mxu0
        %v1035 = vadd.f32 %v623, %v1034
        %v1036 = vpop.f32.mrf.mxu0
        %v1037 = vadd.f32 %v627, %v1036
        %1038 = vmatprep.mubr.bf16.mxu0 0
        %1039 = vmatmul.mubr.bf16.gmra.mxu0 %v711
        %v1040 = vpop.f32.mrf.mxu0
        %v1041 = vadd.f32 %v623, %v1040
        %v1042 = vpop.f32.mrf.mxu0
        %v1043 = vadd.f32 %v627, %v1042
        %v1044 = vpop.f32.mrf.mxu0
        %v1045 = vadd.f32 %v623, %v1044
        %v1046 = vpop.f32.mrf.mxu0
        %v1047 = vadd.f32 %v627, %v1046
        %1048 = vdwg.mxu0
        %1049 = vmatprep.subr.bf16.mxu0 0
        %1050 = vmatpush1.bf16.msra.mxu0 %v831
        %1051 = vmatprep.subr.bf16.mxu0 0
        %1052 = vmatpush1.bf16.msra.mxu0 %v828
        %1053 = vmatprep.subr.bf16.mxu0 0
        %1054 = vmatpush1.bf16.msra.mxu0 %v825
        %1055 = vmatprep.subr.bf16.mxu0 0
        %1056 = vmatpush1.bf16.msra.mxu0 %v822
        %1057 = vmatprep.subr.bf16.mxu0 0
        %1058 = vmatpush1.bf16.msra.mxu0 %v819
        %1059 = vmatprep.subr.bf16.mxu0 0
        %1060 = vmatpush1.bf16.msra.mxu0 %v816
        %1061 = vmatprep.subr.bf16.mxu0 0
        %1062 = vmatpush1.bf16.msra.mxu0 %v813
        %1063 = vmatprep.subr.bf16.mxu0 0
        %1064 = vmatpush1.bf16.msra.mxu0 %v810
        %1065 = vmatprep.subr.bf16.mxu0 0
        %1066 = vmatpush2.bf16.msra.mxu0 0
        %1067 = vmatprep.subr.bf16.mxu0 0
        %1068 = vmatpush2.bf16.msra.mxu0 0
        %1069 = vmatprep.subr.bf16.mxu0 0
        %1070 = vmatpush2.bf16.msra.mxu0 0
        %1071 = vmatprep.subr.bf16.mxu0 0
        %1072 = vmatpush2.bf16.msra.mxu0 0
        %1073 = vmatprep.subr.bf16.mxu0 0
        %1074 = vmatpush2.bf16.msra.mxu0 0
        %1075 = vmatprep.subr.bf16.mxu0 0
        %1076 = vmatpush2.bf16.msra.mxu0 0
        %1077 = vmatprep.subr.bf16.mxu0 0
        %1078 = vmatpush2.bf16.msra.mxu0 0
        %1079 = vmatprep.subr.bf16.mxu0 0
        %1080 = vmatpush2.bf16.msra.mxu0 0
        %1081 = vmatprep.mubr.bf16.mxu0 0
        %1082 = vmatmul.mubr.bf16.gmra.mxu0 %v696
        %v1083 = vpop.f32.mrf.mxu0
        %v1084 = vadd.f32 %v631, %v1083
        %v1085 = vpop.f32.mrf.mxu0
        %v1086 = vpop.f32.mrf.mxu0
        %v1087 = vadd.f32 %v631, %v1086
        %v1088 = vpop.f32.mrf.mxu0
        %1089 = vmatprep.mubr.bf16.mxu0 0
        %1090 = vmatmul.mubr.bf16.gmra.mxu0 %v697
        %v1091 = vpop.f32.mrf.mxu0
        %v1092 = vadd.f32 %v631, %v1091
        %v1093 = vpop.f32.mrf.mxu0
        %v1094 = vpop.f32.mrf.mxu0
        %v1095 = vadd.f32 %v631, %v1094
        %v1096 = vpop.f32.mrf.mxu0
        %1097 = vmatprep.mubr.bf16.mxu0 0
        %1098 = vmatmul.mubr.bf16.gmra.mxu0 %v698
        %v1099 = vpop.f32.mrf.mxu0
        %v1100 = vadd.f32 %v631, %v1099
        %v1101 = vpop.f32.mrf.mxu0
        %v1102 = vpop.f32.mrf.mxu0
        %v1103 = vadd.f32 %v631, %v1102
        %v1104 = vpop.f32.mrf.mxu0
        %1105 = vmatprep.mubr.bf16.mxu0 0
        %1106 = vmatmul.mubr.bf16.gmra.mxu0 %v699
        %v1107 = vpop.f32.mrf.mxu0
        %v1108 = vadd.f32 %v631, %v1107
        %v1109 = vpop.f32.mrf.mxu0
        %v1110 = vpop.f32.mrf.mxu0
        %v1111 = vadd.f32 %v631, %v1110
        %v1112 = vpop.f32.mrf.mxu0
        %1113 = vmatprep.mubr.bf16.mxu0 0
        %1114 = vmatmul.mubr.bf16.gmra.mxu0 %v700
        %v1115 = vpop.f32.mrf.mxu0
        %v1116 = vadd.f32 %v631, %v1115
        %v1117 = vpop.f32.mrf.mxu0
        %v1118 = vpop.f32.mrf.mxu0
        %v1119 = vadd.f32 %v631, %v1118
        %v1120 = vpop.f32.mrf.mxu0
        %1121 = vmatprep.mubr.bf16.mxu0 0
        %1122 = vmatmul.mubr.bf16.gmra.mxu0 %v701
        %v1123 = vpop.f32.mrf.mxu0
        %v1124 = vadd.f32 %v631, %v1123
        %v1125 = vpop.f32.mrf.mxu0
        %v1126 = vpop.f32.mrf.mxu0
        %v1127 = vadd.f32 %v631, %v1126
        %v1128 = vpop.f32.mrf.mxu0
        %1129 = vmatprep.mubr.bf16.mxu0 0
        %1130 = vmatmul.mubr.bf16.gmra.mxu0 %v702
        %v1131 = vpop.f32.mrf.mxu0
        %v1132 = vadd.f32 %v631, %v1131
        %v1133 = vpop.f32.mrf.mxu0
        %v1134 = vpop.f32.mrf.mxu0
        %v1135 = vadd.f32 %v631, %v1134
        %v1136 = vpop.f32.mrf.mxu0
        %1137 = vmatprep.mubr.bf16.mxu0 0
        %1138 = vmatmul.mubr.bf16.gmra.mxu0 %v703
        %v1139 = vpop.f32.mrf.mxu0
        %v1140 = vadd.f32 %v631, %v1139
        %v1141 = vpop.f32.mrf.mxu0
        %v1142 = vpop.f32.mrf.mxu0
        %v1143 = vadd.f32 %v631, %v1142
        %v1144 = vpop.f32.mrf.mxu0
        %1145 = vmatprep.mubr.bf16.mxu0 0
        %1146 = vmatmul.mubr.bf16.gmra.mxu0 %v704
        %v1147 = vpop.f32.mrf.mxu0
        %v1148 = vadd.f32 %v631, %v1147
        %v1149 = vpop.f32.mrf.mxu0
        %v1150 = vpop.f32.mrf.mxu0
        %v1151 = vadd.f32 %v631, %v1150
        %v1152 = vpop.f32.mrf.mxu0
        %1153 = vmatprep.mubr.bf16.mxu0 0
        %1154 = vmatmul.mubr.bf16.gmra.mxu0 %v705
        %v1155 = vpop.f32.mrf.mxu0
        %v1156 = vadd.f32 %v631, %v1155
        %v1157 = vpop.f32.mrf.mxu0
        %v1158 = vpop.f32.mrf.mxu0
        %v1159 = vadd.f32 %v631, %v1158
        %v1160 = vpop.f32.mrf.mxu0
        %1161 = vmatprep.mubr.bf16.mxu0 0
        %1162 = vmatmul.mubr.bf16.gmra.mxu0 %v706
        %v1163 = vpop.f32.mrf.mxu0
        %v1164 = vadd.f32 %v631, %v1163
        %v1165 = vpop.f32.mrf.mxu0
        %v1166 = vpop.f32.mrf.mxu0
        %v1167 = vadd.f32 %v631, %v1166
        %v1168 = vpop.f32.mrf.mxu0
        %1169 = vmatprep.mubr.bf16.mxu0 0
        %1170 = vmatmul.mubr.bf16.gmra.mxu0 %v707
        %v1171 = vpop.f32.mrf.mxu0
        %v1172 = vadd.f32 %v631, %v1171
        %v1173 = vpop.f32.mrf.mxu0
        %v1174 = vpop.f32.mrf.mxu0
        %v1175 = vadd.f32 %v631, %v1174
        %v1176 = vpop.f32.mrf.mxu0
        %1177 = vmatprep.mubr.bf16.mxu0 0
        %1178 = vmatmul.mubr.bf16.gmra.mxu0 %v708
        %v1179 = vpop.f32.mrf.mxu0
        %v1180 = vadd.f32 %v631, %v1179
        %v1181 = vpop.f32.mrf.mxu0
        %v1182 = vpop.f32.mrf.mxu0
        %v1183 = vadd.f32 %v631, %v1182
        %v1184 = vpop.f32.mrf.mxu0
        %1185 = vmatprep.mubr.bf16.mxu0 0
        %1186 = vmatmul.mubr.bf16.gmra.mxu0 %v709
        %v1187 = vpop.f32.mrf.mxu0
        %v1188 = vadd.f32 %v631, %v1187
        %v1189 = vpop.f32.mrf.mxu0
        %v1190 = vpop.f32.mrf.mxu0
        %v1191 = vadd.f32 %v631, %v1190
        %v1192 = vpop.f32.mrf.mxu0
        %1193 = vmatprep.mubr.bf16.mxu0 0
        %1194 = vmatmul.mubr.bf16.gmra.mxu0 %v710
        %v1195 = vpop.f32.mrf.mxu0
        %v1196 = vadd.f32 %v631, %v1195
        %v1197 = vpop.f32.mrf.mxu0
        %v1198 = vpop.f32.mrf.mxu0
        %v1199 = vadd.f32 %v631, %v1198
        %v1200 = vpop.f32.mrf.mxu0
        %1201 = vmatprep.mubr.bf16.mxu0 0
        %1202 = vmatmul.mubr.bf16.gmra.mxu0 %v711
        %v1203 = vpop.f32.mrf.mxu0
        %v1204 = vadd.f32 %v631, %v1203
        %v1205 = vpop.f32.mrf.mxu0
        %v1206 = vpop.f32.mrf.mxu0
        %v1207 = vadd.f32 %v631, %v1206
        %v1208 = vpop.f32.mrf.mxu0
        %1209 = vdwg.mxu0
        %v1210 = vmax.f32 %v891, 0.0
        %v1211 = vmax.f32 %v893, 0.0
        %v1212 = vmax.f32 %v1084, 0.0
        %v1213 = vmax.f32 %v895, 0.0
        %v1214 = vmax.f32 %v897, 0.0
        %v1215 = vmax.f32 %v1087, 0.0
        %v1216 = vmax.f32 %v901, 0.0
        %v1217 = vmax.f32 %v903, 0.0
        %v1218 = vmax.f32 %v1092, 0.0
        %v1219 = vmax.f32 %v905, 0.0
        %v1220 = vmax.f32 %v907, 0.0
        %v1221 = vmax.f32 %v1095, 0.0
        %v1222 = vmax.f32 %v911, 0.0
        %v1223 = vmax.f32 %v913, 0.0
        %v1224 = vmax.f32 %v1100, 0.0
        %v1225 = vmax.f32 %v915, 0.0
        %v1226 = vmax.f32 %v917, 0.0
        %v1227 = vmax.f32 %v1103, 0.0
        %v1228 = vmax.f32 %v921, 0.0
        %v1229 = vmax.f32 %v923, 0.0
        %v1230 = vmax.f32 %v1108, 0.0
        %v1231 = vmax.f32 %v925, 0.0
        %v1232 = vmax.f32 %v927, 0.0
        %v1233 = vmax.f32 %v1111, 0.0
        %v1234 = vmax.f32 %v931, 0.0
        %v1235 = vmax.f32 %v933, 0.0
        %v1236 = vmax.f32 %v1116, 0.0
        %v1237 = vmax.f32 %v935, 0.0
        %v1238 = vmax.f32 %v937, 0.0
        %v1239 = vmax.f32 %v1119, 0.0
        %v1240 = vmax.f32 %v941, 0.0
        %v1241 = vmax.f32 %v943, 0.0
        %v1242 = vmax.f32 %v1124, 0.0
        %v1243 = vmax.f32 %v945, 0.0
        %v1244 = vmax.f32 %v947, 0.0
        %v1245 = vmax.f32 %v1127, 0.0
        %v1246 = vmax.f32 %v951, 0.0
        %v1247 = vmax.f32 %v953, 0.0
        %v1248 = vmax.f32 %v1132, 0.0
        %v1249 = vmax.f32 %v955, 0.0
        %v1250 = vmax.f32 %v957, 0.0
        %v1251 = vmax.f32 %v1135, 0.0
        %v1252 = vmax.f32 %v961, 0.0
        %v1253 = vmax.f32 %v963, 0.0
        %v1254 = vmax.f32 %v1140, 0.0
        %v1255 = vmax.f32 %v965, 0.0
        %v1256 = vmax.f32 %v967, 0.0
        %v1257 = vmax.f32 %v1143, 0.0
        %v1258 = vmax.f32 %v971, 0.0
        %v1259 = vmax.f32 %v973, 0.0
        %v1260 = vmax.f32 %v1148, 0.0
        %v1261 = vmax.f32 %v975, 0.0
        %v1262 = vmax.f32 %v977, 0.0
        %v1263 = vmax.f32 %v1151, 0.0
        %v1264 = vmax.f32 %v981, 0.0
        %v1265 = vmax.f32 %v983, 0.0
        %v1266 = vmax.f32 %v1156, 0.0
        %v1267 = vmax.f32 %v985, 0.0
        %v1268 = vmax.f32 %v987, 0.0
        %v1269 = vmax.f32 %v1159, 0.0
        %v1270 = vmax.f32 %v991, 0.0
        %v1271 = vmax.f32 %v993, 0.0
        %v1272 = vmax.f32 %v1164, 0.0
        %v1273 = vmax.f32 %v995, 0.0
        %v1274 = vmax.f32 %v997, 0.0
        %v1275 = vmax.f32 %v1167, 0.0
        %v1276 = vmax.f32 %v1001, 0.0
        %v1277 = vmax.f32 %v1003, 0.0
        %v1278 = vmax.f32 %v1172, 0.0
        %v1279 = vmax.f32 %v1005, 0.0
        %v1280 = vmax.f32 %v1007, 0.0
        %v1281 = vmax.f32 %v1175, 0.0
        %v1282 = vmax.f32 %v1011, 0.0
        %v1283 = vmax.f32 %v1013, 0.0
        %v1284 = vmax.f32 %v1180, 0.0
        %v1285 = vmax.f32 %v1015, 0.0
        %v1286 = vmax.f32 %v1017, 0.0
        %v1287 = vmax.f32 %v1183, 0.0
        %v1288 = vmax.f32 %v1021, 0.0
        %v1289 = vmax.f32 %v1023, 0.0
        %v1290 = vmax.f32 %v1188, 0.0
        %v1291 = vmax.f32 %v1025, 0.0
        %v1292 = vmax.f32 %v1027, 0.0
        %v1293 = vmax.f32 %v1191, 0.0
        %v1294 = vmax.f32 %v1031, 0.0
        %v1295 = vmax.f32 %v1033, 0.0
        %v1296 = vmax.f32 %v1196, 0.0
        %v1297 = vmax.f32 %v1035, 0.0
        %v1298 = vmax.f32 %v1037, 0.0
        %v1299 = vmax.f32 %v1199, 0.0
        %v1300 = vmax.f32 %v1041, 0.0
        %v1301 = vmax.f32 %v1043, 0.0
        %v1302 = vmax.f32 %v1204, 0.0
        %v1303 = vmax.f32 %v1045, 0.0
        %v1304 = vmax.f32 %v1047, 0.0
        %v1305 = vmax.f32 %v1207, 0.0
        %v1306 = vpack.c.bf16 %v1213, %v1210
        %v1307 = vpack.c.bf16 %v1214, %v1211
        %v1308 = vpack.c.bf16 %v1215, %v1212
        %v1309 = vpack.c.bf16 %v1219, %v1216
        %v1310 = vpack.c.bf16 %v1220, %v1217
        %v1311 = vpack.c.bf16 %v1221, %v1218
        %v1312 = vpack.c.bf16 %v1225, %v1222
        %v1313 = vpack.c.bf16 %v1226, %v1223
        %v1314 = vpack.c.bf16 %v1227, %v1224
        %v1315 = vpack.c.bf16 %v1231, %v1228
        %v1316 = vpack.c.bf16 %v1232, %v1229
        %v1317 = vpack.c.bf16 %v1233, %v1230
        %v1318 = vpack.c.bf16 %v1237, %v1234
        %v1319 = vpack.c.bf16 %v1238, %v1235
        %v1320 = vpack.c.bf16 %v1239, %v1236
        %v1321 = vpack.c.bf16 %v1243, %v1240
        %v1322 = vpack.c.bf16 %v1244, %v1241
        %v1323 = vpack.c.bf16 %v1245, %v1242
        %v1324 = vpack.c.bf16 %v1249, %v1246
        %v1325 = vpack.c.bf16 %v1250, %v1247
        %v1326 = vpack.c.bf16 %v1251, %v1248
        %v1327 = vpack.c.bf16 %v1255, %v1252
        %v1328 = vpack.c.bf16 %v1256, %v1253
        %v1329 = vpack.c.bf16 %v1257, %v1254
        %v1330 = vpack.c.bf16 %v1261, %v1258
        %v1331 = vpack.c.bf16 %v1262, %v1259
        %v1332 = vpack.c.bf16 %v1263, %v1260
        %v1333 = vpack.c.bf16 %v1267, %v1264
        %v1334 = vpack.c.bf16 %v1268, %v1265
        %v1335 = vpack.c.bf16 %v1269, %v1266
        %v1336 = vpack.c.bf16 %v1273, %v1270
        %v1337 = vpack.c.bf16 %v1274, %v1271
        %v1338 = vpack.c.bf16 %v1275, %v1272
        %v1339 = vpack.c.bf16 %v1279, %v1276
        %v1340 = vpack.c.bf16 %v1280, %v1277
        %v1341 = vpack.c.bf16 %v1281, %v1278
        %v1342 = vpack.c.bf16 %v1285, %v1282
        %v1343 = vpack.c.bf16 %v1286, %v1283
        %v1344 = vpack.c.bf16 %v1287, %v1284
        %v1345 = vpack.c.bf16 %v1291, %v1288
        %v1346 = vpack.c.bf16 %v1292, %v1289
        %v1347 = vpack.c.bf16 %v1293, %v1290
        %v1348 = vpack.c.bf16 %v1297, %v1294
        %v1349 = vpack.c.bf16 %v1298, %v1295
        %v1350 = vpack.c.bf16 %v1299, %v1296
        %v1351 = vpack.c.bf16 %v1303, %v1300
        %v1352 = vpack.c.bf16 %v1304, %v1301
        %v1353 = vpack.c.bf16 %v1305, %v1302
        %v1354 = vld [vmem:[#allocation8] sm:$0xff]
        %v1355 = vld [vmem:[#allocation8 + $0x8] sm:$0xff]
        %v1356 = vld [vmem:[#allocation8 + $0x10] sm:$0xff]
        %v1357 = vld [vmem:[#allocation8 + $0x18] sm:$0xff]
        %v1358 = vld [vmem:[#allocation8 + $0x20] sm:$0xff]
        %v1359 = vld [vmem:[#allocation8 + $0x28] sm:$0xff]
        %v1360 = vld [vmem:[#allocation8 + $0x30] sm:$0xff]
        %v1361 = vld [vmem:[#allocation8 + $0x38] sm:$0xff]
        %v1362 = vld [vmem:[#allocation8 + $0x40] sm:$0xff]
        %v1363 = vld [vmem:[#allocation8 + $0x48] sm:$0xff]
        %v1364 = vld [vmem:[#allocation8 + $0x50] sm:$0xff]
        %v1365 = vld [vmem:[#allocation8 + $0x58] sm:$0xff]
        %v1366 = vld [vmem:[#allocation8 + $0x60] sm:$0xff]
        %v1367 = vld [vmem:[#allocation8 + $0x68] sm:$0xff]
        %v1368 = vld [vmem:[#allocation8 + $0x70] sm:$0xff]
        %v1369 = vld [vmem:[#allocation8 + $0x78] sm:$0xff]
        %v1370 = vld [vmem:[#allocation8 + $0x80] sm:$0xff]
        %v1371 = vld [vmem:[#allocation8 + $0x88] sm:$0xff]
        %v1372 = vld [vmem:[#allocation8 + $0x90] sm:$0xff]
        %v1373 = vld [vmem:[#allocation8 + $0x98] sm:$0xff]
        %v1374 = vld [vmem:[#allocation8 + $0xa0] sm:$0xff]
        %v1375 = vld [vmem:[#allocation8 + $0xa8] sm:$0xff]
        %v1376 = vld [vmem:[#allocation8 + $0xb0] sm:$0xff]
        %v1377 = vld [vmem:[#allocation8 + $0xb8] sm:$0xff]
        %v1378 = vld [vmem:[#allocation8 + $0xc0] sm:$0xff]
        %v1379 = vld [vmem:[#allocation8 + $0xc8] sm:$0xff]
        %v1380 = vld [vmem:[#allocation8 + $0xd0] sm:$0xff]
        %v1381 = vld [vmem:[#allocation8 + $0xd8] sm:$0xff]
        %v1382 = vld [vmem:[#allocation8 + $0xe0] sm:$0xff]
        %v1383 = vld [vmem:[#allocation8 + $0xe8] sm:$0xff]
        %v1384 = vld [vmem:[#allocation8 + $0xf0] sm:$0xff]
        %v1385 = vld [vmem:[#allocation8 + $0xf8] sm:$0xff]
        %v1386 = vld [vmem:[#allocation8 + $0x100] sm:$0xff]
        %v1387 = vld [vmem:[#allocation8 + $0x108] sm:$0xff]
        %v1388 = vld [vmem:[#allocation8 + $0x110] sm:$0xff]
        %v1389 = vld [vmem:[#allocation8 + $0x118] sm:$0xff]
        %v1390 = vld [vmem:[#allocation8 + $0x120] sm:$0xff]
        %v1391 = vld [vmem:[#allocation8 + $0x128] sm:$0xff]
        %v1392 = vld [vmem:[#allocation8 + $0x130] sm:$0xff]
        %v1393 = vld [vmem:[#allocation8 + $0x138] sm:$0xff]
        %v1394 = vld [vmem:[#allocation8 + $0x140] sm:$0xff]
        %v1395 = vld [vmem:[#allocation8 + $0x148] sm:$0xff]
        %v1396 = vld [vmem:[#allocation8 + $0x150] sm:$0xff]
        %v1397 = vld [vmem:[#allocation8 + $0x158] sm:$0xff]
        %v1398 = vld [vmem:[#allocation8 + $0x160] sm:$0xff]
        %v1399 = vld [vmem:[#allocation8 + $0x168] sm:$0xff]
        %v1400 = vld [vmem:[#allocation8 + $0x170] sm:$0xff]
        %v1401 = vld [vmem:[#allocation8 + $0x178] sm:$0xff]
        %v1402 = vlaneseq
        %v1403 = vshrl.u32 %v1402, 7
        %v1404 = vsub.s32 1, %v1403
        %v1405 = vrot.slane %v585, %v1404
        %v1406 = vlaneseq
        %v1407 = vshrl.u32 %v1406, 7
        %v1408 = vsub.s32 1, %v1407
        %v1409 = vrot.slane %v586, %v1408
        %v1458 = vunpack.c.l.b16 %v1354
        %v1459 = vunpack.c.h.b16 %v1354
        %v1460 = vunpack.c.l.b16 %v1355
        %v1461 = vunpack.c.h.b16 %v1355
        %v1462 = vunpack.c.l.b16 %v1356
        %v1463 = vunpack.c.h.b16 %v1356
        %v1464 = vunpack.c.l.b16 %v1357
        %v1465 = vunpack.c.h.b16 %v1357
        %v1466 = vunpack.c.l.b16 %v1358
        %v1467 = vunpack.c.h.b16 %v1358
        %v1468 = vunpack.c.l.b16 %v1359
        %v1469 = vunpack.c.h.b16 %v1359
        %v1470 = vunpack.c.l.b16 %v1360
        %v1471 = vunpack.c.h.b16 %v1360
        %v1472 = vunpack.c.l.b16 %v1361
        %v1473 = vunpack.c.h.b16 %v1361
        %v1474 = vunpack.c.l.b16 %v1362
        %v1475 = vunpack.c.h.b16 %v1362
        %v1476 = vunpack.c.l.b16 %v1363
        %v1477 = vunpack.c.h.b16 %v1363
        %v1478 = vunpack.c.l.b16 %v1364
        %v1479 = vunpack.c.h.b16 %v1364
        %v1480 = vunpack.c.l.b16 %v1365
        %v1481 = vunpack.c.h.b16 %v1365
        %v1482 = vunpack.c.l.b16 %v1366
        %v1483 = vunpack.c.h.b16 %v1366
        %v1484 = vunpack.c.l.b16 %v1367
        %v1485 = vunpack.c.h.b16 %v1367
        %v1486 = vunpack.c.l.b16 %v1368
        %v1487 = vunpack.c.h.b16 %v1368
        %v1488 = vunpack.c.l.b16 %v1369
        %v1489 = vunpack.c.h.b16 %v1369
        %v1490 = vunpack.c.l.b16 %v1370
        %v1491 = vunpack.c.h.b16 %v1370
        %v1492 = vunpack.c.l.b16 %v1371
        %v1493 = vunpack.c.h.b16 %v1371
        %v1494 = vunpack.c.l.b16 %v1372
        %v1495 = vunpack.c.h.b16 %v1372
        %v1496 = vunpack.c.l.b16 %v1373
        %v1497 = vunpack.c.h.b16 %v1373
        %v1498 = vunpack.c.l.b16 %v1374
        %v1499 = vunpack.c.h.b16 %v1374
        %v1500 = vunpack.c.l.b16 %v1375
        %v1501 = vunpack.c.h.b16 %v1375
        %v1502 = vunpack.c.l.b16 %v1376
        %v1503 = vunpack.c.h.b16 %v1376
        %v1504 = vunpack.c.l.b16 %v1377
        %v1505 = vunpack.c.h.b16 %v1377
        %v1506 = vunpack.c.l.b16 %v1378
        %v1507 = vunpack.c.h.b16 %v1378
        %v1508 = vunpack.c.l.b16 %v1379
        %v1509 = vunpack.c.h.b16 %v1379
        %v1510 = vunpack.c.l.b16 %v1380
        %v1511 = vunpack.c.h.b16 %v1380
        %v1512 = vunpack.c.l.b16 %v1381
        %v1513 = vunpack.c.h.b16 %v1381
        %v1514 = vunpack.c.l.b16 %v1382
        %v1515 = vunpack.c.h.b16 %v1382
        %v1516 = vunpack.c.l.b16 %v1383
        %v1517 = vunpack.c.h.b16 %v1383
        %v1518 = vunpack.c.l.b16 %v1384
        %v1519 = vunpack.c.h.b16 %v1384
        %v1520 = vunpack.c.l.b16 %v1385
        %v1521 = vunpack.c.h.b16 %v1385
        %v1522 = vunpack.c.l.b16 %v1386
        %v1523 = vunpack.c.h.b16 %v1386
        %v1524 = vunpack.c.l.b16 %v1387
        %v1525 = vunpack.c.h.b16 %v1387
        %v1526 = vunpack.c.l.b16 %v1388
        %v1527 = vunpack.c.h.b16 %v1388
        %v1528 = vunpack.c.l.b16 %v1389
        %v1529 = vunpack.c.h.b16 %v1389
        %v1530 = vunpack.c.l.b16 %v1390
        %v1531 = vunpack.c.h.b16 %v1390
        %v1532 = vunpack.c.l.b16 %v1391
        %v1533 = vunpack.c.h.b16 %v1391
        %v1534 = vunpack.c.l.b16 %v1392
        %v1535 = vunpack.c.h.b16 %v1392
        %v1536 = vunpack.c.l.b16 %v1393
        %v1537 = vunpack.c.h.b16 %v1393
        %v1538 = vunpack.c.l.b16 %v1394
        %v1539 = vunpack.c.h.b16 %v1394
        %v1540 = vunpack.c.l.b16 %v1395
        %v1541 = vunpack.c.h.b16 %v1395
        %v1542 = vunpack.c.l.b16 %v1396
        %v1543 = vunpack.c.h.b16 %v1396
        %v1544 = vunpack.c.l.b16 %v1397
        %v1545 = vunpack.c.h.b16 %v1397
        %v1546 = vunpack.c.l.b16 %v1398
        %v1547 = vunpack.c.h.b16 %v1398
        %v1548 = vunpack.c.l.b16 %v1399
        %v1549 = vunpack.c.h.b16 %v1399
        %v1550 = vunpack.c.l.b16 %v1400
        %v1551 = vunpack.c.h.b16 %v1400
        %v1552 = vunpack.c.l.b16 %v1401
        %v1553 = vunpack.c.h.b16 %v1401
        %v1554 = vpack.c.b16 %v1460, %v1458
        %v1555 = vpack.c.b16 %v1461, %v1459
        %v1556 = vpack.c.b16 %v1464, %v1462
        %v1557 = vpack.c.b16 %v1465, %v1463
        %v1558 = vpack.c.b16 %v1468, %v1466
        %v1559 = vpack.c.b16 %v1469, %v1467
        %v1560 = vpack.c.b16 %v1472, %v1470
        %v1561 = vpack.c.b16 %v1473, %v1471
        %v1562 = vpack.c.b16 %v1476, %v1474
        %v1563 = vpack.c.b16 %v1477, %v1475
        %v1564 = vpack.c.b16 %v1480, %v1478
        %v1565 = vpack.c.b16 %v1481, %v1479
        %v1566 = vpack.c.b16 %v1484, %v1482
        %v1567 = vpack.c.b16 %v1485, %v1483
        %v1568 = vpack.c.b16 %v1488, %v1486
        %v1569 = vpack.c.b16 %v1489, %v1487
        %v1570 = vpack.c.b16 %v1492, %v1490
        %v1571 = vpack.c.b16 %v1493, %v1491
        %v1572 = vpack.c.b16 %v1496, %v1494
        %v1573 = vpack.c.b16 %v1497, %v1495
        %v1574 = vpack.c.b16 %v1500, %v1498
        %v1575 = vpack.c.b16 %v1501, %v1499
        %v1576 = vpack.c.b16 %v1504, %v1502
        %v1577 = vpack.c.b16 %v1505, %v1503
        %v1578 = vpack.c.b16 %v1508, %v1506
        %v1579 = vpack.c.b16 %v1509, %v1507
        %v1580 = vpack.c.b16 %v1512, %v1510
        %v1581 = vpack.c.b16 %v1513, %v1511
        %v1582 = vpack.c.b16 %v1516, %v1514
        %v1583 = vpack.c.b16 %v1517, %v1515
        %v1584 = vpack.c.b16 %v1520, %v1518
        %v1585 = vpack.c.b16 %v1521, %v1519
        %v1586 = vpack.c.b16 %v1524, %v1522
        %v1587 = vpack.c.b16 %v1525, %v1523
        %v1588 = vpack.c.b16 %v1528, %v1526
        %v1589 = vpack.c.b16 %v1529, %v1527
        %v1590 = vpack.c.b16 %v1532, %v1530
        %v1591 = vpack.c.b16 %v1533, %v1531
        %v1592 = vpack.c.b16 %v1536, %v1534
        %v1593 = vpack.c.b16 %v1537, %v1535
        %v1594 = vpack.c.b16 %v1540, %v1538
        %v1595 = vpack.c.b16 %v1541, %v1539
        %v1596 = vpack.c.b16 %v1544, %v1542
        %v1597 = vpack.c.b16 %v1545, %v1543
        %v1598 = vpack.c.b16 %v1548, %v1546
        %v1599 = vpack.c.b16 %v1549, %v1547
        %v1600 = vpack.c.b16 %v1552, %v1550
        %v1601 = vpack.c.b16 %v1553, %v1551
        %1650 = vmatprep.subr.bf16.mxu0 %v1569
        %1651 = vmatpush1.bf16.msra.mxu0 %v1568
        %1652 = vmatprep.subr.bf16.mxu0 %v1567
        %1653 = vmatpush1.bf16.msra.mxu0 %v1566
        %1654 = vmatprep.subr.bf16.mxu0 %v1565
        %1655 = vmatpush1.bf16.msra.mxu0 %v1564
        %1656 = vmatprep.subr.bf16.mxu0 %v1563
        %1657 = vmatpush1.bf16.msra.mxu0 %v1562
        %1658 = vmatprep.subr.bf16.mxu0 %v1561
        %1659 = vmatpush1.bf16.msra.mxu0 %v1560
        %1660 = vmatprep.subr.bf16.mxu0 %v1559
        %1661 = vmatpush1.bf16.msra.mxu0 %v1558
        %1662 = vmatprep.subr.bf16.mxu0 %v1557
        %1663 = vmatpush1.bf16.msra.mxu0 %v1556
        %1664 = vmatprep.subr.bf16.mxu0 %v1555
        %1665 = vmatpush1.bf16.msra.mxu0 %v1554
        %1666 = vmatprep.subr.bf16.mxu0 %v1585
        %1667 = vmatpush2.bf16.msra.mxu0 %v1584
        %1668 = vmatprep.subr.bf16.mxu0 %v1583
        %1669 = vmatpush2.bf16.msra.mxu0 %v1582
        %1670 = vmatprep.subr.bf16.mxu0 %v1581
        %1671 = vmatpush2.bf16.msra.mxu0 %v1580
        %1672 = vmatprep.subr.bf16.mxu0 %v1579
        %1673 = vmatpush2.bf16.msra.mxu0 %v1578
        %1674 = vmatprep.subr.bf16.mxu0 %v1577
        %1675 = vmatpush2.bf16.msra.mxu0 %v1576
        %1676 = vmatprep.subr.bf16.mxu0 %v1575
        %1677 = vmatpush2.bf16.msra.mxu0 %v1574
        %1678 = vmatprep.subr.bf16.mxu0 %v1573
        %1679 = vmatpush2.bf16.msra.mxu0 %v1572
        %1680 = vmatprep.subr.bf16.mxu0 %v1571
        %1681 = vmatpush2.bf16.msra.mxu0 %v1570
        %1682 = vmatprep.mubr.bf16.mxu0 %v1307
        %1683 = vmatmul.mubr.bf16.gmra.mxu0 %v1306
        %v1684 = vpop.f32.mrf.mxu0
        %v1685 = vadd.f32 %v1405, %v1684
        %v1686 = vpop.f32.mrf.mxu0
        %v1687 = vadd.f32 %v1409, %v1686
        %v1688 = vpop.f32.mrf.mxu0
        %v1689 = vadd.f32 %v1405, %v1688
        %v1690 = vpop.f32.mrf.mxu0
        %v1691 = vadd.f32 %v1409, %v1690
        %1692 = vmatprep.mubr.bf16.mxu0 %v1310
        %1693 = vmatmul.mubr.bf16.gmra.mxu0 %v1309
        %v1694 = vpop.f32.mrf.mxu0
        %v1695 = vadd.f32 %v1405, %v1694
        %v1696 = vpop.f32.mrf.mxu0
        %v1697 = vadd.f32 %v1409, %v1696
        %v1698 = vpop.f32.mrf.mxu0
        %v1699 = vadd.f32 %v1405, %v1698
        %v1700 = vpop.f32.mrf.mxu0
        %v1701 = vadd.f32 %v1409, %v1700
        %1702 = vmatprep.mubr.bf16.mxu0 %v1313
        %1703 = vmatmul.mubr.bf16.gmra.mxu0 %v1312
        %v1704 = vpop.f32.mrf.mxu0
        %v1705 = vadd.f32 %v1405, %v1704
        %v1706 = vpop.f32.mrf.mxu0
        %v1707 = vadd.f32 %v1409, %v1706
        %v1708 = vpop.f32.mrf.mxu0
        %v1709 = vadd.f32 %v1405, %v1708
        %v1710 = vpop.f32.mrf.mxu0
        %v1711 = vadd.f32 %v1409, %v1710
        %1712 = vmatprep.mubr.bf16.mxu0 %v1316
        %1713 = vmatmul.mubr.bf16.gmra.mxu0 %v1315
        %v1714 = vpop.f32.mrf.mxu0
        %v1715 = vadd.f32 %v1405, %v1714
        %v1716 = vpop.f32.mrf.mxu0
        %v1717 = vadd.f32 %v1409, %v1716
        %v1718 = vpop.f32.mrf.mxu0
        %v1719 = vadd.f32 %v1405, %v1718
        %v1720 = vpop.f32.mrf.mxu0
        %v1721 = vadd.f32 %v1409, %v1720
        %1722 = vmatprep.mubr.bf16.mxu0 %v1319
        %1723 = vmatmul.mubr.bf16.gmra.mxu0 %v1318
        %v1724 = vpop.f32.mrf.mxu0
        %v1725 = vadd.f32 %v1405, %v1724
        %v1726 = vpop.f32.mrf.mxu0
        %v1727 = vadd.f32 %v1409, %v1726
        %v1728 = vpop.f32.mrf.mxu0
        %v1729 = vadd.f32 %v1405, %v1728
        %v1730 = vpop.f32.mrf.mxu0
        %v1731 = vadd.f32 %v1409, %v1730
        %1732 = vmatprep.mubr.bf16.mxu0 %v1322
        %1733 = vmatmul.mubr.bf16.gmra.mxu0 %v1321
        %v1734 = vpop.f32.mrf.mxu0
        %v1735 = vadd.f32 %v1405, %v1734
        %v1736 = vpop.f32.mrf.mxu0
        %v1737 = vadd.f32 %v1409, %v1736
        %v1738 = vpop.f32.mrf.mxu0
        %v1739 = vadd.f32 %v1405, %v1738
        %v1740 = vpop.f32.mrf.mxu0
        %v1741 = vadd.f32 %v1409, %v1740
        %1742 = vmatprep.mubr.bf16.mxu0 %v1325
        %1743 = vmatmul.mubr.bf16.gmra.mxu0 %v1324
        %v1744 = vpop.f32.mrf.mxu0
        %v1745 = vadd.f32 %v1405, %v1744
        %v1746 = vpop.f32.mrf.mxu0
        %v1747 = vadd.f32 %v1409, %v1746
        %v1748 = vpop.f32.mrf.mxu0
        %v1749 = vadd.f32 %v1405, %v1748
        %v1750 = vpop.f32.mrf.mxu0
        %v1751 = vadd.f32 %v1409, %v1750
        %1752 = vmatprep.mubr.bf16.mxu0 %v1328
        %1753 = vmatmul.mubr.bf16.gmra.mxu0 %v1327
        %v1754 = vpop.f32.mrf.mxu0
        %v1755 = vadd.f32 %v1405, %v1754
        %v1756 = vpop.f32.mrf.mxu0
        %v1757 = vadd.f32 %v1409, %v1756
        %v1758 = vpop.f32.mrf.mxu0
        %v1759 = vadd.f32 %v1405, %v1758
        %v1760 = vpop.f32.mrf.mxu0
        %v1761 = vadd.f32 %v1409, %v1760
        %1762 = vmatprep.mubr.bf16.mxu0 %v1331
        %1763 = vmatmul.mubr.bf16.gmra.mxu0 %v1330
        %v1764 = vpop.f32.mrf.mxu0
        %v1765 = vadd.f32 %v1405, %v1764
        %v1766 = vpop.f32.mrf.mxu0
        %v1767 = vadd.f32 %v1409, %v1766
        %v1768 = vpop.f32.mrf.mxu0
        %v1769 = vadd.f32 %v1405, %v1768
        %v1770 = vpop.f32.mrf.mxu0
        %v1771 = vadd.f32 %v1409, %v1770
        %1772 = vmatprep.mubr.bf16.mxu0 %v1334
        %1773 = vmatmul.mubr.bf16.gmra.mxu0 %v1333
        %v1774 = vpop.f32.mrf.mxu0
        %v1775 = vadd.f32 %v1405, %v1774
        %v1776 = vpop.f32.mrf.mxu0
        %v1777 = vadd.f32 %v1409, %v1776
        %v1778 = vpop.f32.mrf.mxu0
        %v1779 = vadd.f32 %v1405, %v1778
        %v1780 = vpop.f32.mrf.mxu0
        %v1781 = vadd.f32 %v1409, %v1780
        %1782 = vmatprep.mubr.bf16.mxu0 %v1337
        %1783 = vmatmul.mubr.bf16.gmra.mxu0 %v1336
        %v1784 = vpop.f32.mrf.mxu0
        %v1785 = vadd.f32 %v1405, %v1784
        %v1786 = vpop.f32.mrf.mxu0
        %v1787 = vadd.f32 %v1409, %v1786
        %v1788 = vpop.f32.mrf.mxu0
        %v1789 = vadd.f32 %v1405, %v1788
        %v1790 = vpop.f32.mrf.mxu0
        %v1791 = vadd.f32 %v1409, %v1790
        %1792 = vmatprep.mubr.bf16.mxu0 %v1340
        %1793 = vmatmul.mubr.bf16.gmra.mxu0 %v1339
        %v1794 = vpop.f32.mrf.mxu0
        %v1795 = vadd.f32 %v1405, %v1794
        %v1796 = vpop.f32.mrf.mxu0
        %v1797 = vadd.f32 %v1409, %v1796
        %v1798 = vpop.f32.mrf.mxu0
        %v1799 = vadd.f32 %v1405, %v1798
        %v1800 = vpop.f32.mrf.mxu0
        %v1801 = vadd.f32 %v1409, %v1800
        %1802 = vmatprep.mubr.bf16.mxu0 %v1343
        %1803 = vmatmul.mubr.bf16.gmra.mxu0 %v1342
        %v1804 = vpop.f32.mrf.mxu0
        %v1805 = vadd.f32 %v1405, %v1804
        %v1806 = vpop.f32.mrf.mxu0
        %v1807 = vadd.f32 %v1409, %v1806
        %v1808 = vpop.f32.mrf.mxu0
        %v1809 = vadd.f32 %v1405, %v1808
        %v1810 = vpop.f32.mrf.mxu0
        %v1811 = vadd.f32 %v1409, %v1810
        %1812 = vmatprep.mubr.bf16.mxu0 %v1346
        %1813 = vmatmul.mubr.bf16.gmra.mxu0 %v1345
        %v1814 = vpop.f32.mrf.mxu0
        %v1815 = vadd.f32 %v1405, %v1814
        %v1816 = vpop.f32.mrf.mxu0
        %v1817 = vadd.f32 %v1409, %v1816
        %v1818 = vpop.f32.mrf.mxu0
        %v1819 = vadd.f32 %v1405, %v1818
        %v1820 = vpop.f32.mrf.mxu0
        %v1821 = vadd.f32 %v1409, %v1820
        %1822 = vmatprep.mubr.bf16.mxu0 %v1349
        %1823 = vmatmul.mubr.bf16.gmra.mxu0 %v1348
        %v1824 = vpop.f32.mrf.mxu0
        %v1825 = vadd.f32 %v1405, %v1824
        %v1826 = vpop.f32.mrf.mxu0
        %v1827 = vadd.f32 %v1409, %v1826
        %v1828 = vpop.f32.mrf.mxu0
        %v1829 = vadd.f32 %v1405, %v1828
        %v1830 = vpop.f32.mrf.mxu0
        %v1831 = vadd.f32 %v1409, %v1830
        %1832 = vmatprep.mubr.bf16.mxu0 %v1352
        %1833 = vmatmul.mubr.bf16.gmra.mxu0 %v1351
        %v1834 = vpop.f32.mrf.mxu0
        %v1835 = vadd.f32 %v1405, %v1834
        %v1836 = vpop.f32.mrf.mxu0
        %v1837 = vadd.f32 %v1409, %v1836
        %v1838 = vpop.f32.mrf.mxu0
        %v1839 = vadd.f32 %v1405, %v1838
        %v1840 = vpop.f32.mrf.mxu0
        %v1841 = vadd.f32 %v1409, %v1840
        %1842 = vdwg.mxu0
        %1843 = vmatprep.subr.bf16.mxu0 %v1601
        %1844 = vmatpush1.bf16.msra.mxu0 %v1600
        %1845 = vmatprep.subr.bf16.mxu0 %v1599
        %1846 = vmatpush1.bf16.msra.mxu0 %v1598
        %1847 = vmatprep.subr.bf16.mxu0 %v1597
        %1848 = vmatpush1.bf16.msra.mxu0 %v1596
        %1849 = vmatprep.subr.bf16.mxu0 %v1595
        %1850 = vmatpush1.bf16.msra.mxu0 %v1594
        %1851 = vmatprep.subr.bf16.mxu0 %v1593
        %1852 = vmatpush1.bf16.msra.mxu0 %v1592
        %1853 = vmatprep.subr.bf16.mxu0 %v1591
        %1854 = vmatpush1.bf16.msra.mxu0 %v1590
        %1855 = vmatprep.subr.bf16.mxu0 %v1589
        %1856 = vmatpush1.bf16.msra.mxu0 %v1588
        %1857 = vmatprep.subr.bf16.mxu0 %v1587
        %1858 = vmatpush1.bf16.msra.mxu0 %v1586
        %1859 = vmatprep.subr.bf16.mxu0 0
        %1860 = vmatpush2.bf16.msra.mxu0 0
        %1861 = vmatprep.subr.bf16.mxu0 0
        %1862 = vmatpush2.bf16.msra.mxu0 0
        %1863 = vmatprep.subr.bf16.mxu0 0
        %1864 = vmatpush2.bf16.msra.mxu0 0
        %1865 = vmatprep.subr.bf16.mxu0 0
        %1866 = vmatpush2.bf16.msra.mxu0 0
        %1867 = vmatprep.subr.bf16.mxu0 0
        %1868 = vmatpush2.bf16.msra.mxu0 0
        %1869 = vmatprep.subr.bf16.mxu0 0
        %1870 = vmatpush2.bf16.msra.mxu0 0
        %1871 = vmatprep.subr.bf16.mxu0 0
        %1872 = vmatpush2.bf16.msra.mxu0 0
        %1873 = vmatprep.subr.bf16.mxu0 0
        %1874 = vmatpush2.bf16.msra.mxu0 0
        %1875 = vmatprep.mubr.bf16.mxu0 0
        %1876 = vmatmul.mubr.bf16.gmra.mxu0 %v1308
        %v1877 = vpop.f32.mrf.mxu0
        %v1878 = vadd.f32 %v1685, %v1877
        %v1879 = vpop.f32.mrf.mxu0
        %v1880 = vadd.f32 %v1687, %v1879
        %v1881 = vpop.f32.mrf.mxu0
        %v1882 = vadd.f32 %v1689, %v1881
        %v1883 = vpop.f32.mrf.mxu0
        %v1884 = vadd.f32 %v1691, %v1883
        %1885 = vmatprep.mubr.bf16.mxu0 0
        %1886 = vmatmul.mubr.bf16.gmra.mxu0 %v1311
        %v1887 = vpop.f32.mrf.mxu0
        %v1888 = vadd.f32 %v1695, %v1887
        %v1889 = vpop.f32.mrf.mxu0
        %v1890 = vadd.f32 %v1697, %v1889
        %v1891 = vpop.f32.mrf.mxu0
        %v1892 = vadd.f32 %v1699, %v1891
        %v1893 = vpop.f32.mrf.mxu0
        %v1894 = vadd.f32 %v1701, %v1893
        %1895 = vmatprep.mubr.bf16.mxu0 0
        %1896 = vmatmul.mubr.bf16.gmra.mxu0 %v1314
        %v1897 = vpop.f32.mrf.mxu0
        %v1898 = vadd.f32 %v1705, %v1897
        %v1899 = vpop.f32.mrf.mxu0
        %v1900 = vadd.f32 %v1707, %v1899
        %v1901 = vpop.f32.mrf.mxu0
        %v1902 = vadd.f32 %v1709, %v1901
        %v1903 = vpop.f32.mrf.mxu0
        %v1904 = vadd.f32 %v1711, %v1903
        %1905 = vmatprep.mubr.bf16.mxu0 0
        %1906 = vmatmul.mubr.bf16.gmra.mxu0 %v1317
        %v1907 = vpop.f32.mrf.mxu0
        %v1908 = vadd.f32 %v1715, %v1907
        %v1909 = vpop.f32.mrf.mxu0
        %v1910 = vadd.f32 %v1717, %v1909
        %v1911 = vpop.f32.mrf.mxu0
        %v1912 = vadd.f32 %v1719, %v1911
        %v1913 = vpop.f32.mrf.mxu0
        %v1914 = vadd.f32 %v1721, %v1913
        %1915 = vmatprep.mubr.bf16.mxu0 0
        %1916 = vmatmul.mubr.bf16.gmra.mxu0 %v1320
        %v1917 = vpop.f32.mrf.mxu0
        %v1918 = vadd.f32 %v1725, %v1917
        %v1919 = vpop.f32.mrf.mxu0
        %v1920 = vadd.f32 %v1727, %v1919
        %v1921 = vpop.f32.mrf.mxu0
        %v1922 = vadd.f32 %v1729, %v1921
        %v1923 = vpop.f32.mrf.mxu0
        %v1924 = vadd.f32 %v1731, %v1923
        %1925 = vmatprep.mubr.bf16.mxu0 0
        %1926 = vmatmul.mubr.bf16.gmra.mxu0 %v1323
        %v1927 = vpop.f32.mrf.mxu0
        %v1928 = vadd.f32 %v1735, %v1927
        %v1929 = vpop.f32.mrf.mxu0
        %v1930 = vadd.f32 %v1737, %v1929
        %v1931 = vpop.f32.mrf.mxu0
        %v1932 = vadd.f32 %v1739, %v1931
        %v1933 = vpop.f32.mrf.mxu0
        %v1934 = vadd.f32 %v1741, %v1933
        %1935 = vmatprep.mubr.bf16.mxu0 0
        %1936 = vmatmul.mubr.bf16.gmra.mxu0 %v1326
        %v1937 = vpop.f32.mrf.mxu0
        %v1938 = vadd.f32 %v1745, %v1937
        %v1939 = vpop.f32.mrf.mxu0
        %v1940 = vadd.f32 %v1747, %v1939
        %v1941 = vpop.f32.mrf.mxu0
        %v1942 = vadd.f32 %v1749, %v1941
        %v1943 = vpop.f32.mrf.mxu0
        %v1944 = vadd.f32 %v1751, %v1943
        %1945 = vmatprep.mubr.bf16.mxu0 0
        %1946 = vmatmul.mubr.bf16.gmra.mxu0 %v1329
        %v1947 = vpop.f32.mrf.mxu0
        %v1948 = vadd.f32 %v1755, %v1947
        %v1949 = vpop.f32.mrf.mxu0
        %v1950 = vadd.f32 %v1757, %v1949
        %v1951 = vpop.f32.mrf.mxu0
        %v1952 = vadd.f32 %v1759, %v1951
        %v1953 = vpop.f32.mrf.mxu0
        %v1954 = vadd.f32 %v1761, %v1953
        %1955 = vmatprep.mubr.bf16.mxu0 0
        %1956 = vmatmul.mubr.bf16.gmra.mxu0 %v1332
        %v1957 = vpop.f32.mrf.mxu0
        %v1958 = vadd.f32 %v1765, %v1957
        %v1959 = vpop.f32.mrf.mxu0
        %v1960 = vadd.f32 %v1767, %v1959
        %v1961 = vpop.f32.mrf.mxu0
        %v1962 = vadd.f32 %v1769, %v1961
        %v1963 = vpop.f32.mrf.mxu0
        %v1964 = vadd.f32 %v1771, %v1963
        %1965 = vmatprep.mubr.bf16.mxu0 0
        %1966 = vmatmul.mubr.bf16.gmra.mxu0 %v1335
        %v1967 = vpop.f32.mrf.mxu0
        %v1968 = vadd.f32 %v1775, %v1967
        %v1969 = vpop.f32.mrf.mxu0
        %v1970 = vadd.f32 %v1777, %v1969
        %v1971 = vpop.f32.mrf.mxu0
        %v1972 = vadd.f32 %v1779, %v1971
        %v1973 = vpop.f32.mrf.mxu0
        %v1974 = vadd.f32 %v1781, %v1973
        %1975 = vmatprep.mubr.bf16.mxu0 0
        %1976 = vmatmul.mubr.bf16.gmra.mxu0 %v1338
        %v1977 = vpop.f32.mrf.mxu0
        %v1978 = vadd.f32 %v1785, %v1977
        %v1979 = vpop.f32.mrf.mxu0
        %v1980 = vadd.f32 %v1787, %v1979
        %v1981 = vpop.f32.mrf.mxu0
        %v1982 = vadd.f32 %v1789, %v1981
        %v1983 = vpop.f32.mrf.mxu0
        %v1984 = vadd.f32 %v1791, %v1983
        %1985 = vmatprep.mubr.bf16.mxu0 0
        %1986 = vmatmul.mubr.bf16.gmra.mxu0 %v1341
        %v1987 = vpop.f32.mrf.mxu0
        %v1988 = vadd.f32 %v1795, %v1987
        %v1989 = vpop.f32.mrf.mxu0
        %v1990 = vadd.f32 %v1797, %v1989
        %v1991 = vpop.f32.mrf.mxu0
        %v1992 = vadd.f32 %v1799, %v1991
        %v1993 = vpop.f32.mrf.mxu0
        %v1994 = vadd.f32 %v1801, %v1993
        %1995 = vmatprep.mubr.bf16.mxu0 0
        %1996 = vmatmul.mubr.bf16.gmra.mxu0 %v1344
        %v1997 = vpop.f32.mrf.mxu0
        %v1998 = vadd.f32 %v1805, %v1997
        %v1999 = vpop.f32.mrf.mxu0
        %v2000 = vadd.f32 %v1807, %v1999
        %v2001 = vpop.f32.mrf.mxu0
        %v2002 = vadd.f32 %v1809, %v2001
        %v2003 = vpop.f32.mrf.mxu0
        %v2004 = vadd.f32 %v1811, %v2003
        %2005 = vmatprep.mubr.bf16.mxu0 0
        %2006 = vmatmul.mubr.bf16.gmra.mxu0 %v1347
        %v2007 = vpop.f32.mrf.mxu0
        %v2008 = vadd.f32 %v1815, %v2007
        %v2009 = vpop.f32.mrf.mxu0
        %v2010 = vadd.f32 %v1817, %v2009
        %v2011 = vpop.f32.mrf.mxu0
        %v2012 = vadd.f32 %v1819, %v2011
        %v2013 = vpop.f32.mrf.mxu0
        %v2014 = vadd.f32 %v1821, %v2013
        %2015 = vmatprep.mubr.bf16.mxu0 0
        %2016 = vmatmul.mubr.bf16.gmra.mxu0 %v1350
        %v2017 = vpop.f32.mrf.mxu0
        %v2018 = vadd.f32 %v1825, %v2017
        %v2019 = vpop.f32.mrf.mxu0
        %v2020 = vadd.f32 %v1827, %v2019
        %v2021 = vpop.f32.mrf.mxu0
        %v2022 = vadd.f32 %v1829, %v2021
        %v2023 = vpop.f32.mrf.mxu0
        %v2024 = vadd.f32 %v1831, %v2023
        %2025 = vmatprep.mubr.bf16.mxu0 0
        %2026 = vmatmul.mubr.bf16.gmra.mxu0 %v1353
        %v2027 = vpop.f32.mrf.mxu0
        %v2028 = vadd.f32 %v1835, %v2027
        %v2029 = vpop.f32.mrf.mxu0
        %v2030 = vadd.f32 %v1837, %v2029
        %v2031 = vpop.f32.mrf.mxu0
        %v2032 = vadd.f32 %v1839, %v2031
        %v2033 = vpop.f32.mrf.mxu0
        %v2034 = vadd.f32 %v1841, %v2033
        %2035 = vdwg.mxu0
        %v2036 = vmax.f32 %v1878, 0.0
        %v2037 = vmax.f32 %v1880, 0.0
        %v2038 = vmax.f32 %v1882, 0.0
        %v2039 = vmax.f32 %v1884, 0.0
        %v2040 = vmax.f32 %v1888, 0.0
        %v2041 = vmax.f32 %v1890, 0.0
        %v2042 = vmax.f32 %v1892, 0.0
        %v2043 = vmax.f32 %v1894, 0.0
        %v2044 = vmax.f32 %v1898, 0.0
        %v2045 = vmax.f32 %v1900, 0.0
        %v2046 = vmax.f32 %v1902, 0.0
        %v2047 = vmax.f32 %v1904, 0.0
        %v2048 = vmax.f32 %v1908, 0.0
        %v2049 = vmax.f32 %v1910, 0.0
        %v2050 = vmax.f32 %v1912, 0.0
        %v2051 = vmax.f32 %v1914, 0.0
        %v2052 = vmax.f32 %v1918, 0.0
        %v2053 = vmax.f32 %v1920, 0.0
        %v2054 = vmax.f32 %v1922, 0.0
        %v2055 = vmax.f32 %v1924, 0.0
        %v2056 = vmax.f32 %v1928, 0.0
        %v2057 = vmax.f32 %v1930, 0.0
        %v2058 = vmax.f32 %v1932, 0.0
        %v2059 = vmax.f32 %v1934, 0.0
        %v2060 = vmax.f32 %v1938, 0.0
        %v2061 = vmax.f32 %v1940, 0.0
        %v2062 = vmax.f32 %v1942, 0.0
        %v2063 = vmax.f32 %v1944, 0.0
        %v2064 = vmax.f32 %v1948, 0.0
        %v2065 = vmax.f32 %v1950, 0.0
        %v2066 = vmax.f32 %v1952, 0.0
        %v2067 = vmax.f32 %v1954, 0.0
        %v2068 = vmax.f32 %v1958, 0.0
        %v2069 = vmax.f32 %v1960, 0.0
        %v2070 = vmax.f32 %v1962, 0.0
        %v2071 = vmax.f32 %v1964, 0.0
        %v2072 = vmax.f32 %v1968, 0.0
        %v2073 = vmax.f32 %v1970, 0.0
        %v2074 = vmax.f32 %v1972, 0.0
        %v2075 = vmax.f32 %v1974, 0.0
        %v2076 = vmax.f32 %v1978, 0.0
        %v2077 = vmax.f32 %v1980, 0.0
        %v2078 = vmax.f32 %v1982, 0.0
        %v2079 = vmax.f32 %v1984, 0.0
        %v2080 = vmax.f32 %v1988, 0.0
        %v2081 = vmax.f32 %v1990, 0.0
        %v2082 = vmax.f32 %v1992, 0.0
        %v2083 = vmax.f32 %v1994, 0.0
        %v2084 = vmax.f32 %v1998, 0.0
        %v2085 = vmax.f32 %v2000, 0.0
        %v2086 = vmax.f32 %v2002, 0.0
        %v2087 = vmax.f32 %v2004, 0.0
        %v2088 = vmax.f32 %v2008, 0.0
        %v2089 = vmax.f32 %v2010, 0.0
        %v2090 = vmax.f32 %v2012, 0.0
        %v2091 = vmax.f32 %v2014, 0.0
        %v2092 = vmax.f32 %v2018, 0.0
        %v2093 = vmax.f32 %v2020, 0.0
        %v2094 = vmax.f32 %v2022, 0.0
        %v2095 = vmax.f32 %v2024, 0.0
        %v2096 = vmax.f32 %v2028, 0.0
        %v2097 = vmax.f32 %v2030, 0.0
        %v2098 = vmax.f32 %v2032, 0.0
        %v2099 = vmax.f32 %v2034, 0.0
        %v2100 = vpack.c.bf16 %v2038, %v2036
        %v2101 = vpack.c.bf16 %v2039, %v2037
        %v2102 = vpack.c.bf16 %v2042, %v2040
        %v2103 = vpack.c.bf16 %v2043, %v2041
        %v2104 = vpack.c.bf16 %v2046, %v2044
        %v2105 = vpack.c.bf16 %v2047, %v2045
        %v2106 = vpack.c.bf16 %v2050, %v2048
        %v2107 = vpack.c.bf16 %v2051, %v2049
        %v2108 = vpack.c.bf16 %v2054, %v2052
        %v2109 = vpack.c.bf16 %v2055, %v2053
        %v2110 = vpack.c.bf16 %v2058, %v2056
        %v2111 = vpack.c.bf16 %v2059, %v2057
        %v2112 = vpack.c.bf16 %v2062, %v2060
        %v2113 = vpack.c.bf16 %v2063, %v2061
        %v2114 = vpack.c.bf16 %v2066, %v2064
        %v2115 = vpack.c.bf16 %v2067, %v2065
        %v2116 = vpack.c.bf16 %v2070, %v2068
        %v2117 = vpack.c.bf16 %v2071, %v2069
        %v2118 = vpack.c.bf16 %v2074, %v2072
        %v2119 = vpack.c.bf16 %v2075, %v2073
        %v2120 = vpack.c.bf16 %v2078, %v2076
        %v2121 = vpack.c.bf16 %v2079, %v2077
        %v2122 = vpack.c.bf16 %v2082, %v2080
        %v2123 = vpack.c.bf16 %v2083, %v2081
        %v2124 = vpack.c.bf16 %v2086, %v2084
        %v2125 = vpack.c.bf16 %v2087, %v2085
        %v2126 = vpack.c.bf16 %v2090, %v2088
        %v2127 = vpack.c.bf16 %v2091, %v2089
        %v2128 = vpack.c.bf16 %v2094, %v2092
        %v2129 = vpack.c.bf16 %v2095, %v2093
        %v2130 = vpack.c.bf16 %v2098, %v2096
        %v2131 = vpack.c.bf16 %v2099, %v2097
        %v2132 = vld [vmem:[#allocation10] sm:$0xf]
        %v2133 = vld [vmem:[#allocation10 + $0x4] sm:$0xf]
        %v2134 = vld [vmem:[#allocation10 + $0x8] sm:$0xf]
        %v2135 = vld [vmem:[#allocation10 + $0xc] sm:$0xf]
        %v2136 = vld [vmem:[#allocation10 + $0x10] sm:$0xf]
        %v2137 = vld [vmem:[#allocation10 + $0x14] sm:$0xf]
        %v2138 = vld [vmem:[#allocation10 + $0x18] sm:$0xf]
        %v2139 = vld [vmem:[#allocation10 + $0x1c] sm:$0xf]
        %v2140 = vld [vmem:[#allocation10 + $0x20] sm:$0xf]
        %v2141 = vld [vmem:[#allocation10 + $0x24] sm:$0xf]
        %v2142 = vld [vmem:[#allocation10 + $0x28] sm:$0xf]
        %v2143 = vld [vmem:[#allocation10 + $0x2c] sm:$0xf]
        %v2144 = vld [vmem:[#allocation10 + $0x30] sm:$0xf]
        %v2145 = vld [vmem:[#allocation10 + $0x34] sm:$0xf]
        %v2146 = vld [vmem:[#allocation10 + $0x38] sm:$0xf]
        %v2147 = vld [vmem:[#allocation10 + $0x3c] sm:$0xf]
        %v2148 = vld [vmem:[#allocation10 + $0x40] sm:$0xf]
        %v2149 = vld [vmem:[#allocation10 + $0x44] sm:$0xf]
        %v2150 = vld [vmem:[#allocation10 + $0x48] sm:$0xf]
        %v2151 = vld [vmem:[#allocation10 + $0x4c] sm:$0xf]
        %v2152 = vld [vmem:[#allocation10 + $0x50] sm:$0xf]
        %v2153 = vld [vmem:[#allocation10 + $0x54] sm:$0xf]
        %v2154 = vld [vmem:[#allocation10 + $0x58] sm:$0xf]
        %v2155 = vld [vmem:[#allocation10 + $0x5c] sm:$0xf]
        %v2156 = vld [vmem:[#allocation10 + $0x60] sm:$0xf]
        %v2157 = vld [vmem:[#allocation10 + $0x64] sm:$0xf]
        %v2158 = vld [vmem:[#allocation10 + $0x68] sm:$0xf]
        %v2159 = vld [vmem:[#allocation10 + $0x6c] sm:$0xf]
        %v2160 = vld [vmem:[#allocation10 + $0x70] sm:$0xf]
        %v2161 = vld [vmem:[#allocation10 + $0x74] sm:$0xf]
        %v2162 = vld [vmem:[#allocation10 + $0x78] sm:$0xf]
        %v2163 = vld [vmem:[#allocation10 + $0x7c] sm:$0xf]
        %v2164 = vlaneseq
        %v2165 = vshrl.u32 %v2164, 7
        %v2166 = vsub.s32 2, %v2165
        %v2167 = vrot.slane %v585, %v2166
        %v2200 = vunpack.c.l.b16 %v2132
        %v2201 = vunpack.c.l.b16 %v2133
        %v2202 = vunpack.c.l.b16 %v2134
        %v2203 = vunpack.c.l.b16 %v2135
        %v2204 = vunpack.c.l.b16 %v2136
        %v2205 = vunpack.c.l.b16 %v2137
        %v2206 = vunpack.c.l.b16 %v2138
        %v2207 = vunpack.c.l.b16 %v2139
        %v2208 = vunpack.c.l.b16 %v2140
        %v2209 = vunpack.c.l.b16 %v2141
        %v2210 = vunpack.c.l.b16 %v2142
        %v2211 = vunpack.c.l.b16 %v2143
        %v2212 = vunpack.c.l.b16 %v2144
        %v2213 = vunpack.c.l.b16 %v2145
        %v2214 = vunpack.c.l.b16 %v2146
        %v2215 = vunpack.c.l.b16 %v2147
        %v2216 = vunpack.c.l.b16 %v2148
        %v2217 = vunpack.c.l.b16 %v2149
        %v2218 = vunpack.c.l.b16 %v2150
        %v2219 = vunpack.c.l.b16 %v2151
        %v2220 = vunpack.c.l.b16 %v2152
        %v2221 = vunpack.c.l.b16 %v2153
        %v2222 = vunpack.c.l.b16 %v2154
        %v2223 = vunpack.c.l.b16 %v2155
        %v2224 = vunpack.c.l.b16 %v2156
        %v2225 = vunpack.c.l.b16 %v2157
        %v2226 = vunpack.c.l.b16 %v2158
        %v2227 = vunpack.c.l.b16 %v2159
        %v2228 = vunpack.c.l.b16 %v2160
        %v2229 = vunpack.c.l.b16 %v2161
        %v2230 = vunpack.c.l.b16 %v2162
        %v2231 = vunpack.c.l.b16 %v2163
        %v2232 = vpack.c.b16 %v2201, %v2200
        %v2233 = vpack.c.b16 %v2203, %v2202
        %v2234 = vpack.c.b16 %v2205, %v2204
        %v2235 = vpack.c.b16 %v2207, %v2206
        %v2236 = vpack.c.b16 %v2209, %v2208
        %v2237 = vpack.c.b16 %v2211, %v2210
        %v2238 = vpack.c.b16 %v2213, %v2212
        %v2239 = vpack.c.b16 %v2215, %v2214
        %v2240 = vpack.c.b16 %v2217, %v2216
        %v2241 = vpack.c.b16 %v2219, %v2218
        %v2242 = vpack.c.b16 %v2221, %v2220
        %v2243 = vpack.c.b16 %v2223, %v2222
        %v2244 = vpack.c.b16 %v2225, %v2224
        %v2245 = vpack.c.b16 %v2227, %v2226
        %v2246 = vpack.c.b16 %v2229, %v2228
        %v2247 = vpack.c.b16 %v2231, %v2230
        %2264 = vmatprep.subr.bf16.mxu0 0
        %2265 = vmatpush1.bf16.msra.mxu0 %v2239
        %2266 = vmatprep.subr.bf16.mxu0 0
        %2267 = vmatpush1.bf16.msra.mxu0 %v2238
        %2268 = vmatprep.subr.bf16.mxu0 0
        %2269 = vmatpush1.bf16.msra.mxu0 %v2237
        %2270 = vmatprep.subr.bf16.mxu0 0
        %2271 = vmatpush1.bf16.msra.mxu0 %v2236
        %2272 = vmatprep.subr.bf16.mxu0 0
        %2273 = vmatpush1.bf16.msra.mxu0 %v2235
        %2274 = vmatprep.subr.bf16.mxu0 0
        %2275 = vmatpush1.bf16.msra.mxu0 %v2234
        %2276 = vmatprep.subr.bf16.mxu0 0
        %2277 = vmatpush1.bf16.msra.mxu0 %v2233
        %2278 = vmatprep.subr.bf16.mxu0 0
        %2279 = vmatpush1.bf16.msra.mxu0 %v2232
        %2280 = vmatprep.subr.bf16.mxu0 0
        %2281 = vmatpush2.bf16.msra.mxu0 %v2247
        %2282 = vmatprep.subr.bf16.mxu0 0
        %2283 = vmatpush2.bf16.msra.mxu0 %v2246
        %2284 = vmatprep.subr.bf16.mxu0 0
        %2285 = vmatpush2.bf16.msra.mxu0 %v2245
        %2286 = vmatprep.subr.bf16.mxu0 0
        %2287 = vmatpush2.bf16.msra.mxu0 %v2244
        %2288 = vmatprep.subr.bf16.mxu0 0
        %2289 = vmatpush2.bf16.msra.mxu0 %v2243
        %2290 = vmatprep.subr.bf16.mxu0 0
        %2291 = vmatpush2.bf16.msra.mxu0 %v2242
        %2292 = vmatprep.subr.bf16.mxu0 0
        %2293 = vmatpush2.bf16.msra.mxu0 %v2241
        %2294 = vmatprep.subr.bf16.mxu0 0
        %2295 = vmatpush2.bf16.msra.mxu0 %v2240
        %2296 = vmatprep.mubr.bf16.mxu0 %v2101
        %2297 = vmatmul.mubr.bf16.gmra.mxu0 %v2100
        %v2298 = vpop.f32.mrf.mxu0
        %v2299 = vadd.f32 %v2167, %v2298
        %v2300 = vpop.f32.mrf.mxu0
        %v2301 = vpop.f32.mrf.mxu0
        %v2302 = vadd.f32 %v2167, %v2301
        %v2303 = vpop.f32.mrf.mxu0
        %2304 = vmatprep.mubr.bf16.mxu0 %v2103
        %2305 = vmatmul.mubr.bf16.gmra.mxu0 %v2102
        %v2306 = vpop.f32.mrf.mxu0
        %v2307 = vadd.f32 %v2167, %v2306
        %v2308 = vpop.f32.mrf.mxu0
        %v2309 = vpop.f32.mrf.mxu0
        %v2310 = vadd.f32 %v2167, %v2309
        %v2311 = vpop.f32.mrf.mxu0
        %2312 = vmatprep.mubr.bf16.mxu0 %v2105
        %2313 = vmatmul.mubr.bf16.gmra.mxu0 %v2104
        %v2314 = vpop.f32.mrf.mxu0
        %v2315 = vadd.f32 %v2167, %v2314
        %v2316 = vpop.f32.mrf.mxu0
        %v2317 = vpop.f32.mrf.mxu0
        %v2318 = vadd.f32 %v2167, %v2317
        %v2319 = vpop.f32.mrf.mxu0
        %2320 = vmatprep.mubr.bf16.mxu0 %v2107
        %2321 = vmatmul.mubr.bf16.gmra.mxu0 %v2106
        %v2322 = vpop.f32.mrf.mxu0
        %v2323 = vadd.f32 %v2167, %v2322
        %v2324 = vpop.f32.mrf.mxu0
        %v2325 = vpop.f32.mrf.mxu0
        %v2326 = vadd.f32 %v2167, %v2325
        %v2327 = vpop.f32.mrf.mxu0
        %2328 = vmatprep.mubr.bf16.mxu0 %v2109
        %2329 = vmatmul.mubr.bf16.gmra.mxu0 %v2108
        %v2330 = vpop.f32.mrf.mxu0
        %v2331 = vadd.f32 %v2167, %v2330
        %v2332 = vpop.f32.mrf.mxu0
        %v2333 = vpop.f32.mrf.mxu0
        %v2334 = vadd.f32 %v2167, %v2333
        %v2335 = vpop.f32.mrf.mxu0
        %2336 = vmatprep.mubr.bf16.mxu0 %v2111
        %2337 = vmatmul.mubr.bf16.gmra.mxu0 %v2110
        %v2338 = vpop.f32.mrf.mxu0
        %v2339 = vadd.f32 %v2167, %v2338
        %v2340 = vpop.f32.mrf.mxu0
        %v2341 = vpop.f32.mrf.mxu0
        %v2342 = vadd.f32 %v2167, %v2341
        %v2343 = vpop.f32.mrf.mxu0
        %2344 = vmatprep.mubr.bf16.mxu0 %v2113
        %2345 = vmatmul.mubr.bf16.gmra.mxu0 %v2112
        %v2346 = vpop.f32.mrf.mxu0
        %v2347 = vadd.f32 %v2167, %v2346
        %v2348 = vpop.f32.mrf.mxu0
        %v2349 = vpop.f32.mrf.mxu0
        %v2350 = vadd.f32 %v2167, %v2349
        %v2351 = vpop.f32.mrf.mxu0
        %2352 = vmatprep.mubr.bf16.mxu0 %v2115
        %2353 = vmatmul.mubr.bf16.gmra.mxu0 %v2114
        %v2354 = vpop.f32.mrf.mxu0
        %v2355 = vadd.f32 %v2167, %v2354
        %v2356 = vpop.f32.mrf.mxu0
        %v2357 = vpop.f32.mrf.mxu0
        %v2358 = vadd.f32 %v2167, %v2357
        %v2359 = vpop.f32.mrf.mxu0
        %2360 = vmatprep.mubr.bf16.mxu0 %v2117
        %2361 = vmatmul.mubr.bf16.gmra.mxu0 %v2116
        %v2362 = vpop.f32.mrf.mxu0
        %v2363 = vadd.f32 %v2167, %v2362
        %v2364 = vpop.f32.mrf.mxu0
        %v2365 = vpop.f32.mrf.mxu0
        %v2366 = vadd.f32 %v2167, %v2365
        %v2367 = vpop.f32.mrf.mxu0
        %2368 = vmatprep.mubr.bf16.mxu0 %v2119
        %2369 = vmatmul.mubr.bf16.gmra.mxu0 %v2118
        %v2370 = vpop.f32.mrf.mxu0
        %v2371 = vadd.f32 %v2167, %v2370
        %v2372 = vpop.f32.mrf.mxu0
        %v2373 = vpop.f32.mrf.mxu0
        %v2374 = vadd.f32 %v2167, %v2373
        %v2375 = vpop.f32.mrf.mxu0
        %2376 = vmatprep.mubr.bf16.mxu0 %v2121
        %2377 = vmatmul.mubr.bf16.gmra.mxu0 %v2120
        %v2378 = vpop.f32.mrf.mxu0
        %v2379 = vadd.f32 %v2167, %v2378
        %v2380 = vpop.f32.mrf.mxu0
        %v2381 = vpop.f32.mrf.mxu0
        %v2382 = vadd.f32 %v2167, %v2381
        %v2383 = vpop.f32.mrf.mxu0
        %2384 = vmatprep.mubr.bf16.mxu0 %v2123
        %2385 = vmatmul.mubr.bf16.gmra.mxu0 %v2122
        %v2386 = vpop.f32.mrf.mxu0
        %v2387 = vadd.f32 %v2167, %v2386
        %v2388 = vpop.f32.mrf.mxu0
        %v2389 = vpop.f32.mrf.mxu0
        %v2390 = vadd.f32 %v2167, %v2389
        %v2391 = vpop.f32.mrf.mxu0
        %2392 = vmatprep.mubr.bf16.mxu0 %v2125
        %2393 = vmatmul.mubr.bf16.gmra.mxu0 %v2124
        %v2394 = vpop.f32.mrf.mxu0
        %v2395 = vadd.f32 %v2167, %v2394
        %v2396 = vpop.f32.mrf.mxu0
        %v2397 = vpop.f32.mrf.mxu0
        %v2398 = vadd.f32 %v2167, %v2397
        %v2399 = vpop.f32.mrf.mxu0
        %2400 = vmatprep.mubr.bf16.mxu0 %v2127
        %2401 = vmatmul.mubr.bf16.gmra.mxu0 %v2126
        %v2402 = vpop.f32.mrf.mxu0
        %v2403 = vadd.f32 %v2167, %v2402
        %v2404 = vpop.f32.mrf.mxu0
        %v2405 = vpop.f32.mrf.mxu0
        %v2406 = vadd.f32 %v2167, %v2405
        %v2407 = vpop.f32.mrf.mxu0
        %2408 = vmatprep.mubr.bf16.mxu0 %v2129
        %2409 = vmatmul.mubr.bf16.gmra.mxu0 %v2128
        %v2410 = vpop.f32.mrf.mxu0
        %v2411 = vadd.f32 %v2167, %v2410
        %v2412 = vpop.f32.mrf.mxu0
        %v2413 = vpop.f32.mrf.mxu0
        %v2414 = vadd.f32 %v2167, %v2413
        %v2415 = vpop.f32.mrf.mxu0
        %2416 = vmatprep.mubr.bf16.mxu0 %v2131
        %2417 = vmatmul.mubr.bf16.gmra.mxu0 %v2130
        %v2418 = vpop.f32.mrf.mxu0
        %v2419 = vadd.f32 %v2167, %v2418
        %v2420 = vpop.f32.mrf.mxu0
        %v2421 = vpop.f32.mrf.mxu0
        %v2422 = vadd.f32 %v2167, %v2421
        %v2423 = vpop.f32.mrf.mxu0
        %2424 = vdwg.mxu0
        %v2425 = vmax.f32 %v2299, 0.0
        %v2426 = vmax.f32 %v2302, 0.0
        %v2427 = vmax.f32 %v2307, 0.0
        %v2428 = vmax.f32 %v2310, 0.0
        %v2429 = vmax.f32 %v2315, 0.0
        %v2430 = vmax.f32 %v2318, 0.0
        %v2431 = vmax.f32 %v2323, 0.0
        %v2432 = vmax.f32 %v2326, 0.0
        %v2433 = vmax.f32 %v2331, 0.0
        %v2434 = vmax.f32 %v2334, 0.0
        %v2435 = vmax.f32 %v2339, 0.0
        %v2436 = vmax.f32 %v2342, 0.0
        %v2437 = vmax.f32 %v2347, 0.0
        %v2438 = vmax.f32 %v2350, 0.0
        %v2439 = vmax.f32 %v2355, 0.0
        %v2440 = vmax.f32 %v2358, 0.0
        %v2441 = vmax.f32 %v2363, 0.0
        %v2442 = vmax.f32 %v2366, 0.0
        %v2443 = vmax.f32 %v2371, 0.0
        %v2444 = vmax.f32 %v2374, 0.0
        %v2445 = vmax.f32 %v2379, 0.0
        %v2446 = vmax.f32 %v2382, 0.0
        %v2447 = vmax.f32 %v2387, 0.0
        %v2448 = vmax.f32 %v2390, 0.0
        %v2449 = vmax.f32 %v2395, 0.0
        %v2450 = vmax.f32 %v2398, 0.0
        %v2451 = vmax.f32 %v2403, 0.0
        %v2452 = vmax.f32 %v2406, 0.0
        %v2453 = vmax.f32 %v2411, 0.0
        %v2454 = vmax.f32 %v2414, 0.0
        %v2455 = vmax.f32 %v2419, 0.0
        %v2456 = vmax.f32 %v2422, 0.0
        %v2457 = vpack.c.bf16 %v2426, %v2425
        %v2458 = vpack.c.bf16 %v2428, %v2427
        %v2459 = vpack.c.bf16 %v2430, %v2429
        %v2460 = vpack.c.bf16 %v2432, %v2431
        %v2461 = vpack.c.bf16 %v2434, %v2433
        %v2462 = vpack.c.bf16 %v2436, %v2435
        %v2463 = vpack.c.bf16 %v2438, %v2437
        %v2464 = vpack.c.bf16 %v2440, %v2439
        %v2465 = vpack.c.bf16 %v2442, %v2441
        %v2466 = vpack.c.bf16 %v2444, %v2443
        %v2467 = vpack.c.bf16 %v2446, %v2445
        %v2468 = vpack.c.bf16 %v2448, %v2447
        %v2469 = vpack.c.bf16 %v2450, %v2449
        %v2470 = vpack.c.bf16 %v2452, %v2451
        %v2471 = vpack.c.bf16 %v2454, %v2453
        %v2472 = vpack.c.bf16 %v2456, %v2455
        %v2473 = vld [vmem:[#allocation11] sm:$0xf]
        %v2474 = vld [vmem:[#allocation11 + $0x4] sm:$0xf]
        %v2475 = vld [vmem:[#allocation11 + $0x8] sm:$0xf]
        %v2476 = vld [vmem:[#allocation11 + $0xc] sm:$0xf]
        %v2477 = vld [vmem:[#allocation11 + $0x10] sm:$0xf]
        %v2478 = vld [vmem:[#allocation11 + $0x14] sm:$0xf]
        %v2479 = vld [vmem:[#allocation11 + $0x18] sm:$0xf]
        %v2480 = vld [vmem:[#allocation11 + $0x1c] sm:$0xf]
        %v2481 = vld [vmem:[#allocation11 + $0x20] sm:$0xf]
        %v2482 = vld [vmem:[#allocation11 + $0x24] sm:$0xf]
        %v2483 = vld [vmem:[#allocation11 + $0x28] sm:$0xf]
        %v2484 = vld [vmem:[#allocation11 + $0x2c] sm:$0xf]
        %v2485 = vld [vmem:[#allocation11 + $0x30] sm:$0xf]
        %v2486 = vld [vmem:[#allocation11 + $0x34] sm:$0xf]
        %v2487 = vld [vmem:[#allocation11 + $0x38] sm:$0xf]
        %v2488 = vld [vmem:[#allocation11 + $0x3c] sm:$0xf]
        %v2489 = vlaneseq
        %v2490 = vshrl.u32 %v2489, 7
        %v2491 = vsub.s32 3, %v2490
        %v2492 = vrot.slane %v585, %v2491
        %v2509 = vunpack.c.l.b16 %v2473
        %v2510 = vunpack.c.l.b16 %v2474
        %v2511 = vunpack.c.l.b16 %v2475
        %v2512 = vunpack.c.l.b16 %v2476
        %v2513 = vunpack.c.l.b16 %v2477
        %v2514 = vunpack.c.l.b16 %v2478
        %v2515 = vunpack.c.l.b16 %v2479
        %v2516 = vunpack.c.l.b16 %v2480
        %v2517 = vunpack.c.l.b16 %v2481
        %v2518 = vunpack.c.l.b16 %v2482
        %v2519 = vunpack.c.l.b16 %v2483
        %v2520 = vunpack.c.l.b16 %v2484
        %v2521 = vunpack.c.l.b16 %v2485
        %v2522 = vunpack.c.l.b16 %v2486
        %v2523 = vunpack.c.l.b16 %v2487
        %v2524 = vunpack.c.l.b16 %v2488
        %v2525 = vpack.c.b16 %v2510, %v2509
        %v2526 = vpack.c.b16 %v2512, %v2511
        %v2527 = vpack.c.b16 %v2514, %v2513
        %v2528 = vpack.c.b16 %v2516, %v2515
        %v2529 = vpack.c.b16 %v2518, %v2517
        %v2530 = vpack.c.b16 %v2520, %v2519
        %v2531 = vpack.c.b16 %v2522, %v2521
        %v2532 = vpack.c.b16 %v2524, %v2523
        %2541 = vmatprep.subr.bf16.mxu0 0
        %2542 = vmatpush1.bf16.msra.mxu0 %v2532
        %2543 = vmatprep.subr.bf16.mxu0 0
        %2544 = vmatpush1.bf16.msra.mxu0 %v2531
        %2545 = vmatprep.subr.bf16.mxu0 0
        %2546 = vmatpush1.bf16.msra.mxu0 %v2530
        %2547 = vmatprep.subr.bf16.mxu0 0
        %2548 = vmatpush1.bf16.msra.mxu0 %v2529
        %2549 = vmatprep.subr.bf16.mxu0 0
        %2550 = vmatpush1.bf16.msra.mxu0 %v2528
        %2551 = vmatprep.subr.bf16.mxu0 0
        %2552 = vmatpush1.bf16.msra.mxu0 %v2527
        %2553 = vmatprep.subr.bf16.mxu0 0
        %2554 = vmatpush1.bf16.msra.mxu0 %v2526
        %2555 = vmatprep.subr.bf16.mxu0 0
        %2556 = vmatpush1.bf16.msra.mxu0 %v2525
        %2557 = vmatprep.subr.bf16.mxu0 0
        %2558 = vmatpush2.bf16.msra.mxu0 0
        %2559 = vmatprep.subr.bf16.mxu0 0
        %2560 = vmatpush2.bf16.msra.mxu0 0
        %2561 = vmatprep.subr.bf16.mxu0 0
        %2562 = vmatpush2.bf16.msra.mxu0 0
        %2563 = vmatprep.subr.bf16.mxu0 0
        %2564 = vmatpush2.bf16.msra.mxu0 0
        %2565 = vmatprep.subr.bf16.mxu0 0
        %2566 = vmatpush2.bf16.msra.mxu0 0
        %2567 = vmatprep.subr.bf16.mxu0 0
        %2568 = vmatpush2.bf16.msra.mxu0 0
        %2569 = vmatprep.subr.bf16.mxu0 0
        %2570 = vmatpush2.bf16.msra.mxu0 0
        %2571 = vmatprep.subr.bf16.mxu0 0
        %2572 = vmatpush2.bf16.msra.mxu0 0
        %2573 = vmatprep.mubr.bf16.mxu0 0
        %2574 = vmatmul.mubr.bf16.gmra.mxu0 %v2457
        %v2575 = vpop.f32.mrf.mxu0
        %v2576 = vadd.f32 %v2492, %v2575
        %v2577 = vpop.f32.mrf.mxu0
        %v2578 = vpop.f32.mrf.mxu0
        %v2579 = vadd.f32 %v2492, %v2578
        %v2580 = vpop.f32.mrf.mxu0
        %2581 = vmatprep.mubr.bf16.mxu0 0
        %2582 = vmatmul.mubr.bf16.gmra.mxu0 %v2458
        %v2583 = vpop.f32.mrf.mxu0
        %v2584 = vadd.f32 %v2492, %v2583
        %v2585 = vpop.f32.mrf.mxu0
        %v2586 = vpop.f32.mrf.mxu0
        %v2587 = vadd.f32 %v2492, %v2586
        %v2588 = vpop.f32.mrf.mxu0
        %2589 = vmatprep.mubr.bf16.mxu0 0
        %2590 = vmatmul.mubr.bf16.gmra.mxu0 %v2459
        %v2591 = vpop.f32.mrf.mxu0
        %v2592 = vadd.f32 %v2492, %v2591
        %v2593 = vpop.f32.mrf.mxu0
        %v2594 = vpop.f32.mrf.mxu0
        %v2595 = vadd.f32 %v2492, %v2594
        %v2596 = vpop.f32.mrf.mxu0
        %2597 = vmatprep.mubr.bf16.mxu0 0
        %2598 = vmatmul.mubr.bf16.gmra.mxu0 %v2460
        %v2599 = vpop.f32.mrf.mxu0
        %v2600 = vadd.f32 %v2492, %v2599
        %v2601 = vpop.f32.mrf.mxu0
        %v2602 = vpop.f32.mrf.mxu0
        %v2603 = vadd.f32 %v2492, %v2602
        %v2604 = vpop.f32.mrf.mxu0
        %2605 = vmatprep.mubr.bf16.mxu0 0
        %2606 = vmatmul.mubr.bf16.gmra.mxu0 %v2461
        %v2607 = vpop.f32.mrf.mxu0
        %v2608 = vadd.f32 %v2492, %v2607
        %v2609 = vpop.f32.mrf.mxu0
        %v2610 = vpop.f32.mrf.mxu0
        %v2611 = vadd.f32 %v2492, %v2610
        %v2612 = vpop.f32.mrf.mxu0
        %2613 = vmatprep.mubr.bf16.mxu0 0
        %2614 = vmatmul.mubr.bf16.gmra.mxu0 %v2462
        %v2615 = vpop.f32.mrf.mxu0
        %v2616 = vadd.f32 %v2492, %v2615
        %v2617 = vpop.f32.mrf.mxu0
        %v2618 = vpop.f32.mrf.mxu0
        %v2619 = vadd.f32 %v2492, %v2618
        %v2620 = vpop.f32.mrf.mxu0
        %2621 = vmatprep.mubr.bf16.mxu0 0
        %2622 = vmatmul.mubr.bf16.gmra.mxu0 %v2463
        %v2623 = vpop.f32.mrf.mxu0
        %v2624 = vadd.f32 %v2492, %v2623
        %v2625 = vpop.f32.mrf.mxu0
        %v2626 = vpop.f32.mrf.mxu0
        %v2627 = vadd.f32 %v2492, %v2626
        %v2628 = vpop.f32.mrf.mxu0
        %2629 = vmatprep.mubr.bf16.mxu0 0
        %2630 = vmatmul.mubr.bf16.gmra.mxu0 %v2464
        %v2631 = vpop.f32.mrf.mxu0
        %v2632 = vadd.f32 %v2492, %v2631
        %v2633 = vpop.f32.mrf.mxu0
        %v2634 = vpop.f32.mrf.mxu0
        %v2635 = vadd.f32 %v2492, %v2634
        %v2636 = vpop.f32.mrf.mxu0
        %2637 = vmatprep.mubr.bf16.mxu0 0
        %2638 = vmatmul.mubr.bf16.gmra.mxu0 %v2465
        %v2639 = vpop.f32.mrf.mxu0
        %v2640 = vadd.f32 %v2492, %v2639
        %v2641 = vpop.f32.mrf.mxu0
        %v2642 = vpop.f32.mrf.mxu0
        %v2643 = vadd.f32 %v2492, %v2642
        %v2644 = vpop.f32.mrf.mxu0
        %2645 = vmatprep.mubr.bf16.mxu0 0
        %2646 = vmatmul.mubr.bf16.gmra.mxu0 %v2466
        %v2647 = vpop.f32.mrf.mxu0
        %v2648 = vadd.f32 %v2492, %v2647
        %v2649 = vpop.f32.mrf.mxu0
        %v2650 = vpop.f32.mrf.mxu0
        %v2651 = vadd.f32 %v2492, %v2650
        %v2652 = vpop.f32.mrf.mxu0
        %2653 = vmatprep.mubr.bf16.mxu0 0
        %2654 = vmatmul.mubr.bf16.gmra.mxu0 %v2467
        %v2655 = vpop.f32.mrf.mxu0
        %v2656 = vadd.f32 %v2492, %v2655
        %v2657 = vpop.f32.mrf.mxu0
        %v2658 = vpop.f32.mrf.mxu0
        %v2659 = vadd.f32 %v2492, %v2658
        %v2660 = vpop.f32.mrf.mxu0
        %2661 = vmatprep.mubr.bf16.mxu0 0
        %2662 = vmatmul.mubr.bf16.gmra.mxu0 %v2468
        %v2663 = vpop.f32.mrf.mxu0
        %v2664 = vadd.f32 %v2492, %v2663
        %v2665 = vpop.f32.mrf.mxu0
        %v2666 = vpop.f32.mrf.mxu0
        %v2667 = vadd.f32 %v2492, %v2666
        %v2668 = vpop.f32.mrf.mxu0
        %2669 = vmatprep.mubr.bf16.mxu0 0
        %2670 = vmatmul.mubr.bf16.gmra.mxu0 %v2469
        %v2671 = vpop.f32.mrf.mxu0
        %v2672 = vadd.f32 %v2492, %v2671
        %v2673 = vpop.f32.mrf.mxu0
        %v2674 = vpop.f32.mrf.mxu0
        %v2675 = vadd.f32 %v2492, %v2674
        %v2676 = vpop.f32.mrf.mxu0
        %2677 = vmatprep.mubr.bf16.mxu0 0
        %2678 = vmatmul.mubr.bf16.gmra.mxu0 %v2470
        %v2679 = vpop.f32.mrf.mxu0
        %v2680 = vadd.f32 %v2492, %v2679
        %v2681 = vpop.f32.mrf.mxu0
        %v2682 = vpop.f32.mrf.mxu0
        %v2683 = vadd.f32 %v2492, %v2682
        %v2684 = vpop.f32.mrf.mxu0
        %2685 = vmatprep.mubr.bf16.mxu0 0
        %2686 = vmatmul.mubr.bf16.gmra.mxu0 %v2471
        %v2687 = vpop.f32.mrf.mxu0
        %v2688 = vadd.f32 %v2492, %v2687
        %v2689 = vpop.f32.mrf.mxu0
        %v2690 = vpop.f32.mrf.mxu0
        %v2691 = vadd.f32 %v2492, %v2690
        %v2692 = vpop.f32.mrf.mxu0
        %2693 = vmatprep.mubr.bf16.mxu0 0
        %2694 = vmatmul.mubr.bf16.gmra.mxu0 %v2472
        %v2695 = vpop.f32.mrf.mxu0
        %v2696 = vadd.f32 %v2492, %v2695
        %v2697 = vpop.f32.mrf.mxu0
        %v2698 = vpop.f32.mrf.mxu0
        %v2699 = vadd.f32 %v2492, %v2698
        %v2700 = vpop.f32.mrf.mxu0
        %2701 = vdwg.mxu0
        %v2702 = vtanh.pop %v2576
        %v2703 = vtanh.pop %v2579
        %v2704 = vtanh.pop %v2584
        %v2705 = vtanh.pop %v2587
        %v2706 = vtanh.pop %v2592
        %v2707 = vtanh.pop %v2595
        %v2708 = vtanh.pop %v2600
        %v2709 = vtanh.pop %v2603
        %v2710 = vtanh.pop %v2608
        %v2711 = vtanh.pop %v2611
        %v2712 = vtanh.pop %v2616
        %v2713 = vtanh.pop %v2619
        %v2714 = vtanh.pop %v2624
        %v2715 = vtanh.pop %v2627
        %v2716 = vtanh.pop %v2632
        %v2717 = vtanh.pop %v2635
        %v2718 = vtanh.pop %v2640
        %v2719 = vtanh.pop %v2643
        %v2720 = vtanh.pop %v2648
        %v2721 = vtanh.pop %v2651
        %v2722 = vtanh.pop %v2656
        %v2723 = vtanh.pop %v2659
        %v2724 = vtanh.pop %v2664
        %v2725 = vtanh.pop %v2667
        %v2726 = vtanh.pop %v2672
        %v2727 = vtanh.pop %v2675
        %v2728 = vtanh.pop %v2680
        %v2729 = vtanh.pop %v2683
        %v2730 = vtanh.pop %v2688
        %v2731 = vtanh.pop %v2691
        %v2732 = vtanh.pop %v2696
        %v2733 = vtanh.pop %v2699
        %v2734 = vpack.c.bf16 %v2703, %v2702
        %v2735 = vpack.c.bf16 %v2705, %v2704
        %v2736 = vpack.c.bf16 %v2707, %v2706
        %v2737 = vpack.c.bf16 %v2709, %v2708
        %v2738 = vpack.c.bf16 %v2711, %v2710
        %v2739 = vpack.c.bf16 %v2713, %v2712
        %v2740 = vpack.c.bf16 %v2715, %v2714
        %v2741 = vpack.c.bf16 %v2717, %v2716
        %v2742 = vpack.c.bf16 %v2719, %v2718
        %v2743 = vpack.c.bf16 %v2721, %v2720
        %v2744 = vpack.c.bf16 %v2723, %v2722
        %v2745 = vpack.c.bf16 %v2725, %v2724
        %v2746 = vpack.c.bf16 %v2727, %v2726
        %v2747 = vpack.c.bf16 %v2729, %v2728
        %v2748 = vpack.c.bf16 %v2731, %v2730
        %v2749 = vpack.c.bf16 %v2733, %v2732
        %v2750 = vld [vmem:[#allocation13] sm:$0xff]
        %v2751 = vld [vmem:[#allocation13 + $0x8] sm:$0xf]
        %v2752 = vld [vmem:[#allocation13 + $0xc] sm:$0xff]
        %v2753 = vld [vmem:[#allocation13 + $0x14] sm:$0xf]
        %v2754 = vld [vmem:[#allocation13 + $0x18] sm:$0xff]
        %v2755 = vld [vmem:[#allocation13 + $0x20] sm:$0xf]
        %v2756 = vld [vmem:[#allocation13 + $0x24] sm:$0xff]
        %v2757 = vld [vmem:[#allocation13 + $0x2c] sm:$0xf]
        %v2758 = vld [vmem:[#allocation13 + $0x30] sm:$0xff]
        %v2759 = vld [vmem:[#allocation13 + $0x38] sm:$0xf]
        %v2760 = vld [vmem:[#allocation13 + $0x3c] sm:$0xff]
        %v2761 = vld [vmem:[#allocation13 + $0x44] sm:$0xf]
        %v2762 = vld [vmem:[#allocation13 + $0x48] sm:$0xff]
        %v2763 = vld [vmem:[#allocation13 + $0x50] sm:$0xf]
        %v2764 = vld [vmem:[#allocation13 + $0x54] sm:$0xff]
        %v2765 = vld [vmem:[#allocation13 + $0x5c] sm:$0xf]
        %v2766 = vld [vmem:[#allocation13 + $0x60] sm:$0xff]
        %v2767 = vld [vmem:[#allocation13 + $0x68] sm:$0xf]
        %v2768 = vld [vmem:[#allocation13 + $0x6c] sm:$0xff]
        %v2769 = vld [vmem:[#allocation13 + $0x74] sm:$0xf]
        %v2770 = vld [vmem:[#allocation13 + $0x78] sm:$0xff]
        %v2771 = vld [vmem:[#allocation13 + $0x80] sm:$0xf]
        %v2772 = vld [vmem:[#allocation13 + $0x84] sm:$0xff]
        %v2773 = vld [vmem:[#allocation13 + $0x8c] sm:$0xf]
        %v2774 = vld [vmem:[#allocation13 + $0x90] sm:$0xff]
        %v2775 = vld [vmem:[#allocation13 + $0x98] sm:$0xf]
        %v2776 = vld [vmem:[#allocation13 + $0x9c] sm:$0xff]
        %v2777 = vld [vmem:[#allocation13 + $0xa4] sm:$0xf]
        %v2778 = vld [vmem:[#allocation13 + $0xa8] sm:$0xff]
        %v2779 = vld [vmem:[#allocation13 + $0xb0] sm:$0xf]
        %v2780 = vld [vmem:[#allocation13 + $0xb4] sm:$0xff]
        %v2781 = vld [vmem:[#allocation13 + $0xbc] sm:$0xf]
        %v2782 = vlaneseq
        %v2783 = vshrl.u32 %v2782, 7
        %v2784 = vsub.s32 4, %v2783
        %v2785 = vrot.slane %v585, %v2784
        %v2786 = vlaneseq
        %v2787 = vshrl.u32 %v2786, 7
        %v2788 = vsub.s32 4, %v2787
        %v2789 = vrot.slane %v586, %v2788
        %v2790 = vlaneseq
        %v2791 = vshrl.u32 %v2790, 7
        %v2792 = vsub.s32 4, %v2791
        %v2793 = vrot.slane %v587, %v2792
        %v2826 = vunpack.c.l.b16 %v2750
        %v2827 = vunpack.c.h.b16 %v2750
        %v2828 = vunpack.c.l.b16 %v2751
        %v2829 = vunpack.c.l.b16 %v2752
        %v2830 = vunpack.c.h.b16 %v2752
        %v2831 = vunpack.c.l.b16 %v2753
        %v2832 = vunpack.c.l.b16 %v2754
        %v2833 = vunpack.c.h.b16 %v2754
        %v2834 = vunpack.c.l.b16 %v2755
        %v2835 = vunpack.c.l.b16 %v2756
        %v2836 = vunpack.c.h.b16 %v2756
        %v2837 = vunpack.c.l.b16 %v2757
        %v2838 = vunpack.c.l.b16 %v2758
        %v2839 = vunpack.c.h.b16 %v2758
        %v2840 = vunpack.c.l.b16 %v2759
        %v2841 = vunpack.c.l.b16 %v2760
        %v2842 = vunpack.c.h.b16 %v2760
        %v2843 = vunpack.c.l.b16 %v2761
        %v2844 = vunpack.c.l.b16 %v2762
        %v2845 = vunpack.c.h.b16 %v2762
        %v2846 = vunpack.c.l.b16 %v2763
        %v2847 = vunpack.c.l.b16 %v2764
        %v2848 = vunpack.c.h.b16 %v2764
        %v2849 = vunpack.c.l.b16 %v2765
        %v2850 = vunpack.c.l.b16 %v2766
        %v2851 = vunpack.c.h.b16 %v2766
        %v2852 = vunpack.c.l.b16 %v2767
        %v2853 = vunpack.c.l.b16 %v2768
        %v2854 = vunpack.c.h.b16 %v2768
        %v2855 = vunpack.c.l.b16 %v2769
        %v2856 = vunpack.c.l.b16 %v2770
        %v2857 = vunpack.c.h.b16 %v2770
        %v2858 = vunpack.c.l.b16 %v2771
        %v2859 = vunpack.c.l.b16 %v2772
        %v2860 = vunpack.c.h.b16 %v2772
        %v2861 = vunpack.c.l.b16 %v2773
        %v2862 = vunpack.c.l.b16 %v2774
        %v2863 = vunpack.c.h.b16 %v2774
        %v2864 = vunpack.c.l.b16 %v2775
        %v2865 = vunpack.c.l.b16 %v2776
        %v2866 = vunpack.c.h.b16 %v2776
        %v2867 = vunpack.c.l.b16 %v2777
        %v2868 = vunpack.c.l.b16 %v2778
        %v2869 = vunpack.c.h.b16 %v2778
        %v2870 = vunpack.c.l.b16 %v2779
        %v2871 = vunpack.c.l.b16 %v2780
        %v2872 = vunpack.c.h.b16 %v2780
        %v2873 = vunpack.c.l.b16 %v2781
        %v2874 = vpack.c.b16 %v2829, %v2826
        %v2875 = vpack.c.b16 %v2830, %v2827
        %v2876 = vpack.c.b16 %v2831, %v2828
        %v2877 = vpack.c.b16 %v2835, %v2832
        %v2878 = vpack.c.b16 %v2836, %v2833
        %v2879 = vpack.c.b16 %v2837, %v2834
        %v2880 = vpack.c.b16 %v2841, %v2838
        %v2881 = vpack.c.b16 %v2842, %v2839
        %v2882 = vpack.c.b16 %v2843, %v2840
        %v2883 = vpack.c.b16 %v2847, %v2844
        %v2884 = vpack.c.b16 %v2848, %v2845
        %v2885 = vpack.c.b16 %v2849, %v2846
        %v2886 = vpack.c.b16 %v2853, %v2850
        %v2887 = vpack.c.b16 %v2854, %v2851
        %v2888 = vpack.c.b16 %v2855, %v2852
        %v2889 = vpack.c.b16 %v2859, %v2856
        %v2890 = vpack.c.b16 %v2860, %v2857
        %v2891 = vpack.c.b16 %v2861, %v2858
        %v2892 = vpack.c.b16 %v2865, %v2862
        %v2893 = vpack.c.b16 %v2866, %v2863
        %v2894 = vpack.c.b16 %v2867, %v2864
        %v2895 = vpack.c.b16 %v2871, %v2868
        %v2896 = vpack.c.b16 %v2872, %v2869
        %v2897 = vpack.c.b16 %v2873, %v2870
        %2922 = vmatprep.subr.bf16.mxu0 %v2896
        %2923 = vmatpush1.bf16.msra.mxu0 %v2895
        %2924 = vmatprep.subr.bf16.mxu0 %v2893
        %2925 = vmatpush1.bf16.msra.mxu0 %v2892
        %2926 = vmatprep.subr.bf16.mxu0 %v2890
        %2927 = vmatpush1.bf16.msra.mxu0 %v2889
        %2928 = vmatprep.subr.bf16.mxu0 %v2887
        %2929 = vmatpush1.bf16.msra.mxu0 %v2886
        %2930 = vmatprep.subr.bf16.mxu0 %v2884
        %2931 = vmatpush1.bf16.msra.mxu0 %v2883
        %2932 = vmatprep.subr.bf16.mxu0 %v2881
        %2933 = vmatpush1.bf16.msra.mxu0 %v2880
        %2934 = vmatprep.subr.bf16.mxu0 %v2878
        %2935 = vmatpush1.bf16.msra.mxu0 %v2877
        %2936 = vmatprep.subr.bf16.mxu0 %v2875
        %2937 = vmatpush1.bf16.msra.mxu0 %v2874
        %2938 = vmatprep.subr.bf16.mxu0 0
        %2939 = vmatpush2.bf16.msra.mxu0 0
        %2940 = vmatprep.subr.bf16.mxu0 0
        %2941 = vmatpush2.bf16.msra.mxu0 0
        %2942 = vmatprep.subr.bf16.mxu0 0
        %2943 = vmatpush2.bf16.msra.mxu0 0
        %2944 = vmatprep.subr.bf16.mxu0 0
        %2945 = vmatpush2.bf16.msra.mxu0 0
        %2946 = vmatprep.subr.bf16.mxu0 0
        %2947 = vmatpush2.bf16.msra.mxu0 0
        %2948 = vmatprep.subr.bf16.mxu0 0
        %2949 = vmatpush2.bf16.msra.mxu0 0
        %2950 = vmatprep.subr.bf16.mxu0 0
        %2951 = vmatpush2.bf16.msra.mxu0 0
        %2952 = vmatprep.subr.bf16.mxu0 0
        %2953 = vmatpush2.bf16.msra.mxu0 0
        %2954 = vmatprep.mubr.bf16.mxu0 0
        %2955 = vmatmul.mubr.bf16.gmra.mxu0 %v2734
        %v2956 = vpop.f32.mrf.mxu0
        %v2957 = vadd.f32 %v2785, %v2956
        %v2958 = vpop.f32.mrf.mxu0
        %v2959 = vadd.f32 %v2789, %v2958
        %v2960 = vpop.f32.mrf.mxu0
        %v2961 = vadd.f32 %v2785, %v2960
        %v2962 = vpop.f32.mrf.mxu0
        %v2963 = vadd.f32 %v2789, %v2962
        %2964 = vmatprep.mubr.bf16.mxu0 0
        %2965 = vmatmul.mubr.bf16.gmra.mxu0 %v2735
        %v2966 = vpop.f32.mrf.mxu0
        %v2967 = vadd.f32 %v2785, %v2966
        %v2968 = vpop.f32.mrf.mxu0
        %v2969 = vadd.f32 %v2789, %v2968
        %v2970 = vpop.f32.mrf.mxu0
        %v2971 = vadd.f32 %v2785, %v2970
        %v2972 = vpop.f32.mrf.mxu0
        %v2973 = vadd.f32 %v2789, %v2972
        %2974 = vmatprep.mubr.bf16.mxu0 0
        %2975 = vmatmul.mubr.bf16.gmra.mxu0 %v2736
        %v2976 = vpop.f32.mrf.mxu0
        %v2977 = vadd.f32 %v2785, %v2976
        %v2978 = vpop.f32.mrf.mxu0
        %v2979 = vadd.f32 %v2789, %v2978
        %v2980 = vpop.f32.mrf.mxu0
        %v2981 = vadd.f32 %v2785, %v2980
        %v2982 = vpop.f32.mrf.mxu0
        %v2983 = vadd.f32 %v2789, %v2982
        %2984 = vmatprep.mubr.bf16.mxu0 0
        %2985 = vmatmul.mubr.bf16.gmra.mxu0 %v2737
        %v2986 = vpop.f32.mrf.mxu0
        %v2987 = vadd.f32 %v2785, %v2986
        %v2988 = vpop.f32.mrf.mxu0
        %v2989 = vadd.f32 %v2789, %v2988
        %v2990 = vpop.f32.mrf.mxu0
        %v2991 = vadd.f32 %v2785, %v2990
        %v2992 = vpop.f32.mrf.mxu0
        %v2993 = vadd.f32 %v2789, %v2992
        %2994 = vmatprep.mubr.bf16.mxu0 0
        %2995 = vmatmul.mubr.bf16.gmra.mxu0 %v2738
        %v2996 = vpop.f32.mrf.mxu0
        %v2997 = vadd.f32 %v2785, %v2996
        %v2998 = vpop.f32.mrf.mxu0
        %v2999 = vadd.f32 %v2789, %v2998
        %v3000 = vpop.f32.mrf.mxu0
        %v3001 = vadd.f32 %v2785, %v3000
        %v3002 = vpop.f32.mrf.mxu0
        %v3003 = vadd.f32 %v2789, %v3002
        %3004 = vmatprep.mubr.bf16.mxu0 0
        %3005 = vmatmul.mubr.bf16.gmra.mxu0 %v2739
        %v3006 = vpop.f32.mrf.mxu0
        %v3007 = vadd.f32 %v2785, %v3006
        %v3008 = vpop.f32.mrf.mxu0
        %v3009 = vadd.f32 %v2789, %v3008
        %v3010 = vpop.f32.mrf.mxu0
        %v3011 = vadd.f32 %v2785, %v3010
        %v3012 = vpop.f32.mrf.mxu0
        %v3013 = vadd.f32 %v2789, %v3012
        %3014 = vmatprep.mubr.bf16.mxu0 0
        %3015 = vmatmul.mubr.bf16.gmra.mxu0 %v2740
        %v3016 = vpop.f32.mrf.mxu0
        %v3017 = vadd.f32 %v2785, %v3016
        %v3018 = vpop.f32.mrf.mxu0
        %v3019 = vadd.f32 %v2789, %v3018
        %v3020 = vpop.f32.mrf.mxu0
        %v3021 = vadd.f32 %v2785, %v3020
        %v3022 = vpop.f32.mrf.mxu0
        %v3023 = vadd.f32 %v2789, %v3022
        %3024 = vmatprep.mubr.bf16.mxu0 0
        %3025 = vmatmul.mubr.bf16.gmra.mxu0 %v2741
        %v3026 = vpop.f32.mrf.mxu0
        %v3027 = vadd.f32 %v2785, %v3026
        %v3028 = vpop.f32.mrf.mxu0
        %v3029 = vadd.f32 %v2789, %v3028
        %v3030 = vpop.f32.mrf.mxu0
        %v3031 = vadd.f32 %v2785, %v3030
        %v3032 = vpop.f32.mrf.mxu0
        %v3033 = vadd.f32 %v2789, %v3032
        %3034 = vmatprep.mubr.bf16.mxu0 0
        %3035 = vmatmul.mubr.bf16.gmra.mxu0 %v2742
        %v3036 = vpop.f32.mrf.mxu0
        %v3037 = vadd.f32 %v2785, %v3036
        %v3038 = vpop.f32.mrf.mxu0
        %v3039 = vadd.f32 %v2789, %v3038
        %v3040 = vpop.f32.mrf.mxu0
        %v3041 = vadd.f32 %v2785, %v3040
        %v3042 = vpop.f32.mrf.mxu0
        %v3043 = vadd.f32 %v2789, %v3042
        %3044 = vmatprep.mubr.bf16.mxu0 0
        %3045 = vmatmul.mubr.bf16.gmra.mxu0 %v2743
        %v3046 = vpop.f32.mrf.mxu0
        %v3047 = vadd.f32 %v2785, %v3046
        %v3048 = vpop.f32.mrf.mxu0
        %v3049 = vadd.f32 %v2789, %v3048
        %v3050 = vpop.f32.mrf.mxu0
        %v3051 = vadd.f32 %v2785, %v3050
        %v3052 = vpop.f32.mrf.mxu0
        %v3053 = vadd.f32 %v2789, %v3052
        %3054 = vmatprep.mubr.bf16.mxu0 0
        %3055 = vmatmul.mubr.bf16.gmra.mxu0 %v2744
        %v3056 = vpop.f32.mrf.mxu0
        %v3057 = vadd.f32 %v2785, %v3056
        %v3058 = vpop.f32.mrf.mxu0
        %v3059 = vadd.f32 %v2789, %v3058
        %v3060 = vpop.f32.mrf.mxu0
        %v3061 = vadd.f32 %v2785, %v3060
        %v3062 = vpop.f32.mrf.mxu0
        %v3063 = vadd.f32 %v2789, %v3062
        %3064 = vmatprep.mubr.bf16.mxu0 0
        %3065 = vmatmul.mubr.bf16.gmra.mxu0 %v2745
        %v3066 = vpop.f32.mrf.mxu0
        %v3067 = vadd.f32 %v2785, %v3066
        %v3068 = vpop.f32.mrf.mxu0
        %v3069 = vadd.f32 %v2789, %v3068
        %v3070 = vpop.f32.mrf.mxu0
        %v3071 = vadd.f32 %v2785, %v3070
        %v3072 = vpop.f32.mrf.mxu0
        %v3073 = vadd.f32 %v2789, %v3072
        %3074 = vmatprep.mubr.bf16.mxu0 0
        %3075 = vmatmul.mubr.bf16.gmra.mxu0 %v2746
        %v3076 = vpop.f32.mrf.mxu0
        %v3077 = vadd.f32 %v2785, %v3076
        %v3078 = vpop.f32.mrf.mxu0
        %v3079 = vadd.f32 %v2789, %v3078
        %v3080 = vpop.f32.mrf.mxu0
        %v3081 = vadd.f32 %v2785, %v3080
        %v3082 = vpop.f32.mrf.mxu0
        %v3083 = vadd.f32 %v2789, %v3082
        %3084 = vmatprep.mubr.bf16.mxu0 0
        %3085 = vmatmul.mubr.bf16.gmra.mxu0 %v2747
        %v3086 = vpop.f32.mrf.mxu0
        %v3087 = vadd.f32 %v2785, %v3086
        %v3088 = vpop.f32.mrf.mxu0
        %v3089 = vadd.f32 %v2789, %v3088
        %v3090 = vpop.f32.mrf.mxu0
        %v3091 = vadd.f32 %v2785, %v3090
        %v3092 = vpop.f32.mrf.mxu0
        %v3093 = vadd.f32 %v2789, %v3092
        %3094 = vmatprep.mubr.bf16.mxu0 0
        %3095 = vmatmul.mubr.bf16.gmra.mxu0 %v2748
        %v3096 = vpop.f32.mrf.mxu0
        %v3097 = vadd.f32 %v2785, %v3096
        %v3098 = vpop.f32.mrf.mxu0
        %v3099 = vadd.f32 %v2789, %v3098
        %v3100 = vpop.f32.mrf.mxu0
        %v3101 = vadd.f32 %v2785, %v3100
        %v3102 = vpop.f32.mrf.mxu0
        %v3103 = vadd.f32 %v2789, %v3102
        %3104 = vmatprep.mubr.bf16.mxu0 0
        %3105 = vmatmul.mubr.bf16.gmra.mxu0 %v2749
        %v3106 = vpop.f32.mrf.mxu0
        %v3107 = vadd.f32 %v2785, %v3106
        %v3108 = vpop.f32.mrf.mxu0
        %v3109 = vadd.f32 %v2789, %v3108
        %v3110 = vpop.f32.mrf.mxu0
        %v3111 = vadd.f32 %v2785, %v3110
        %v3112 = vpop.f32.mrf.mxu0
        %v3113 = vadd.f32 %v2789, %v3112
        %3114 = vdwg.mxu0
        %3115 = vmatprep.subr.bf16.mxu0 0
        %3116 = vmatpush1.bf16.msra.mxu0 %v2897
        %3117 = vmatprep.subr.bf16.mxu0 0
        %3118 = vmatpush1.bf16.msra.mxu0 %v2894
        %3119 = vmatprep.subr.bf16.mxu0 0
        %3120 = vmatpush1.bf16.msra.mxu0 %v2891
        %3121 = vmatprep.subr.bf16.mxu0 0
        %3122 = vmatpush1.bf16.msra.mxu0 %v2888
        %3123 = vmatprep.subr.bf16.mxu0 0
        %3124 = vmatpush1.bf16.msra.mxu0 %v2885
        %3125 = vmatprep.subr.bf16.mxu0 0
        %3126 = vmatpush1.bf16.msra.mxu0 %v2882
        %3127 = vmatprep.subr.bf16.mxu0 0
        %3128 = vmatpush1.bf16.msra.mxu0 %v2879
        %3129 = vmatprep.subr.bf16.mxu0 0
        %3130 = vmatpush1.bf16.msra.mxu0 %v2876
        %3131 = vmatprep.subr.bf16.mxu0 0
        %3132 = vmatpush2.bf16.msra.mxu0 0
        %3133 = vmatprep.subr.bf16.mxu0 0
        %3134 = vmatpush2.bf16.msra.mxu0 0
        %3135 = vmatprep.subr.bf16.mxu0 0
        %3136 = vmatpush2.bf16.msra.mxu0 0
        %3137 = vmatprep.subr.bf16.mxu0 0
        %3138 = vmatpush2.bf16.msra.mxu0 0
        %3139 = vmatprep.subr.bf16.mxu0 0
        %3140 = vmatpush2.bf16.msra.mxu0 0
        %3141 = vmatprep.subr.bf16.mxu0 0
        %3142 = vmatpush2.bf16.msra.mxu0 0
        %3143 = vmatprep.subr.bf16.mxu0 0
        %3144 = vmatpush2.bf16.msra.mxu0 0
        %3145 = vmatprep.subr.bf16.mxu0 0
        %3146 = vmatpush2.bf16.msra.mxu0 0
        %3147 = vmatprep.mubr.bf16.mxu0 0
        %3148 = vmatmul.mubr.bf16.gmra.mxu0 %v2734
        %v3149 = vpop.f32.mrf.mxu0
        %v3150 = vadd.f32 %v2793, %v3149
        %v3151 = vpop.f32.mrf.mxu0
        %v3152 = vpop.f32.mrf.mxu0
        %v3153 = vadd.f32 %v2793, %v3152
        %v3154 = vpop.f32.mrf.mxu0
        %3155 = vmatprep.mubr.bf16.mxu0 0
        %3156 = vmatmul.mubr.bf16.gmra.mxu0 %v2735
        %v3157 = vpop.f32.mrf.mxu0
        %v3158 = vadd.f32 %v2793, %v3157
        %v3159 = vpop.f32.mrf.mxu0
        %v3160 = vpop.f32.mrf.mxu0
        %v3161 = vadd.f32 %v2793, %v3160
        %v3162 = vpop.f32.mrf.mxu0
        %3163 = vmatprep.mubr.bf16.mxu0 0
        %3164 = vmatmul.mubr.bf16.gmra.mxu0 %v2736
        %v3165 = vpop.f32.mrf.mxu0
        %v3166 = vadd.f32 %v2793, %v3165
        %v3167 = vpop.f32.mrf.mxu0
        %v3168 = vpop.f32.mrf.mxu0
        %v3169 = vadd.f32 %v2793, %v3168
        %v3170 = vpop.f32.mrf.mxu0
        %3171 = vmatprep.mubr.bf16.mxu0 0
        %3172 = vmatmul.mubr.bf16.gmra.mxu0 %v2737
        %v3173 = vpop.f32.mrf.mxu0
        %v3174 = vadd.f32 %v2793, %v3173
        %v3175 = vpop.f32.mrf.mxu0
        %v3176 = vpop.f32.mrf.mxu0
        %v3177 = vadd.f32 %v2793, %v3176
        %v3178 = vpop.f32.mrf.mxu0
        %3179 = vmatprep.mubr.bf16.mxu0 0
        %3180 = vmatmul.mubr.bf16.gmra.mxu0 %v2738
        %v3181 = vpop.f32.mrf.mxu0
        %v3182 = vadd.f32 %v2793, %v3181
        %v3183 = vpop.f32.mrf.mxu0
        %v3184 = vpop.f32.mrf.mxu0
        %v3185 = vadd.f32 %v2793, %v3184
        %v3186 = vpop.f32.mrf.mxu0
        %3187 = vmatprep.mubr.bf16.mxu0 0
        %3188 = vmatmul.mubr.bf16.gmra.mxu0 %v2739
        %v3189 = vpop.f32.mrf.mxu0
        %v3190 = vadd.f32 %v2793, %v3189
        %v3191 = vpop.f32.mrf.mxu0
        %v3192 = vpop.f32.mrf.mxu0
        %v3193 = vadd.f32 %v2793, %v3192
        %v3194 = vpop.f32.mrf.mxu0
        %3195 = vmatprep.mubr.bf16.mxu0 0
        %3196 = vmatmul.mubr.bf16.gmra.mxu0 %v2740
        %v3197 = vpop.f32.mrf.mxu0
        %v3198 = vadd.f32 %v2793, %v3197
        %v3199 = vpop.f32.mrf.mxu0
        %v3200 = vpop.f32.mrf.mxu0
        %v3201 = vadd.f32 %v2793, %v3200
        %v3202 = vpop.f32.mrf.mxu0
        %3203 = vmatprep.mubr.bf16.mxu0 0
        %3204 = vmatmul.mubr.bf16.gmra.mxu0 %v2741
        %v3205 = vpop.f32.mrf.mxu0
        %v3206 = vadd.f32 %v2793, %v3205
        %v3207 = vpop.f32.mrf.mxu0
        %v3208 = vpop.f32.mrf.mxu0
        %v3209 = vadd.f32 %v2793, %v3208
        %v3210 = vpop.f32.mrf.mxu0
        %3211 = vmatprep.mubr.bf16.mxu0 0
        %3212 = vmatmul.mubr.bf16.gmra.mxu0 %v2742
        %v3213 = vpop.f32.mrf.mxu0
        %v3214 = vadd.f32 %v2793, %v3213
        %v3215 = vpop.f32.mrf.mxu0
        %v3216 = vpop.f32.mrf.mxu0
        %v3217 = vadd.f32 %v2793, %v3216
        %v3218 = vpop.f32.mrf.mxu0
        %3219 = vmatprep.mubr.bf16.mxu0 0
        %3220 = vmatmul.mubr.bf16.gmra.mxu0 %v2743
        %v3221 = vpop.f32.mrf.mxu0
        %v3222 = vadd.f32 %v2793, %v3221
        %v3223 = vpop.f32.mrf.mxu0
        %v3224 = vpop.f32.mrf.mxu0
        %v3225 = vadd.f32 %v2793, %v3224
        %v3226 = vpop.f32.mrf.mxu0
        %3227 = vmatprep.mubr.bf16.mxu0 0
        %3228 = vmatmul.mubr.bf16.gmra.mxu0 %v2744
        %v3229 = vpop.f32.mrf.mxu0
        %v3230 = vadd.f32 %v2793, %v3229
        %v3231 = vpop.f32.mrf.mxu0
        %v3232 = vpop.f32.mrf.mxu0
        %v3233 = vadd.f32 %v2793, %v3232
        %v3234 = vpop.f32.mrf.mxu0
        %3235 = vmatprep.mubr.bf16.mxu0 0
        %3236 = vmatmul.mubr.bf16.gmra.mxu0 %v2745
        %v3237 = vpop.f32.mrf.mxu0
        %v3238 = vadd.f32 %v2793, %v3237
        %v3239 = vpop.f32.mrf.mxu0
        %v3240 = vpop.f32.mrf.mxu0
        %v3241 = vadd.f32 %v2793, %v3240
        %v3242 = vpop.f32.mrf.mxu0
        %3243 = vmatprep.mubr.bf16.mxu0 0
        %3244 = vmatmul.mubr.bf16.gmra.mxu0 %v2746
        %v3245 = vpop.f32.mrf.mxu0
        %v3246 = vadd.f32 %v2793, %v3245
        %v3247 = vpop.f32.mrf.mxu0
        %v3248 = vpop.f32.mrf.mxu0
        %v3249 = vadd.f32 %v2793, %v3248
        %v3250 = vpop.f32.mrf.mxu0
        %3251 = vmatprep.mubr.bf16.mxu0 0
        %3252 = vmatmul.mubr.bf16.gmra.mxu0 %v2747
        %v3253 = vpop.f32.mrf.mxu0
        %v3254 = vadd.f32 %v2793, %v3253
        %v3255 = vpop.f32.mrf.mxu0
        %v3256 = vpop.f32.mrf.mxu0
        %v3257 = vadd.f32 %v2793, %v3256
        %v3258 = vpop.f32.mrf.mxu0
        %3259 = vmatprep.mubr.bf16.mxu0 0
        %3260 = vmatmul.mubr.bf16.gmra.mxu0 %v2748
        %v3261 = vpop.f32.mrf.mxu0
        %v3262 = vadd.f32 %v2793, %v3261
        %v3263 = vpop.f32.mrf.mxu0
        %v3264 = vpop.f32.mrf.mxu0
        %v3265 = vadd.f32 %v2793, %v3264
        %v3266 = vpop.f32.mrf.mxu0
        %3267 = vmatprep.mubr.bf16.mxu0 0
        %3268 = vmatmul.mubr.bf16.gmra.mxu0 %v2749
        %v3269 = vpop.f32.mrf.mxu0
        %v3270 = vadd.f32 %v2793, %v3269
        %v3271 = vpop.f32.mrf.mxu0
        %v3272 = vpop.f32.mrf.mxu0
        %v3273 = vadd.f32 %v2793, %v3272
        %v3274 = vpop.f32.mrf.mxu0
        %3275 = vdwg.mxu0
        %v3276 = vmax.f32 %v2957, 0.0
        %v3277 = vmax.f32 %v2959, 0.0
        %v3278 = vmax.f32 %v3150, 0.0
        %v3279 = vmax.f32 %v2961, 0.0
        %v3280 = vmax.f32 %v2963, 0.0
        %v3281 = vmax.f32 %v3153, 0.0
        %v3282 = vmax.f32 %v2967, 0.0
        %v3283 = vmax.f32 %v2969, 0.0
        %v3284 = vmax.f32 %v3158, 0.0
        %v3285 = vmax.f32 %v2971, 0.0
        %v3286 = vmax.f32 %v2973, 0.0
        %v3287 = vmax.f32 %v3161, 0.0
        %v3288 = vmax.f32 %v2977, 0.0
        %v3289 = vmax.f32 %v2979, 0.0
        %v3290 = vmax.f32 %v3166, 0.0
        %v3291 = vmax.f32 %v2981, 0.0
        %v3292 = vmax.f32 %v2983, 0.0
        %v3293 = vmax.f32 %v3169, 0.0
        %v3294 = vmax.f32 %v2987, 0.0
        %v3295 = vmax.f32 %v2989, 0.0
        %v3296 = vmax.f32 %v3174, 0.0
        %v3297 = vmax.f32 %v2991, 0.0
        %v3298 = vmax.f32 %v2993, 0.0
        %v3299 = vmax.f32 %v3177, 0.0
        %v3300 = vmax.f32 %v2997, 0.0
        %v3301 = vmax.f32 %v2999, 0.0
        %v3302 = vmax.f32 %v3182, 0.0
        %v3303 = vmax.f32 %v3001, 0.0
        %v3304 = vmax.f32 %v3003, 0.0
        %v3305 = vmax.f32 %v3185, 0.0
        %v3306 = vmax.f32 %v3007, 0.0
        %v3307 = vmax.f32 %v3009, 0.0
        %v3308 = vmax.f32 %v3190, 0.0
        %v3309 = vmax.f32 %v3011, 0.0
        %v3310 = vmax.f32 %v3013, 0.0
        %v3311 = vmax.f32 %v3193, 0.0
        %v3312 = vmax.f32 %v3017, 0.0
        %v3313 = vmax.f32 %v3019, 0.0
        %v3314 = vmax.f32 %v3198, 0.0
        %v3315 = vmax.f32 %v3021, 0.0
        %v3316 = vmax.f32 %v3023, 0.0
        %v3317 = vmax.f32 %v3201, 0.0
        %v3318 = vmax.f32 %v3027, 0.0
        %v3319 = vmax.f32 %v3029, 0.0
        %v3320 = vmax.f32 %v3206, 0.0
        %v3321 = vmax.f32 %v3031, 0.0
        %v3322 = vmax.f32 %v3033, 0.0
        %v3323 = vmax.f32 %v3209, 0.0
        %v3324 = vmax.f32 %v3037, 0.0
        %v3325 = vmax.f32 %v3039, 0.0
        %v3326 = vmax.f32 %v3214, 0.0
        %v3327 = vmax.f32 %v3041, 0.0
        %v3328 = vmax.f32 %v3043, 0.0
        %v3329 = vmax.f32 %v3217, 0.0
        %v3330 = vmax.f32 %v3047, 0.0
        %v3331 = vmax.f32 %v3049, 0.0
        %v3332 = vmax.f32 %v3222, 0.0
        %v3333 = vmax.f32 %v3051, 0.0
        %v3334 = vmax.f32 %v3053, 0.0
        %v3335 = vmax.f32 %v3225, 0.0
        %v3336 = vmax.f32 %v3057, 0.0
        %v3337 = vmax.f32 %v3059, 0.0
        %v3338 = vmax.f32 %v3230, 0.0
        %v3339 = vmax.f32 %v3061, 0.0
        %v3340 = vmax.f32 %v3063, 0.0
        %v3341 = vmax.f32 %v3233, 0.0
        %v3342 = vmax.f32 %v3067, 0.0
        %v3343 = vmax.f32 %v3069, 0.0
        %v3344 = vmax.f32 %v3238, 0.0
        %v3345 = vmax.f32 %v3071, 0.0
        %v3346 = vmax.f32 %v3073, 0.0
        %v3347 = vmax.f32 %v3241, 0.0
        %v3348 = vmax.f32 %v3077, 0.0
        %v3349 = vmax.f32 %v3079, 0.0
        %v3350 = vmax.f32 %v3246, 0.0
        %v3351 = vmax.f32 %v3081, 0.0
        %v3352 = vmax.f32 %v3083, 0.0
        %v3353 = vmax.f32 %v3249, 0.0
        %v3354 = vmax.f32 %v3087, 0.0
        %v3355 = vmax.f32 %v3089, 0.0
        %v3356 = vmax.f32 %v3254, 0.0
        %v3357 = vmax.f32 %v3091, 0.0
        %v3358 = vmax.f32 %v3093, 0.0
        %v3359 = vmax.f32 %v3257, 0.0
        %v3360 = vmax.f32 %v3097, 0.0
        %v3361 = vmax.f32 %v3099, 0.0
        %v3362 = vmax.f32 %v3262, 0.0
        %v3363 = vmax.f32 %v3101, 0.0
        %v3364 = vmax.f32 %v3103, 0.0
        %v3365 = vmax.f32 %v3265, 0.0
        %v3366 = vmax.f32 %v3107, 0.0
        %v3367 = vmax.f32 %v3109, 0.0
        %v3368 = vmax.f32 %v3270, 0.0
        %v3369 = vmax.f32 %v3111, 0.0
        %v3370 = vmax.f32 %v3113, 0.0
        %v3371 = vmax.f32 %v3273, 0.0
        %v3372 = vpack.c.bf16 %v3279, %v3276
        %v3373 = vpack.c.bf16 %v3280, %v3277
        %v3374 = vpack.c.bf16 %v3281, %v3278
        %v3375 = vpack.c.bf16 %v3285, %v3282
        %v3376 = vpack.c.bf16 %v3286, %v3283
        %v3377 = vpack.c.bf16 %v3287, %v3284
        %v3378 = vpack.c.bf16 %v3291, %v3288
        %v3379 = vpack.c.bf16 %v3292, %v3289
        %v3380 = vpack.c.bf16 %v3293, %v3290
        %v3381 = vpack.c.bf16 %v3297, %v3294
        %v3382 = vpack.c.bf16 %v3298, %v3295
        %v3383 = vpack.c.bf16 %v3299, %v3296
        %v3384 = vpack.c.bf16 %v3303, %v3300
        %v3385 = vpack.c.bf16 %v3304, %v3301
        %v3386 = vpack.c.bf16 %v3305, %v3302
        %v3387 = vpack.c.bf16 %v3309, %v3306
        %v3388 = vpack.c.bf16 %v3310, %v3307
        %v3389 = vpack.c.bf16 %v3311, %v3308
        %v3390 = vpack.c.bf16 %v3315, %v3312
        %v3391 = vpack.c.bf16 %v3316, %v3313
        %v3392 = vpack.c.bf16 %v3317, %v3314
        %v3393 = vpack.c.bf16 %v3321, %v3318
        %v3394 = vpack.c.bf16 %v3322, %v3319
        %v3395 = vpack.c.bf16 %v3323, %v3320
        %v3396 = vpack.c.bf16 %v3327, %v3324
        %v3397 = vpack.c.bf16 %v3328, %v3325
        %v3398 = vpack.c.bf16 %v3329, %v3326
        %v3399 = vpack.c.bf16 %v3333, %v3330
        %v3400 = vpack.c.bf16 %v3334, %v3331
        %v3401 = vpack.c.bf16 %v3335, %v3332
        %v3402 = vpack.c.bf16 %v3339, %v3336
        %v3403 = vpack.c.bf16 %v3340, %v3337
        %v3404 = vpack.c.bf16 %v3341, %v3338
        %v3405 = vpack.c.bf16 %v3345, %v3342
        %v3406 = vpack.c.bf16 %v3346, %v3343
        %v3407 = vpack.c.bf16 %v3347, %v3344
        %v3408 = vpack.c.bf16 %v3351, %v3348
        %v3409 = vpack.c.bf16 %v3352, %v3349
        %v3410 = vpack.c.bf16 %v3353, %v3350
        %v3411 = vpack.c.bf16 %v3357, %v3354
        %v3412 = vpack.c.bf16 %v3358, %v3355
        %v3413 = vpack.c.bf16 %v3359, %v3356
        %v3414 = vpack.c.bf16 %v3363, %v3360
        %v3415 = vpack.c.bf16 %v3364, %v3361
        %v3416 = vpack.c.bf16 %v3365, %v3362
        %v3417 = vpack.c.bf16 %v3369, %v3366
        %v3418 = vpack.c.bf16 %v3370, %v3367
        %v3419 = vpack.c.bf16 %v3371, %v3368
        %v3420 = vld [vmem:[#allocation14] sm:$0xff]
        %v3421 = vld [vmem:[#allocation14 + $0x8] sm:$0xff]
        %v3422 = vld [vmem:[#allocation14 + $0x10] sm:$0xff]
        %v3423 = vld [vmem:[#allocation14 + $0x18] sm:$0xff]
        %v3424 = vld [vmem:[#allocation14 + $0x20] sm:$0xff]
        %v3425 = vld [vmem:[#allocation14 + $0x28] sm:$0xff]
        %v3426 = vld [vmem:[#allocation14 + $0x30] sm:$0xff]
        %v3427 = vld [vmem:[#allocation14 + $0x38] sm:$0xff]
        %v3428 = vld [vmem:[#allocation14 + $0x40] sm:$0xff]
        %v3429 = vld [vmem:[#allocation14 + $0x48] sm:$0xff]
        %v3430 = vld [vmem:[#allocation14 + $0x50] sm:$0xff]
        %v3431 = vld [vmem:[#allocation14 + $0x58] sm:$0xff]
        %v3432 = vld [vmem:[#allocation14 + $0x60] sm:$0xff]
        %v3433 = vld [vmem:[#allocation14 + $0x68] sm:$0xff]
        %v3434 = vld [vmem:[#allocation14 + $0x70] sm:$0xff]
        %v3435 = vld [vmem:[#allocation14 + $0x78] sm:$0xff]
        %v3436 = vld [vmem:[#allocation14 + $0x80] sm:$0xff]
        %v3437 = vld [vmem:[#allocation14 + $0x88] sm:$0xff]
        %v3438 = vld [vmem:[#allocation14 + $0x90] sm:$0xff]
        %v3439 = vld [vmem:[#allocation14 + $0x98] sm:$0xff]
        %v3440 = vld [vmem:[#allocation14 + $0xa0] sm:$0xff]
        %v3441 = vld [vmem:[#allocation14 + $0xa8] sm:$0xff]
        %v3442 = vld [vmem:[#allocation14 + $0xb0] sm:$0xff]
        %v3443 = vld [vmem:[#allocation14 + $0xb8] sm:$0xff]
        %v3444 = vld [vmem:[#allocation14 + $0xc0] sm:$0xff]
        %v3445 = vld [vmem:[#allocation14 + $0xc8] sm:$0xff]
        %v3446 = vld [vmem:[#allocation14 + $0xd0] sm:$0xff]
        %v3447 = vld [vmem:[#allocation14 + $0xd8] sm:$0xff]
        %v3448 = vld [vmem:[#allocation14 + $0xe0] sm:$0xff]
        %v3449 = vld [vmem:[#allocation14 + $0xe8] sm:$0xff]
        %v3450 = vld [vmem:[#allocation14 + $0xf0] sm:$0xff]
        %v3451 = vld [vmem:[#allocation14 + $0xf8] sm:$0xff]
        %v3452 = vld [vmem:[#allocation14 + $0x100] sm:$0xff]
        %v3453 = vld [vmem:[#allocation14 + $0x108] sm:$0xff]
        %v3454 = vld [vmem:[#allocation14 + $0x110] sm:$0xff]
        %v3455 = vld [vmem:[#allocation14 + $0x118] sm:$0xff]
        %v3456 = vld [vmem:[#allocation14 + $0x120] sm:$0xff]
        %v3457 = vld [vmem:[#allocation14 + $0x128] sm:$0xff]
        %v3458 = vld [vmem:[#allocation14 + $0x130] sm:$0xff]
        %v3459 = vld [vmem:[#allocation14 + $0x138] sm:$0xff]
        %v3460 = vld [vmem:[#allocation14 + $0x140] sm:$0xff]
        %v3461 = vld [vmem:[#allocation14 + $0x148] sm:$0xff]
        %v3462 = vld [vmem:[#allocation14 + $0x150] sm:$0xff]
        %v3463 = vld [vmem:[#allocation14 + $0x158] sm:$0xff]
        %v3464 = vld [vmem:[#allocation14 + $0x160] sm:$0xff]
        %v3465 = vld [vmem:[#allocation14 + $0x168] sm:$0xff]
        %v3466 = vld [vmem:[#allocation14 + $0x170] sm:$0xff]
        %v3467 = vld [vmem:[#allocation14 + $0x178] sm:$0xff]
        %v3468 = vlaneseq
        %v3469 = vshrl.u32 %v3468, 7
        %v3470 = vsub.s32 5, %v3469
        %v3471 = vrot.slane %v585, %v3470
        %v3472 = vlaneseq
        %v3473 = vshrl.u32 %v3472, 7
        %v3474 = vsub.s32 5, %v3473
        %v3475 = vrot.slane %v586, %v3474
        %v3524 = vunpack.c.l.b16 %v3420
        %v3525 = vunpack.c.h.b16 %v3420
        %v3526 = vunpack.c.l.b16 %v3421
        %v3527 = vunpack.c.h.b16 %v3421
        %v3528 = vunpack.c.l.b16 %v3422
        %v3529 = vunpack.c.h.b16 %v3422
        %v3530 = vunpack.c.l.b16 %v3423
        %v3531 = vunpack.c.h.b16 %v3423
        %v3532 = vunpack.c.l.b16 %v3424
        %v3533 = vunpack.c.h.b16 %v3424
        %v3534 = vunpack.c.l.b16 %v3425
        %v3535 = vunpack.c.h.b16 %v3425
        %v3536 = vunpack.c.l.b16 %v3426
        %v3537 = vunpack.c.h.b16 %v3426
        %v3538 = vunpack.c.l.b16 %v3427
        %v3539 = vunpack.c.h.b16 %v3427
        %v3540 = vunpack.c.l.b16 %v3428
        %v3541 = vunpack.c.h.b16 %v3428
        %v3542 = vunpack.c.l.b16 %v3429
        %v3543 = vunpack.c.h.b16 %v3429
        %v3544 = vunpack.c.l.b16 %v3430
        %v3545 = vunpack.c.h.b16 %v3430
        %v3546 = vunpack.c.l.b16 %v3431
        %v3547 = vunpack.c.h.b16 %v3431
        %v3548 = vunpack.c.l.b16 %v3432
        %v3549 = vunpack.c.h.b16 %v3432
        %v3550 = vunpack.c.l.b16 %v3433
        %v3551 = vunpack.c.h.b16 %v3433
        %v3552 = vunpack.c.l.b16 %v3434
        %v3553 = vunpack.c.h.b16 %v3434
        %v3554 = vunpack.c.l.b16 %v3435
        %v3555 = vunpack.c.h.b16 %v3435
        %v3556 = vunpack.c.l.b16 %v3436
        %v3557 = vunpack.c.h.b16 %v3436
        %v3558 = vunpack.c.l.b16 %v3437
        %v3559 = vunpack.c.h.b16 %v3437
        %v3560 = vunpack.c.l.b16 %v3438
        %v3561 = vunpack.c.h.b16 %v3438
        %v3562 = vunpack.c.l.b16 %v3439
        %v3563 = vunpack.c.h.b16 %v3439
        %v3564 = vunpack.c.l.b16 %v3440
        %v3565 = vunpack.c.h.b16 %v3440
        %v3566 = vunpack.c.l.b16 %v3441
        %v3567 = vunpack.c.h.b16 %v3441
        %v3568 = vunpack.c.l.b16 %v3442
        %v3569 = vunpack.c.h.b16 %v3442
        %v3570 = vunpack.c.l.b16 %v3443
        %v3571 = vunpack.c.h.b16 %v3443
        %v3572 = vunpack.c.l.b16 %v3444
        %v3573 = vunpack.c.h.b16 %v3444
        %v3574 = vunpack.c.l.b16 %v3445
        %v3575 = vunpack.c.h.b16 %v3445
        %v3576 = vunpack.c.l.b16 %v3446
        %v3577 = vunpack.c.h.b16 %v3446
        %v3578 = vunpack.c.l.b16 %v3447
        %v3579 = vunpack.c.h.b16 %v3447
        %v3580 = vunpack.c.l.b16 %v3448
        %v3581 = vunpack.c.h.b16 %v3448
        %v3582 = vunpack.c.l.b16 %v3449
        %v3583 = vunpack.c.h.b16 %v3449
        %v3584 = vunpack.c.l.b16 %v3450
        %v3585 = vunpack.c.h.b16 %v3450
        %v3586 = vunpack.c.l.b16 %v3451
        %v3587 = vunpack.c.h.b16 %v3451
        %v3588 = vunpack.c.l.b16 %v3452
        %v3589 = vunpack.c.h.b16 %v3452
        %v3590 = vunpack.c.l.b16 %v3453
        %v3591 = vunpack.c.h.b16 %v3453
        %v3592 = vunpack.c.l.b16 %v3454
        %v3593 = vunpack.c.h.b16 %v3454
        %v3594 = vunpack.c.l.b16 %v3455
        %v3595 = vunpack.c.h.b16 %v3455
        %v3596 = vunpack.c.l.b16 %v3456
        %v3597 = vunpack.c.h.b16 %v3456
        %v3598 = vunpack.c.l.b16 %v3457
        %v3599 = vunpack.c.h.b16 %v3457
        %v3600 = vunpack.c.l.b16 %v3458
        %v3601 = vunpack.c.h.b16 %v3458
        %v3602 = vunpack.c.l.b16 %v3459
        %v3603 = vunpack.c.h.b16 %v3459
        %v3604 = vunpack.c.l.b16 %v3460
        %v3605 = vunpack.c.h.b16 %v3460
        %v3606 = vunpack.c.l.b16 %v3461
        %v3607 = vunpack.c.h.b16 %v3461
        %v3608 = vunpack.c.l.b16 %v3462
        %v3609 = vunpack.c.h.b16 %v3462
        %v3610 = vunpack.c.l.b16 %v3463
        %v3611 = vunpack.c.h.b16 %v3463
        %v3612 = vunpack.c.l.b16 %v3464
        %v3613 = vunpack.c.h.b16 %v3464
        %v3614 = vunpack.c.l.b16 %v3465
        %v3615 = vunpack.c.h.b16 %v3465
        %v3616 = vunpack.c.l.b16 %v3466
        %v3617 = vunpack.c.h.b16 %v3466
        %v3618 = vunpack.c.l.b16 %v3467
        %v3619 = vunpack.c.h.b16 %v3467
        %v3620 = vpack.c.b16 %v3526, %v3524
        %v3621 = vpack.c.b16 %v3527, %v3525
        %v3622 = vpack.c.b16 %v3530, %v3528
        %v3623 = vpack.c.b16 %v3531, %v3529
        %v3624 = vpack.c.b16 %v3534, %v3532
        %v3625 = vpack.c.b16 %v3535, %v3533
        %v3626 = vpack.c.b16 %v3538, %v3536
        %v3627 = vpack.c.b16 %v3539, %v3537
        %v3628 = vpack.c.b16 %v3542, %v3540
        %v3629 = vpack.c.b16 %v3543, %v3541
        %v3630 = vpack.c.b16 %v3546, %v3544
        %v3631 = vpack.c.b16 %v3547, %v3545
        %v3632 = vpack.c.b16 %v3550, %v3548
        %v3633 = vpack.c.b16 %v3551, %v3549
        %v3634 = vpack.c.b16 %v3554, %v3552
        %v3635 = vpack.c.b16 %v3555, %v3553
        %v3636 = vpack.c.b16 %v3558, %v3556
        %v3637 = vpack.c.b16 %v3559, %v3557
        %v3638 = vpack.c.b16 %v3562, %v3560
        %v3639 = vpack.c.b16 %v3563, %v3561
        %v3640 = vpack.c.b16 %v3566, %v3564
        %v3641 = vpack.c.b16 %v3567, %v3565
        %v3642 = vpack.c.b16 %v3570, %v3568
        %v3643 = vpack.c.b16 %v3571, %v3569
        %v3644 = vpack.c.b16 %v3574, %v3572
        %v3645 = vpack.c.b16 %v3575, %v3573
        %v3646 = vpack.c.b16 %v3578, %v3576
        %v3647 = vpack.c.b16 %v3579, %v3577
        %v3648 = vpack.c.b16 %v3582, %v3580
        %v3649 = vpack.c.b16 %v3583, %v3581
        %v3650 = vpack.c.b16 %v3586, %v3584
        %v3651 = vpack.c.b16 %v3587, %v3585
        %v3652 = vpack.c.b16 %v3590, %v3588
        %v3653 = vpack.c.b16 %v3591, %v3589
        %v3654 = vpack.c.b16 %v3594, %v3592
        %v3655 = vpack.c.b16 %v3595, %v3593
        %v3656 = vpack.c.b16 %v3598, %v3596
        %v3657 = vpack.c.b16 %v3599, %v3597
        %v3658 = vpack.c.b16 %v3602, %v3600
        %v3659 = vpack.c.b16 %v3603, %v3601
        %v3660 = vpack.c.b16 %v3606, %v3604
        %v3661 = vpack.c.b16 %v3607, %v3605
        %v3662 = vpack.c.b16 %v3610, %v3608
        %v3663 = vpack.c.b16 %v3611, %v3609
        %v3664 = vpack.c.b16 %v3614, %v3612
        %v3665 = vpack.c.b16 %v3615, %v3613
        %v3666 = vpack.c.b16 %v3618, %v3616
        %v3667 = vpack.c.b16 %v3619, %v3617
        %3716 = vmatprep.subr.bf16.mxu0 %v3635
        %3717 = vmatpush1.bf16.msra.mxu0 %v3634
        %3718 = vmatprep.subr.bf16.mxu0 %v3633
        %3719 = vmatpush1.bf16.msra.mxu0 %v3632
        %3720 = vmatprep.subr.bf16.mxu0 %v3631
        %3721 = vmatpush1.bf16.msra.mxu0 %v3630
        %3722 = vmatprep.subr.bf16.mxu0 %v3629
        %3723 = vmatpush1.bf16.msra.mxu0 %v3628
        %3724 = vmatprep.subr.bf16.mxu0 %v3627
        %3725 = vmatpush1.bf16.msra.mxu0 %v3626
        %3726 = vmatprep.subr.bf16.mxu0 %v3625
        %3727 = vmatpush1.bf16.msra.mxu0 %v3624
        %3728 = vmatprep.subr.bf16.mxu0 %v3623
        %3729 = vmatpush1.bf16.msra.mxu0 %v3622
        %3730 = vmatprep.subr.bf16.mxu0 %v3621
        %3731 = vmatpush1.bf16.msra.mxu0 %v3620
        %3732 = vmatprep.subr.bf16.mxu0 %v3651
        %3733 = vmatpush2.bf16.msra.mxu0 %v3650
        %3734 = vmatprep.subr.bf16.mxu0 %v3649
        %3735 = vmatpush2.bf16.msra.mxu0 %v3648
        %3736 = vmatprep.subr.bf16.mxu0 %v3647
        %3737 = vmatpush2.bf16.msra.mxu0 %v3646
        %3738 = vmatprep.subr.bf16.mxu0 %v3645
        %3739 = vmatpush2.bf16.msra.mxu0 %v3644
        %3740 = vmatprep.subr.bf16.mxu0 %v3643
        %3741 = vmatpush2.bf16.msra.mxu0 %v3642
        %3742 = vmatprep.subr.bf16.mxu0 %v3641
        %3743 = vmatpush2.bf16.msra.mxu0 %v3640
        %3744 = vmatprep.subr.bf16.mxu0 %v3639
        %3745 = vmatpush2.bf16.msra.mxu0 %v3638
        %3746 = vmatprep.subr.bf16.mxu0 %v3637
        %3747 = vmatpush2.bf16.msra.mxu0 %v3636
        %3748 = vmatprep.mubr.bf16.mxu0 %v3373
        %3749 = vmatmul.mubr.bf16.gmra.mxu0 %v3372
        %v3750 = vpop.f32.mrf.mxu0
        %v3751 = vadd.f32 %v3471, %v3750
        %v3752 = vpop.f32.mrf.mxu0
        %v3753 = vadd.f32 %v3475, %v3752
        %v3754 = vpop.f32.mrf.mxu0
        %v3755 = vadd.f32 %v3471, %v3754
        %v3756 = vpop.f32.mrf.mxu0
        %v3757 = vadd.f32 %v3475, %v3756
        %3758 = vmatprep.mubr.bf16.mxu0 %v3376
        %3759 = vmatmul.mubr.bf16.gmra.mxu0 %v3375
        %v3760 = vpop.f32.mrf.mxu0
        %v3761 = vadd.f32 %v3471, %v3760
        %v3762 = vpop.f32.mrf.mxu0
        %v3763 = vadd.f32 %v3475, %v3762
        %v3764 = vpop.f32.mrf.mxu0
        %v3765 = vadd.f32 %v3471, %v3764
        %v3766 = vpop.f32.mrf.mxu0
        %v3767 = vadd.f32 %v3475, %v3766
        %3768 = vmatprep.mubr.bf16.mxu0 %v3379
        %3769 = vmatmul.mubr.bf16.gmra.mxu0 %v3378
        %v3770 = vpop.f32.mrf.mxu0
        %v3771 = vadd.f32 %v3471, %v3770
        %v3772 = vpop.f32.mrf.mxu0
        %v3773 = vadd.f32 %v3475, %v3772
        %v3774 = vpop.f32.mrf.mxu0
        %v3775 = vadd.f32 %v3471, %v3774
        %v3776 = vpop.f32.mrf.mxu0
        %v3777 = vadd.f32 %v3475, %v3776
        %3778 = vmatprep.mubr.bf16.mxu0 %v3382
        %3779 = vmatmul.mubr.bf16.gmra.mxu0 %v3381
        %v3780 = vpop.f32.mrf.mxu0
        %v3781 = vadd.f32 %v3471, %v3780
        %v3782 = vpop.f32.mrf.mxu0
        %v3783 = vadd.f32 %v3475, %v3782
        %v3784 = vpop.f32.mrf.mxu0
        %v3785 = vadd.f32 %v3471, %v3784
        %v3786 = vpop.f32.mrf.mxu0
        %v3787 = vadd.f32 %v3475, %v3786
        %3788 = vmatprep.mubr.bf16.mxu0 %v3385
        %3789 = vmatmul.mubr.bf16.gmra.mxu0 %v3384
        %v3790 = vpop.f32.mrf.mxu0
        %v3791 = vadd.f32 %v3471, %v3790
        %v3792 = vpop.f32.mrf.mxu0
        %v3793 = vadd.f32 %v3475, %v3792
        %v3794 = vpop.f32.mrf.mxu0
        %v3795 = vadd.f32 %v3471, %v3794
        %v3796 = vpop.f32.mrf.mxu0
        %v3797 = vadd.f32 %v3475, %v3796
        %3798 = vmatprep.mubr.bf16.mxu0 %v3388
        %3799 = vmatmul.mubr.bf16.gmra.mxu0 %v3387
        %v3800 = vpop.f32.mrf.mxu0
        %v3801 = vadd.f32 %v3471, %v3800
        %v3802 = vpop.f32.mrf.mxu0
        %v3803 = vadd.f32 %v3475, %v3802
        %v3804 = vpop.f32.mrf.mxu0
        %v3805 = vadd.f32 %v3471, %v3804
        %v3806 = vpop.f32.mrf.mxu0
        %v3807 = vadd.f32 %v3475, %v3806
        %3808 = vmatprep.mubr.bf16.mxu0 %v3391
        %3809 = vmatmul.mubr.bf16.gmra.mxu0 %v3390
        %v3810 = vpop.f32.mrf.mxu0
        %v3811 = vadd.f32 %v3471, %v3810
        %v3812 = vpop.f32.mrf.mxu0
        %v3813 = vadd.f32 %v3475, %v3812
        %v3814 = vpop.f32.mrf.mxu0
        %v3815 = vadd.f32 %v3471, %v3814
        %v3816 = vpop.f32.mrf.mxu0
        %v3817 = vadd.f32 %v3475, %v3816
        %3818 = vmatprep.mubr.bf16.mxu0 %v3394
        %3819 = vmatmul.mubr.bf16.gmra.mxu0 %v3393
        %v3820 = vpop.f32.mrf.mxu0
        %v3821 = vadd.f32 %v3471, %v3820
        %v3822 = vpop.f32.mrf.mxu0
        %v3823 = vadd.f32 %v3475, %v3822
        %v3824 = vpop.f32.mrf.mxu0
        %v3825 = vadd.f32 %v3471, %v3824
        %v3826 = vpop.f32.mrf.mxu0
        %v3827 = vadd.f32 %v3475, %v3826
        %3828 = vmatprep.mubr.bf16.mxu0 %v3397
        %3829 = vmatmul.mubr.bf16.gmra.mxu0 %v3396
        %v3830 = vpop.f32.mrf.mxu0
        %v3831 = vadd.f32 %v3471, %v3830
        %v3832 = vpop.f32.mrf.mxu0
        %v3833 = vadd.f32 %v3475, %v3832
        %v3834 = vpop.f32.mrf.mxu0
        %v3835 = vadd.f32 %v3471, %v3834
        %v3836 = vpop.f32.mrf.mxu0
        %v3837 = vadd.f32 %v3475, %v3836
        %3838 = vmatprep.mubr.bf16.mxu0 %v3400
        %3839 = vmatmul.mubr.bf16.gmra.mxu0 %v3399
        %v3840 = vpop.f32.mrf.mxu0
        %v3841 = vadd.f32 %v3471, %v3840
        %v3842 = vpop.f32.mrf.mxu0
        %v3843 = vadd.f32 %v3475, %v3842
        %v3844 = vpop.f32.mrf.mxu0
        %v3845 = vadd.f32 %v3471, %v3844
        %v3846 = vpop.f32.mrf.mxu0
        %v3847 = vadd.f32 %v3475, %v3846
        %3848 = vmatprep.mubr.bf16.mxu0 %v3403
        %3849 = vmatmul.mubr.bf16.gmra.mxu0 %v3402
        %v3850 = vpop.f32.mrf.mxu0
        %v3851 = vadd.f32 %v3471, %v3850
        %v3852 = vpop.f32.mrf.mxu0
        %v3853 = vadd.f32 %v3475, %v3852
        %v3854 = vpop.f32.mrf.mxu0
        %v3855 = vadd.f32 %v3471, %v3854
        %v3856 = vpop.f32.mrf.mxu0
        %v3857 = vadd.f32 %v3475, %v3856
        %3858 = vmatprep.mubr.bf16.mxu0 %v3406
        %3859 = vmatmul.mubr.bf16.gmra.mxu0 %v3405
        %v3860 = vpop.f32.mrf.mxu0
        %v3861 = vadd.f32 %v3471, %v3860
        %v3862 = vpop.f32.mrf.mxu0
        %v3863 = vadd.f32 %v3475, %v3862
        %v3864 = vpop.f32.mrf.mxu0
        %v3865 = vadd.f32 %v3471, %v3864
        %v3866 = vpop.f32.mrf.mxu0
        %v3867 = vadd.f32 %v3475, %v3866
        %3868 = vmatprep.mubr.bf16.mxu0 %v3409
        %3869 = vmatmul.mubr.bf16.gmra.mxu0 %v3408
        %v3870 = vpop.f32.mrf.mxu0
        %v3871 = vadd.f32 %v3471, %v3870
        %v3872 = vpop.f32.mrf.mxu0
        %v3873 = vadd.f32 %v3475, %v3872
        %v3874 = vpop.f32.mrf.mxu0
        %v3875 = vadd.f32 %v3471, %v3874
        %v3876 = vpop.f32.mrf.mxu0
        %v3877 = vadd.f32 %v3475, %v3876
        %3878 = vmatprep.mubr.bf16.mxu0 %v3412
        %3879 = vmatmul.mubr.bf16.gmra.mxu0 %v3411
        %v3880 = vpop.f32.mrf.mxu0
        %v3881 = vadd.f32 %v3471, %v3880
        %v3882 = vpop.f32.mrf.mxu0
        %v3883 = vadd.f32 %v3475, %v3882
        %v3884 = vpop.f32.mrf.mxu0
        %v3885 = vadd.f32 %v3471, %v3884
        %v3886 = vpop.f32.mrf.mxu0
        %v3887 = vadd.f32 %v3475, %v3886
        %3888 = vmatprep.mubr.bf16.mxu0 %v3415
        %3889 = vmatmul.mubr.bf16.gmra.mxu0 %v3414
        %v3890 = vpop.f32.mrf.mxu0
        %v3891 = vadd.f32 %v3471, %v3890
        %v3892 = vpop.f32.mrf.mxu0
        %v3893 = vadd.f32 %v3475, %v3892
        %v3894 = vpop.f32.mrf.mxu0
        %v3895 = vadd.f32 %v3471, %v3894
        %v3896 = vpop.f32.mrf.mxu0
        %v3897 = vadd.f32 %v3475, %v3896
        %3898 = vmatprep.mubr.bf16.mxu0 %v3418
        %3899 = vmatmul.mubr.bf16.gmra.mxu0 %v3417
        %v3900 = vpop.f32.mrf.mxu0
        %v3901 = vadd.f32 %v3471, %v3900
        %v3902 = vpop.f32.mrf.mxu0
        %v3903 = vadd.f32 %v3475, %v3902
        %v3904 = vpop.f32.mrf.mxu0
        %v3905 = vadd.f32 %v3471, %v3904
        %v3906 = vpop.f32.mrf.mxu0
        %v3907 = vadd.f32 %v3475, %v3906
        %3908 = vdwg.mxu0
        %3909 = vmatprep.subr.bf16.mxu0 %v3667
        %3910 = vmatpush1.bf16.msra.mxu0 %v3666
        %3911 = vmatprep.subr.bf16.mxu0 %v3665
        %3912 = vmatpush1.bf16.msra.mxu0 %v3664
        %3913 = vmatprep.subr.bf16.mxu0 %v3663
        %3914 = vmatpush1.bf16.msra.mxu0 %v3662
        %3915 = vmatprep.subr.bf16.mxu0 %v3661
        %3916 = vmatpush1.bf16.msra.mxu0 %v3660
        %3917 = vmatprep.subr.bf16.mxu0 %v3659
        %3918 = vmatpush1.bf16.msra.mxu0 %v3658
        %3919 = vmatprep.subr.bf16.mxu0 %v3657
        %3920 = vmatpush1.bf16.msra.mxu0 %v3656
        %3921 = vmatprep.subr.bf16.mxu0 %v3655
        %3922 = vmatpush1.bf16.msra.mxu0 %v3654
        %3923 = vmatprep.subr.bf16.mxu0 %v3653
        %3924 = vmatpush1.bf16.msra.mxu0 %v3652
        %3925 = vmatprep.subr.bf16.mxu0 0
        %3926 = vmatpush2.bf16.msra.mxu0 0
        %3927 = vmatprep.subr.bf16.mxu0 0
        %3928 = vmatpush2.bf16.msra.mxu0 0
        %3929 = vmatprep.subr.bf16.mxu0 0
        %3930 = vmatpush2.bf16.msra.mxu0 0
        %3931 = vmatprep.subr.bf16.mxu0 0
        %3932 = vmatpush2.bf16.msra.mxu0 0
        %3933 = vmatprep.subr.bf16.mxu0 0
        %3934 = vmatpush2.bf16.msra.mxu0 0
        %3935 = vmatprep.subr.bf16.mxu0 0
        %3936 = vmatpush2.bf16.msra.mxu0 0
        %3937 = vmatprep.subr.bf16.mxu0 0
        %3938 = vmatpush2.bf16.msra.mxu0 0
        %3939 = vmatprep.subr.bf16.mxu0 0
        %3940 = vmatpush2.bf16.msra.mxu0 0
        %3941 = vmatprep.mubr.bf16.mxu0 0
        %3942 = vmatmul.mubr.bf16.gmra.mxu0 %v3374
        %v3943 = vpop.f32.mrf.mxu0
        %v3944 = vadd.f32 %v3751, %v3943
        %v3945 = vpop.f32.mrf.mxu0
        %v3946 = vadd.f32 %v3753, %v3945
        %v3947 = vpop.f32.mrf.mxu0
        %v3948 = vadd.f32 %v3755, %v3947
        %v3949 = vpop.f32.mrf.mxu0
        %v3950 = vadd.f32 %v3757, %v3949
        %3951 = vmatprep.mubr.bf16.mxu0 0
        %3952 = vmatmul.mubr.bf16.gmra.mxu0 %v3377
        %v3953 = vpop.f32.mrf.mxu0
        %v3954 = vadd.f32 %v3761, %v3953
        %v3955 = vpop.f32.mrf.mxu0
        %v3956 = vadd.f32 %v3763, %v3955
        %v3957 = vpop.f32.mrf.mxu0
        %v3958 = vadd.f32 %v3765, %v3957
        %v3959 = vpop.f32.mrf.mxu0
        %v3960 = vadd.f32 %v3767, %v3959
        %3961 = vmatprep.mubr.bf16.mxu0 0
        %3962 = vmatmul.mubr.bf16.gmra.mxu0 %v3380
        %v3963 = vpop.f32.mrf.mxu0
        %v3964 = vadd.f32 %v3771, %v3963
        %v3965 = vpop.f32.mrf.mxu0
        %v3966 = vadd.f32 %v3773, %v3965
        %v3967 = vpop.f32.mrf.mxu0
        %v3968 = vadd.f32 %v3775, %v3967
        %v3969 = vpop.f32.mrf.mxu0
        %v3970 = vadd.f32 %v3777, %v3969
        %3971 = vmatprep.mubr.bf16.mxu0 0
        %3972 = vmatmul.mubr.bf16.gmra.mxu0 %v3383
        %v3973 = vpop.f32.mrf.mxu0
        %v3974 = vadd.f32 %v3781, %v3973
        %v3975 = vpop.f32.mrf.mxu0
        %v3976 = vadd.f32 %v3783, %v3975
        %v3977 = vpop.f32.mrf.mxu0
        %v3978 = vadd.f32 %v3785, %v3977
        %v3979 = vpop.f32.mrf.mxu0
        %v3980 = vadd.f32 %v3787, %v3979
        %3981 = vmatprep.mubr.bf16.mxu0 0
        %3982 = vmatmul.mubr.bf16.gmra.mxu0 %v3386
        %v3983 = vpop.f32.mrf.mxu0
        %v3984 = vadd.f32 %v3791, %v3983
        %v3985 = vpop.f32.mrf.mxu0
        %v3986 = vadd.f32 %v3793, %v3985
        %v3987 = vpop.f32.mrf.mxu0
        %v3988 = vadd.f32 %v3795, %v3987
        %v3989 = vpop.f32.mrf.mxu0
        %v3990 = vadd.f32 %v3797, %v3989
        %3991 = vmatprep.mubr.bf16.mxu0 0
        %3992 = vmatmul.mubr.bf16.gmra.mxu0 %v3389
        %v3993 = vpop.f32.mrf.mxu0
        %v3994 = vadd.f32 %v3801, %v3993
        %v3995 = vpop.f32.mrf.mxu0
        %v3996 = vadd.f32 %v3803, %v3995
        %v3997 = vpop.f32.mrf.mxu0
        %v3998 = vadd.f32 %v3805, %v3997
        %v3999 = vpop.f32.mrf.mxu0
        %v4000 = vadd.f32 %v3807, %v3999
        %4001 = vmatprep.mubr.bf16.mxu0 0
        %4002 = vmatmul.mubr.bf16.gmra.mxu0 %v3392
        %v4003 = vpop.f32.mrf.mxu0
        %v4004 = vadd.f32 %v3811, %v4003
        %v4005 = vpop.f32.mrf.mxu0
        %v4006 = vadd.f32 %v3813, %v4005
        %v4007 = vpop.f32.mrf.mxu0
        %v4008 = vadd.f32 %v3815, %v4007
        %v4009 = vpop.f32.mrf.mxu0
        %v4010 = vadd.f32 %v3817, %v4009
        %4011 = vmatprep.mubr.bf16.mxu0 0
        %4012 = vmatmul.mubr.bf16.gmra.mxu0 %v3395
        %v4013 = vpop.f32.mrf.mxu0
        %v4014 = vadd.f32 %v3821, %v4013
        %v4015 = vpop.f32.mrf.mxu0
        %v4016 = vadd.f32 %v3823, %v4015
        %v4017 = vpop.f32.mrf.mxu0
        %v4018 = vadd.f32 %v3825, %v4017
        %v4019 = vpop.f32.mrf.mxu0
        %v4020 = vadd.f32 %v3827, %v4019
        %4021 = vmatprep.mubr.bf16.mxu0 0
        %4022 = vmatmul.mubr.bf16.gmra.mxu0 %v3398
        %v4023 = vpop.f32.mrf.mxu0
        %v4024 = vadd.f32 %v3831, %v4023
        %v4025 = vpop.f32.mrf.mxu0
        %v4026 = vadd.f32 %v3833, %v4025
        %v4027 = vpop.f32.mrf.mxu0
        %v4028 = vadd.f32 %v3835, %v4027
        %v4029 = vpop.f32.mrf.mxu0
        %v4030 = vadd.f32 %v3837, %v4029
        %4031 = vmatprep.mubr.bf16.mxu0 0
        %4032 = vmatmul.mubr.bf16.gmra.mxu0 %v3401
        %v4033 = vpop.f32.mrf.mxu0
        %v4034 = vadd.f32 %v3841, %v4033
        %v4035 = vpop.f32.mrf.mxu0
        %v4036 = vadd.f32 %v3843, %v4035
        %v4037 = vpop.f32.mrf.mxu0
        %v4038 = vadd.f32 %v3845, %v4037
        %v4039 = vpop.f32.mrf.mxu0
        %v4040 = vadd.f32 %v3847, %v4039
        %4041 = vmatprep.mubr.bf16.mxu0 0
        %4042 = vmatmul.mubr.bf16.gmra.mxu0 %v3404
        %v4043 = vpop.f32.mrf.mxu0
        %v4044 = vadd.f32 %v3851, %v4043
        %v4045 = vpop.f32.mrf.mxu0
        %v4046 = vadd.f32 %v3853, %v4045
        %v4047 = vpop.f32.mrf.mxu0
        %v4048 = vadd.f32 %v3855, %v4047
        %v4049 = vpop.f32.mrf.mxu0
        %v4050 = vadd.f32 %v3857, %v4049
        %4051 = vmatprep.mubr.bf16.mxu0 0
        %4052 = vmatmul.mubr.bf16.gmra.mxu0 %v3407
        %v4053 = vpop.f32.mrf.mxu0
        %v4054 = vadd.f32 %v3861, %v4053
        %v4055 = vpop.f32.mrf.mxu0
        %v4056 = vadd.f32 %v3863, %v4055
        %v4057 = vpop.f32.mrf.mxu0
        %v4058 = vadd.f32 %v3865, %v4057
        %v4059 = vpop.f32.mrf.mxu0
        %v4060 = vadd.f32 %v3867, %v4059
        %4061 = vmatprep.mubr.bf16.mxu0 0
        %4062 = vmatmul.mubr.bf16.gmra.mxu0 %v3410
        %v4063 = vpop.f32.mrf.mxu0
        %v4064 = vadd.f32 %v3871, %v4063
        %v4065 = vpop.f32.mrf.mxu0
        %v4066 = vadd.f32 %v3873, %v4065
        %v4067 = vpop.f32.mrf.mxu0
        %v4068 = vadd.f32 %v3875, %v4067
        %v4069 = vpop.f32.mrf.mxu0
        %v4070 = vadd.f32 %v3877, %v4069
        %4071 = vmatprep.mubr.bf16.mxu0 0
        %4072 = vmatmul.mubr.bf16.gmra.mxu0 %v3413
        %v4073 = vpop.f32.mrf.mxu0
        %v4074 = vadd.f32 %v3881, %v4073
        %v4075 = vpop.f32.mrf.mxu0
        %v4076 = vadd.f32 %v3883, %v4075
        %v4077 = vpop.f32.mrf.mxu0
        %v4078 = vadd.f32 %v3885, %v4077
        %v4079 = vpop.f32.mrf.mxu0
        %v4080 = vadd.f32 %v3887, %v4079
        %4081 = vmatprep.mubr.bf16.mxu0 0
        %4082 = vmatmul.mubr.bf16.gmra.mxu0 %v3416
        %v4083 = vpop.f32.mrf.mxu0
        %v4084 = vadd.f32 %v3891, %v4083
        %v4085 = vpop.f32.mrf.mxu0
        %v4086 = vadd.f32 %v3893, %v4085
        %v4087 = vpop.f32.mrf.mxu0
        %v4088 = vadd.f32 %v3895, %v4087
        %v4089 = vpop.f32.mrf.mxu0
        %v4090 = vadd.f32 %v3897, %v4089
        %4091 = vmatprep.mubr.bf16.mxu0 0
        %4092 = vmatmul.mubr.bf16.gmra.mxu0 %v3419
        %v4093 = vpop.f32.mrf.mxu0
        %v4094 = vadd.f32 %v3901, %v4093
        %v4095 = vpop.f32.mrf.mxu0
        %v4096 = vadd.f32 %v3903, %v4095
        %v4097 = vpop.f32.mrf.mxu0
        %v4098 = vadd.f32 %v3905, %v4097
        %v4099 = vpop.f32.mrf.mxu0
        %v4100 = vadd.f32 %v3907, %v4099
        %4101 = vdwg.mxu0
        %v4102 = vmax.f32 %v3944, 0.0
        %v4103 = vmax.f32 %v3946, 0.0
        %v4104 = vmax.f32 %v3948, 0.0
        %v4105 = vmax.f32 %v3950, 0.0
        %v4106 = vmax.f32 %v3954, 0.0
        %v4107 = vmax.f32 %v3956, 0.0
        %v4108 = vmax.f32 %v3958, 0.0
        %v4109 = vmax.f32 %v3960, 0.0
        %v4110 = vmax.f32 %v3964, 0.0
        %v4111 = vmax.f32 %v3966, 0.0
        %v4112 = vmax.f32 %v3968, 0.0
        %v4113 = vmax.f32 %v3970, 0.0
        %v4114 = vmax.f32 %v3974, 0.0
        %v4115 = vmax.f32 %v3976, 0.0
        %v4116 = vmax.f32 %v3978, 0.0
        %v4117 = vmax.f32 %v3980, 0.0
        %v4118 = vmax.f32 %v3984, 0.0
        %v4119 = vmax.f32 %v3986, 0.0
        %v4120 = vmax.f32 %v3988, 0.0
        %v4121 = vmax.f32 %v3990, 0.0
        %v4122 = vmax.f32 %v3994, 0.0
        %v4123 = vmax.f32 %v3996, 0.0
        %v4124 = vmax.f32 %v3998, 0.0
        %v4125 = vmax.f32 %v4000, 0.0
        %v4126 = vmax.f32 %v4004, 0.0
        %v4127 = vmax.f32 %v4006, 0.0
        %v4128 = vmax.f32 %v4008, 0.0
        %v4129 = vmax.f32 %v4010, 0.0
        %v4130 = vmax.f32 %v4014, 0.0
        %v4131 = vmax.f32 %v4016, 0.0
        %v4132 = vmax.f32 %v4018, 0.0
        %v4133 = vmax.f32 %v4020, 0.0
        %v4134 = vmax.f32 %v4024, 0.0
        %v4135 = vmax.f32 %v4026, 0.0
        %v4136 = vmax.f32 %v4028, 0.0
        %v4137 = vmax.f32 %v4030, 0.0
        %v4138 = vmax.f32 %v4034, 0.0
        %v4139 = vmax.f32 %v4036, 0.0
        %v4140 = vmax.f32 %v4038, 0.0
        %v4141 = vmax.f32 %v4040, 0.0
        %v4142 = vmax.f32 %v4044, 0.0
        %v4143 = vmax.f32 %v4046, 0.0
        %v4144 = vmax.f32 %v4048, 0.0
        %v4145 = vmax.f32 %v4050, 0.0
        %v4146 = vmax.f32 %v4054, 0.0
        %v4147 = vmax.f32 %v4056, 0.0
        %v4148 = vmax.f32 %v4058, 0.0
        %v4149 = vmax.f32 %v4060, 0.0
        %v4150 = vmax.f32 %v4064, 0.0
        %v4151 = vmax.f32 %v4066, 0.0
        %v4152 = vmax.f32 %v4068, 0.0
        %v4153 = vmax.f32 %v4070, 0.0
        %v4154 = vmax.f32 %v4074, 0.0
        %v4155 = vmax.f32 %v4076, 0.0
        %v4156 = vmax.f32 %v4078, 0.0
        %v4157 = vmax.f32 %v4080, 0.0
        %v4158 = vmax.f32 %v4084, 0.0
        %v4159 = vmax.f32 %v4086, 0.0
        %v4160 = vmax.f32 %v4088, 0.0
        %v4161 = vmax.f32 %v4090, 0.0
        %v4162 = vmax.f32 %v4094, 0.0
        %v4163 = vmax.f32 %v4096, 0.0
        %v4164 = vmax.f32 %v4098, 0.0
        %v4165 = vmax.f32 %v4100, 0.0
        %v4166 = vpack.c.bf16 %v4104, %v4102
        %v4167 = vpack.c.bf16 %v4105, %v4103
        %v4168 = vpack.c.bf16 %v4108, %v4106
        %v4169 = vpack.c.bf16 %v4109, %v4107
        %v4170 = vpack.c.bf16 %v4112, %v4110
        %v4171 = vpack.c.bf16 %v4113, %v4111
        %v4172 = vpack.c.bf16 %v4116, %v4114
        %v4173 = vpack.c.bf16 %v4117, %v4115
        %v4174 = vpack.c.bf16 %v4120, %v4118
        %v4175 = vpack.c.bf16 %v4121, %v4119
        %v4176 = vpack.c.bf16 %v4124, %v4122
        %v4177 = vpack.c.bf16 %v4125, %v4123
        %v4178 = vpack.c.bf16 %v4128, %v4126
        %v4179 = vpack.c.bf16 %v4129, %v4127
        %v4180 = vpack.c.bf16 %v4132, %v4130
        %v4181 = vpack.c.bf16 %v4133, %v4131
        %v4182 = vpack.c.bf16 %v4136, %v4134
        %v4183 = vpack.c.bf16 %v4137, %v4135
        %v4184 = vpack.c.bf16 %v4140, %v4138
        %v4185 = vpack.c.bf16 %v4141, %v4139
        %v4186 = vpack.c.bf16 %v4144, %v4142
        %v4187 = vpack.c.bf16 %v4145, %v4143
        %v4188 = vpack.c.bf16 %v4148, %v4146
        %v4189 = vpack.c.bf16 %v4149, %v4147
        %v4190 = vpack.c.bf16 %v4152, %v4150
        %v4191 = vpack.c.bf16 %v4153, %v4151
        %v4192 = vpack.c.bf16 %v4156, %v4154
        %v4193 = vpack.c.bf16 %v4157, %v4155
        %v4194 = vpack.c.bf16 %v4160, %v4158
        %v4195 = vpack.c.bf16 %v4161, %v4159
        %v4196 = vpack.c.bf16 %v4164, %v4162
        %v4197 = vpack.c.bf16 %v4165, %v4163
        %v4198 = vld [vmem:[#allocation16] sm:$0xf]
        %v4199 = vld [vmem:[#allocation16 + $0x4] sm:$0xf]
        %v4200 = vld [vmem:[#allocation16 + $0x8] sm:$0xf]
        %v4201 = vld [vmem:[#allocation16 + $0xc] sm:$0xf]
        %v4202 = vld [vmem:[#allocation16 + $0x10] sm:$0xf]
        %v4203 = vld [vmem:[#allocation16 + $0x14] sm:$0xf]
        %v4204 = vld [vmem:[#allocation16 + $0x18] sm:$0xf]
        %v4205 = vld [vmem:[#allocation16 + $0x1c] sm:$0xf]
        %v4206 = vld [vmem:[#allocation16 + $0x20] sm:$0xf]
        %v4207 = vld [vmem:[#allocation16 + $0x24] sm:$0xf]
        %v4208 = vld [vmem:[#allocation16 + $0x28] sm:$0xf]
        %v4209 = vld [vmem:[#allocation16 + $0x2c] sm:$0xf]
        %v4210 = vld [vmem:[#allocation16 + $0x30] sm:$0xf]
        %v4211 = vld [vmem:[#allocation16 + $0x34] sm:$0xf]
        %v4212 = vld [vmem:[#allocation16 + $0x38] sm:$0xf]
        %v4213 = vld [vmem:[#allocation16 + $0x3c] sm:$0xf]
        %v4214 = vld [vmem:[#allocation16 + $0x40] sm:$0xf]
        %v4215 = vld [vmem:[#allocation16 + $0x44] sm:$0xf]
        %v4216 = vld [vmem:[#allocation16 + $0x48] sm:$0xf]
        %v4217 = vld [vmem:[#allocation16 + $0x4c] sm:$0xf]
        %v4218 = vld [vmem:[#allocation16 + $0x50] sm:$0xf]
        %v4219 = vld [vmem:[#allocation16 + $0x54] sm:$0xf]
        %v4220 = vld [vmem:[#allocation16 + $0x58] sm:$0xf]
        %v4221 = vld [vmem:[#allocation16 + $0x5c] sm:$0xf]
        %v4222 = vld [vmem:[#allocation16 + $0x60] sm:$0xf]
        %v4223 = vld [vmem:[#allocation16 + $0x64] sm:$0xf]
        %v4224 = vld [vmem:[#allocation16 + $0x68] sm:$0xf]
        %v4225 = vld [vmem:[#allocation16 + $0x6c] sm:$0xf]
        %v4226 = vld [vmem:[#allocation16 + $0x70] sm:$0xf]
        %v4227 = vld [vmem:[#allocation16 + $0x74] sm:$0xf]
        %v4228 = vld [vmem:[#allocation16 + $0x78] sm:$0xf]
        %v4229 = vld [vmem:[#allocation16 + $0x7c] sm:$0xf]
        %v4230 = vlaneseq
        %v4231 = vshrl.u32 %v4230, 7
        %v4232 = vsub.s32 6, %v4231
        %v4233 = vrot.slane %v585, %v4232
        %v4266 = vunpack.c.l.b16 %v4198
        %v4267 = vunpack.c.l.b16 %v4199
        %v4268 = vunpack.c.l.b16 %v4200
        %v4269 = vunpack.c.l.b16 %v4201
        %v4270 = vunpack.c.l.b16 %v4202
        %v4271 = vunpack.c.l.b16 %v4203
        %v4272 = vunpack.c.l.b16 %v4204
        %v4273 = vunpack.c.l.b16 %v4205
        %v4274 = vunpack.c.l.b16 %v4206
        %v4275 = vunpack.c.l.b16 %v4207
        %v4276 = vunpack.c.l.b16 %v4208
        %v4277 = vunpack.c.l.b16 %v4209
        %v4278 = vunpack.c.l.b16 %v4210
        %v4279 = vunpack.c.l.b16 %v4211
        %v4280 = vunpack.c.l.b16 %v4212
        %v4281 = vunpack.c.l.b16 %v4213
        %v4282 = vunpack.c.l.b16 %v4214
        %v4283 = vunpack.c.l.b16 %v4215
        %v4284 = vunpack.c.l.b16 %v4216
        %v4285 = vunpack.c.l.b16 %v4217
        %v4286 = vunpack.c.l.b16 %v4218
        %v4287 = vunpack.c.l.b16 %v4219
        %v4288 = vunpack.c.l.b16 %v4220
        %v4289 = vunpack.c.l.b16 %v4221
        %v4290 = vunpack.c.l.b16 %v4222
        %v4291 = vunpack.c.l.b16 %v4223
        %v4292 = vunpack.c.l.b16 %v4224
        %v4293 = vunpack.c.l.b16 %v4225
        %v4294 = vunpack.c.l.b16 %v4226
        %v4295 = vunpack.c.l.b16 %v4227
        %v4296 = vunpack.c.l.b16 %v4228
        %v4297 = vunpack.c.l.b16 %v4229
        %v4298 = vpack.c.b16 %v4267, %v4266
        %v4299 = vpack.c.b16 %v4269, %v4268
        %v4300 = vpack.c.b16 %v4271, %v4270
        %v4301 = vpack.c.b16 %v4273, %v4272
        %v4302 = vpack.c.b16 %v4275, %v4274
        %v4303 = vpack.c.b16 %v4277, %v4276
        %v4304 = vpack.c.b16 %v4279, %v4278
        %v4305 = vpack.c.b16 %v4281, %v4280
        %v4306 = vpack.c.b16 %v4283, %v4282
        %v4307 = vpack.c.b16 %v4285, %v4284
        %v4308 = vpack.c.b16 %v4287, %v4286
        %v4309 = vpack.c.b16 %v4289, %v4288
        %v4310 = vpack.c.b16 %v4291, %v4290
        %v4311 = vpack.c.b16 %v4293, %v4292
        %v4312 = vpack.c.b16 %v4295, %v4294
        %v4313 = vpack.c.b16 %v4297, %v4296
        %4330 = vmatprep.subr.bf16.mxu0 0
        %4331 = vmatpush1.bf16.msra.mxu0 %v4305
        %4332 = vmatprep.subr.bf16.mxu0 0
        %4333 = vmatpush1.bf16.msra.mxu0 %v4304
        %4334 = vmatprep.subr.bf16.mxu0 0
        %4335 = vmatpush1.bf16.msra.mxu0 %v4303
        %4336 = vmatprep.subr.bf16.mxu0 0
        %4337 = vmatpush1.bf16.msra.mxu0 %v4302
        %4338 = vmatprep.subr.bf16.mxu0 0
        %4339 = vmatpush1.bf16.msra.mxu0 %v4301
        %4340 = vmatprep.subr.bf16.mxu0 0
        %4341 = vmatpush1.bf16.msra.mxu0 %v4300
        %4342 = vmatprep.subr.bf16.mxu0 0
        %4343 = vmatpush1.bf16.msra.mxu0 %v4299
        %4344 = vmatprep.subr.bf16.mxu0 0
        %4345 = vmatpush1.bf16.msra.mxu0 %v4298
        %4346 = vmatprep.subr.bf16.mxu0 0
        %4347 = vmatpush2.bf16.msra.mxu0 %v4313
        %4348 = vmatprep.subr.bf16.mxu0 0
        %4349 = vmatpush2.bf16.msra.mxu0 %v4312
        %4350 = vmatprep.subr.bf16.mxu0 0
        %4351 = vmatpush2.bf16.msra.mxu0 %v4311
        %4352 = vmatprep.subr.bf16.mxu0 0
        %4353 = vmatpush2.bf16.msra.mxu0 %v4310
        %4354 = vmatprep.subr.bf16.mxu0 0
        %4355 = vmatpush2.bf16.msra.mxu0 %v4309
        %4356 = vmatprep.subr.bf16.mxu0 0
        %4357 = vmatpush2.bf16.msra.mxu0 %v4308
        %4358 = vmatprep.subr.bf16.mxu0 0
        %4359 = vmatpush2.bf16.msra.mxu0 %v4307
        %4360 = vmatprep.subr.bf16.mxu0 0
        %4361 = vmatpush2.bf16.msra.mxu0 %v4306
        %4362 = vmatprep.mubr.bf16.mxu0 %v4167
        %4363 = vmatmul.mubr.bf16.gmra.mxu0 %v4166
        %v4364 = vpop.f32.mrf.mxu0
        %v4365 = vadd.f32 %v4233, %v4364
        %v4366 = vpop.f32.mrf.mxu0
        %v4367 = vpop.f32.mrf.mxu0
        %v4368 = vadd.f32 %v4233, %v4367
        %v4369 = vpop.f32.mrf.mxu0
        %4370 = vmatprep.mubr.bf16.mxu0 %v4169
        %4371 = vmatmul.mubr.bf16.gmra.mxu0 %v4168
        %v4372 = vpop.f32.mrf.mxu0
        %v4373 = vadd.f32 %v4233, %v4372
        %v4374 = vpop.f32.mrf.mxu0
        %v4375 = vpop.f32.mrf.mxu0
        %v4376 = vadd.f32 %v4233, %v4375
        %v4377 = vpop.f32.mrf.mxu0
        %4378 = vmatprep.mubr.bf16.mxu0 %v4171
        %4379 = vmatmul.mubr.bf16.gmra.mxu0 %v4170
        %v4380 = vpop.f32.mrf.mxu0
        %v4381 = vadd.f32 %v4233, %v4380
        %v4382 = vpop.f32.mrf.mxu0
        %v4383 = vpop.f32.mrf.mxu0
        %v4384 = vadd.f32 %v4233, %v4383
        %v4385 = vpop.f32.mrf.mxu0
        %4386 = vmatprep.mubr.bf16.mxu0 %v4173
        %4387 = vmatmul.mubr.bf16.gmra.mxu0 %v4172
        %v4388 = vpop.f32.mrf.mxu0
        %v4389 = vadd.f32 %v4233, %v4388
        %v4390 = vpop.f32.mrf.mxu0
        %v4391 = vpop.f32.mrf.mxu0
        %v4392 = vadd.f32 %v4233, %v4391
        %v4393 = vpop.f32.mrf.mxu0
        %4394 = vmatprep.mubr.bf16.mxu0 %v4175
        %4395 = vmatmul.mubr.bf16.gmra.mxu0 %v4174
        %v4396 = vpop.f32.mrf.mxu0
        %v4397 = vadd.f32 %v4233, %v4396
        %v4398 = vpop.f32.mrf.mxu0
        %v4399 = vpop.f32.mrf.mxu0
        %v4400 = vadd.f32 %v4233, %v4399
        %v4401 = vpop.f32.mrf.mxu0
        %4402 = vmatprep.mubr.bf16.mxu0 %v4177
        %4403 = vmatmul.mubr.bf16.gmra.mxu0 %v4176
        %v4404 = vpop.f32.mrf.mxu0
        %v4405 = vadd.f32 %v4233, %v4404
        %v4406 = vpop.f32.mrf.mxu0
        %v4407 = vpop.f32.mrf.mxu0
        %v4408 = vadd.f32 %v4233, %v4407
        %v4409 = vpop.f32.mrf.mxu0
        %4410 = vmatprep.mubr.bf16.mxu0 %v4179
        %4411 = vmatmul.mubr.bf16.gmra.mxu0 %v4178
        %v4412 = vpop.f32.mrf.mxu0
        %v4413 = vadd.f32 %v4233, %v4412
        %v4414 = vpop.f32.mrf.mxu0
        %v4415 = vpop.f32.mrf.mxu0
        %v4416 = vadd.f32 %v4233, %v4415
        %v4417 = vpop.f32.mrf.mxu0
        %4418 = vmatprep.mubr.bf16.mxu0 %v4181
        %4419 = vmatmul.mubr.bf16.gmra.mxu0 %v4180
        %v4420 = vpop.f32.mrf.mxu0
        %v4421 = vadd.f32 %v4233, %v4420
        %v4422 = vpop.f32.mrf.mxu0
        %v4423 = vpop.f32.mrf.mxu0
        %v4424 = vadd.f32 %v4233, %v4423
        %v4425 = vpop.f32.mrf.mxu0
        %4426 = vmatprep.mubr.bf16.mxu0 %v4183
        %4427 = vmatmul.mubr.bf16.gmra.mxu0 %v4182
        %v4428 = vpop.f32.mrf.mxu0
        %v4429 = vadd.f32 %v4233, %v4428
        %v4430 = vpop.f32.mrf.mxu0
        %v4431 = vpop.f32.mrf.mxu0
        %v4432 = vadd.f32 %v4233, %v4431
        %v4433 = vpop.f32.mrf.mxu0
        %4434 = vmatprep.mubr.bf16.mxu0 %v4185
        %4435 = vmatmul.mubr.bf16.gmra.mxu0 %v4184
        %v4436 = vpop.f32.mrf.mxu0
        %v4437 = vadd.f32 %v4233, %v4436
        %v4438 = vpop.f32.mrf.mxu0
        %v4439 = vpop.f32.mrf.mxu0
        %v4440 = vadd.f32 %v4233, %v4439
        %v4441 = vpop.f32.mrf.mxu0
        %4442 = vmatprep.mubr.bf16.mxu0 %v4187
        %4443 = vmatmul.mubr.bf16.gmra.mxu0 %v4186
        %v4444 = vpop.f32.mrf.mxu0
        %v4445 = vadd.f32 %v4233, %v4444
        %v4446 = vpop.f32.mrf.mxu0
        %v4447 = vpop.f32.mrf.mxu0
        %v4448 = vadd.f32 %v4233, %v4447
        %v4449 = vpop.f32.mrf.mxu0
        %4450 = vmatprep.mubr.bf16.mxu0 %v4189
        %4451 = vmatmul.mubr.bf16.gmra.mxu0 %v4188
        %v4452 = vpop.f32.mrf.mxu0
        %v4453 = vadd.f32 %v4233, %v4452
        %v4454 = vpop.f32.mrf.mxu0
        %v4455 = vpop.f32.mrf.mxu0
        %v4456 = vadd.f32 %v4233, %v4455
        %v4457 = vpop.f32.mrf.mxu0
        %4458 = vmatprep.mubr.bf16.mxu0 %v4191
        %4459 = vmatmul.mubr.bf16.gmra.mxu0 %v4190
        %v4460 = vpop.f32.mrf.mxu0
        %v4461 = vadd.f32 %v4233, %v4460
        %v4462 = vpop.f32.mrf.mxu0
        %v4463 = vpop.f32.mrf.mxu0
        %v4464 = vadd.f32 %v4233, %v4463
        %v4465 = vpop.f32.mrf.mxu0
        %4466 = vmatprep.mubr.bf16.mxu0 %v4193
        %4467 = vmatmul.mubr.bf16.gmra.mxu0 %v4192
        %v4468 = vpop.f32.mrf.mxu0
        %v4469 = vadd.f32 %v4233, %v4468
        %v4470 = vpop.f32.mrf.mxu0
        %v4471 = vpop.f32.mrf.mxu0
        %v4472 = vadd.f32 %v4233, %v4471
        %v4473 = vpop.f32.mrf.mxu0
        %4474 = vmatprep.mubr.bf16.mxu0 %v4195
        %4475 = vmatmul.mubr.bf16.gmra.mxu0 %v4194
        %v4476 = vpop.f32.mrf.mxu0
        %v4477 = vadd.f32 %v4233, %v4476
        %v4478 = vpop.f32.mrf.mxu0
        %v4479 = vpop.f32.mrf.mxu0
        %v4480 = vadd.f32 %v4233, %v4479
        %v4481 = vpop.f32.mrf.mxu0
        %4482 = vmatprep.mubr.bf16.mxu0 %v4197
        %4483 = vmatmul.mubr.bf16.gmra.mxu0 %v4196
        %v4484 = vpop.f32.mrf.mxu0
        %v4485 = vadd.f32 %v4233, %v4484
        %v4486 = vpop.f32.mrf.mxu0
        %v4487 = vpop.f32.mrf.mxu0
        %v4488 = vadd.f32 %v4233, %v4487
        %v4489 = vpop.f32.mrf.mxu0
        %4490 = vdwg.mxu0
        %v4491 = vmax.f32 %v4365, 0.0
        %v4492 = vmax.f32 %v4368, 0.0
        %v4493 = vmax.f32 %v4373, 0.0
        %v4494 = vmax.f32 %v4376, 0.0
        %v4495 = vmax.f32 %v4381, 0.0
        %v4496 = vmax.f32 %v4384, 0.0
        %v4497 = vmax.f32 %v4389, 0.0
        %v4498 = vmax.f32 %v4392, 0.0
        %v4499 = vmax.f32 %v4397, 0.0
        %v4500 = vmax.f32 %v4400, 0.0
        %v4501 = vmax.f32 %v4405, 0.0
        %v4502 = vmax.f32 %v4408, 0.0
        %v4503 = vmax.f32 %v4413, 0.0
        %v4504 = vmax.f32 %v4416, 0.0
        %v4505 = vmax.f32 %v4421, 0.0
        %v4506 = vmax.f32 %v4424, 0.0
        %v4507 = vmax.f32 %v4429, 0.0
        %v4508 = vmax.f32 %v4432, 0.0
        %v4509 = vmax.f32 %v4437, 0.0
        %v4510 = vmax.f32 %v4440, 0.0
        %v4511 = vmax.f32 %v4445, 0.0
        %v4512 = vmax.f32 %v4448, 0.0
        %v4513 = vmax.f32 %v4453, 0.0
        %v4514 = vmax.f32 %v4456, 0.0
        %v4515 = vmax.f32 %v4461, 0.0
        %v4516 = vmax.f32 %v4464, 0.0
        %v4517 = vmax.f32 %v4469, 0.0
        %v4518 = vmax.f32 %v4472, 0.0
        %v4519 = vmax.f32 %v4477, 0.0
        %v4520 = vmax.f32 %v4480, 0.0
        %v4521 = vmax.f32 %v4485, 0.0
        %v4522 = vmax.f32 %v4488, 0.0
        %v4523 = vpack.c.bf16 %v4492, %v4491
        %v4524 = vpack.c.bf16 %v4494, %v4493
        %v4525 = vpack.c.bf16 %v4496, %v4495
        %v4526 = vpack.c.bf16 %v4498, %v4497
        %v4527 = vpack.c.bf16 %v4500, %v4499
        %v4528 = vpack.c.bf16 %v4502, %v4501
        %v4529 = vpack.c.bf16 %v4504, %v4503
        %v4530 = vpack.c.bf16 %v4506, %v4505
        %v4531 = vpack.c.bf16 %v4508, %v4507
        %v4532 = vpack.c.bf16 %v4510, %v4509
        %v4533 = vpack.c.bf16 %v4512, %v4511
        %v4534 = vpack.c.bf16 %v4514, %v4513
        %v4535 = vpack.c.bf16 %v4516, %v4515
        %v4536 = vpack.c.bf16 %v4518, %v4517
        %v4537 = vpack.c.bf16 %v4520, %v4519
        %v4538 = vpack.c.bf16 %v4522, %v4521
        %v4539 = vld [vmem:[#allocation17] sm:$0xf]
        %v4540 = vld [vmem:[#allocation17 + $0x4] sm:$0xf]
        %v4541 = vld [vmem:[#allocation17 + $0x8] sm:$0xf]
        %v4542 = vld [vmem:[#allocation17 + $0xc] sm:$0xf]
        %v4543 = vld [vmem:[#allocation17 + $0x10] sm:$0xf]
        %v4544 = vld [vmem:[#allocation17 + $0x14] sm:$0xf]
        %v4545 = vld [vmem:[#allocation17 + $0x18] sm:$0xf]
        %v4546 = vld [vmem:[#allocation17 + $0x1c] sm:$0xf]
        %v4547 = vld [vmem:[#allocation17 + $0x20] sm:$0xf]
        %v4548 = vld [vmem:[#allocation17 + $0x24] sm:$0xf]
        %v4549 = vld [vmem:[#allocation17 + $0x28] sm:$0xf]
        %v4550 = vld [vmem:[#allocation17 + $0x2c] sm:$0xf]
        %v4551 = vld [vmem:[#allocation17 + $0x30] sm:$0xf]
        %v4552 = vld [vmem:[#allocation17 + $0x34] sm:$0xf]
        %v4553 = vld [vmem:[#allocation17 + $0x38] sm:$0xf]
        %v4554 = vld [vmem:[#allocation17 + $0x3c] sm:$0xf]
        %v4555 = vlaneseq
        %v4556 = vshrl.u32 %v4555, 7
        %v4557 = vsub.s32 7, %v4556
        %v4558 = vrot.slane %v585, %v4557
        %v4575 = vunpack.c.l.b16 %v4539
        %v4576 = vunpack.c.l.b16 %v4540
        %v4577 = vunpack.c.l.b16 %v4541
        %v4578 = vunpack.c.l.b16 %v4542
        %v4579 = vunpack.c.l.b16 %v4543
        %v4580 = vunpack.c.l.b16 %v4544
        %v4581 = vunpack.c.l.b16 %v4545
        %v4582 = vunpack.c.l.b16 %v4546
        %v4583 = vunpack.c.l.b16 %v4547
        %v4584 = vunpack.c.l.b16 %v4548
        %v4585 = vunpack.c.l.b16 %v4549
        %v4586 = vunpack.c.l.b16 %v4550
        %v4587 = vunpack.c.l.b16 %v4551
        %v4588 = vunpack.c.l.b16 %v4552
        %v4589 = vunpack.c.l.b16 %v4553
        %v4590 = vunpack.c.l.b16 %v4554
        %v4591 = vpack.c.b16 %v4576, %v4575
        %v4592 = vpack.c.b16 %v4578, %v4577
        %v4593 = vpack.c.b16 %v4580, %v4579
        %v4594 = vpack.c.b16 %v4582, %v4581
        %v4595 = vpack.c.b16 %v4584, %v4583
        %v4596 = vpack.c.b16 %v4586, %v4585
        %v4597 = vpack.c.b16 %v4588, %v4587
        %v4598 = vpack.c.b16 %v4590, %v4589
        %4607 = vmatprep.subr.bf16.mxu0 0
        %4608 = vmatpush1.bf16.msra.mxu0 %v4598
        %4609 = vmatprep.subr.bf16.mxu0 0
        %4610 = vmatpush1.bf16.msra.mxu0 %v4597
        %4611 = vmatprep.subr.bf16.mxu0 0
        %4612 = vmatpush1.bf16.msra.mxu0 %v4596
        %4613 = vmatprep.subr.bf16.mxu0 0
        %4614 = vmatpush1.bf16.msra.mxu0 %v4595
        %4615 = vmatprep.subr.bf16.mxu0 0
        %4616 = vmatpush1.bf16.msra.mxu0 %v4594
        %4617 = vmatprep.subr.bf16.mxu0 0
        %4618 = vmatpush1.bf16.msra.mxu0 %v4593
        %4619 = vmatprep.subr.bf16.mxu0 0
        %4620 = vmatpush1.bf16.msra.mxu0 %v4592
        %4621 = vmatprep.subr.bf16.mxu0 0
        %4622 = vmatpush1.bf16.msra.mxu0 %v4591
        %4623 = vmatprep.subr.bf16.mxu0 0
        %4624 = vmatpush2.bf16.msra.mxu0 0
        %4625 = vmatprep.subr.bf16.mxu0 0
        %4626 = vmatpush2.bf16.msra.mxu0 0
        %4627 = vmatprep.subr.bf16.mxu0 0
        %4628 = vmatpush2.bf16.msra.mxu0 0
        %4629 = vmatprep.subr.bf16.mxu0 0
        %4630 = vmatpush2.bf16.msra.mxu0 0
        %4631 = vmatprep.subr.bf16.mxu0 0
        %4632 = vmatpush2.bf16.msra.mxu0 0
        %4633 = vmatprep.subr.bf16.mxu0 0
        %4634 = vmatpush2.bf16.msra.mxu0 0
        %4635 = vmatprep.subr.bf16.mxu0 0
        %4636 = vmatpush2.bf16.msra.mxu0 0
        %4637 = vmatprep.subr.bf16.mxu0 0
        %4638 = vmatpush2.bf16.msra.mxu0 0
        %4639 = vmatprep.mubr.bf16.mxu0 0
        %4640 = vmatmul.mubr.bf16.gmra.mxu0 %v4523
        %v4641 = vpop.f32.mrf.mxu0
        %v4642 = vadd.f32 %v4558, %v4641
        %v4643 = vpop.f32.mrf.mxu0
        %v4644 = vpop.f32.mrf.mxu0
        %v4645 = vadd.f32 %v4558, %v4644
        %v4646 = vpop.f32.mrf.mxu0
        %4647 = vmatprep.mubr.bf16.mxu0 0
        %4648 = vmatmul.mubr.bf16.gmra.mxu0 %v4524
        %v4649 = vpop.f32.mrf.mxu0
        %v4650 = vadd.f32 %v4558, %v4649
        %v4651 = vpop.f32.mrf.mxu0
        %v4652 = vpop.f32.mrf.mxu0
        %v4653 = vadd.f32 %v4558, %v4652
        %v4654 = vpop.f32.mrf.mxu0
        %4655 = vmatprep.mubr.bf16.mxu0 0
        %4656 = vmatmul.mubr.bf16.gmra.mxu0 %v4525
        %v4657 = vpop.f32.mrf.mxu0
        %v4658 = vadd.f32 %v4558, %v4657
        %v4659 = vpop.f32.mrf.mxu0
        %v4660 = vpop.f32.mrf.mxu0
        %v4661 = vadd.f32 %v4558, %v4660
        %v4662 = vpop.f32.mrf.mxu0
        %4663 = vmatprep.mubr.bf16.mxu0 0
        %4664 = vmatmul.mubr.bf16.gmra.mxu0 %v4526
        %v4665 = vpop.f32.mrf.mxu0
        %v4666 = vadd.f32 %v4558, %v4665
        %v4667 = vpop.f32.mrf.mxu0
        %v4668 = vpop.f32.mrf.mxu0
        %v4669 = vadd.f32 %v4558, %v4668
        %v4670 = vpop.f32.mrf.mxu0
        %4671 = vmatprep.mubr.bf16.mxu0 0
        %4672 = vmatmul.mubr.bf16.gmra.mxu0 %v4527
        %v4673 = vpop.f32.mrf.mxu0
        %v4674 = vadd.f32 %v4558, %v4673
        %v4675 = vpop.f32.mrf.mxu0
        %v4676 = vpop.f32.mrf.mxu0
        %v4677 = vadd.f32 %v4558, %v4676
        %v4678 = vpop.f32.mrf.mxu0
        %4679 = vmatprep.mubr.bf16.mxu0 0
        %4680 = vmatmul.mubr.bf16.gmra.mxu0 %v4528
        %v4681 = vpop.f32.mrf.mxu0
        %v4682 = vadd.f32 %v4558, %v4681
        %v4683 = vpop.f32.mrf.mxu0
        %v4684 = vpop.f32.mrf.mxu0
        %v4685 = vadd.f32 %v4558, %v4684
        %v4686 = vpop.f32.mrf.mxu0
        %4687 = vmatprep.mubr.bf16.mxu0 0
        %4688 = vmatmul.mubr.bf16.gmra.mxu0 %v4529
        %v4689 = vpop.f32.mrf.mxu0
        %v4690 = vadd.f32 %v4558, %v4689
        %v4691 = vpop.f32.mrf.mxu0
        %v4692 = vpop.f32.mrf.mxu0
        %v4693 = vadd.f32 %v4558, %v4692
        %v4694 = vpop.f32.mrf.mxu0
        %4695 = vmatprep.mubr.bf16.mxu0 0
        %4696 = vmatmul.mubr.bf16.gmra.mxu0 %v4530
        %v4697 = vpop.f32.mrf.mxu0
        %v4698 = vadd.f32 %v4558, %v4697
        %v4699 = vpop.f32.mrf.mxu0
        %v4700 = vpop.f32.mrf.mxu0
        %v4701 = vadd.f32 %v4558, %v4700
        %v4702 = vpop.f32.mrf.mxu0
        %4703 = vmatprep.mubr.bf16.mxu0 0
        %4704 = vmatmul.mubr.bf16.gmra.mxu0 %v4531
        %v4705 = vpop.f32.mrf.mxu0
        %v4706 = vadd.f32 %v4558, %v4705
        %v4707 = vpop.f32.mrf.mxu0
        %v4708 = vpop.f32.mrf.mxu0
        %v4709 = vadd.f32 %v4558, %v4708
        %v4710 = vpop.f32.mrf.mxu0
        %4711 = vmatprep.mubr.bf16.mxu0 0
        %4712 = vmatmul.mubr.bf16.gmra.mxu0 %v4532
        %v4713 = vpop.f32.mrf.mxu0
        %v4714 = vadd.f32 %v4558, %v4713
        %v4715 = vpop.f32.mrf.mxu0
        %v4716 = vpop.f32.mrf.mxu0
        %v4717 = vadd.f32 %v4558, %v4716
        %v4718 = vpop.f32.mrf.mxu0
        %4719 = vmatprep.mubr.bf16.mxu0 0
        %4720 = vmatmul.mubr.bf16.gmra.mxu0 %v4533
        %v4721 = vpop.f32.mrf.mxu0
        %v4722 = vadd.f32 %v4558, %v4721
        %v4723 = vpop.f32.mrf.mxu0
        %v4724 = vpop.f32.mrf.mxu0
        %v4725 = vadd.f32 %v4558, %v4724
        %v4726 = vpop.f32.mrf.mxu0
        %4727 = vmatprep.mubr.bf16.mxu0 0
        %4728 = vmatmul.mubr.bf16.gmra.mxu0 %v4534
        %v4729 = vpop.f32.mrf.mxu0
        %v4730 = vadd.f32 %v4558, %v4729
        %v4731 = vpop.f32.mrf.mxu0
        %v4732 = vpop.f32.mrf.mxu0
        %v4733 = vadd.f32 %v4558, %v4732
        %v4734 = vpop.f32.mrf.mxu0
        %4735 = vmatprep.mubr.bf16.mxu0 0
        %4736 = vmatmul.mubr.bf16.gmra.mxu0 %v4535
        %v4737 = vpop.f32.mrf.mxu0
        %v4738 = vadd.f32 %v4558, %v4737
        %v4739 = vpop.f32.mrf.mxu0
        %v4740 = vpop.f32.mrf.mxu0
        %v4741 = vadd.f32 %v4558, %v4740
        %v4742 = vpop.f32.mrf.mxu0
        %4743 = vmatprep.mubr.bf16.mxu0 0
        %4744 = vmatmul.mubr.bf16.gmra.mxu0 %v4536
        %v4745 = vpop.f32.mrf.mxu0
        %v4746 = vadd.f32 %v4558, %v4745
        %v4747 = vpop.f32.mrf.mxu0
        %v4748 = vpop.f32.mrf.mxu0
        %v4749 = vadd.f32 %v4558, %v4748
        %v4750 = vpop.f32.mrf.mxu0
        %4751 = vmatprep.mubr.bf16.mxu0 0
        %4752 = vmatmul.mubr.bf16.gmra.mxu0 %v4537
        %v4753 = vpop.f32.mrf.mxu0
        %v4754 = vadd.f32 %v4558, %v4753
        %v4755 = vpop.f32.mrf.mxu0
        %v4756 = vpop.f32.mrf.mxu0
        %v4757 = vadd.f32 %v4558, %v4756
        %v4758 = vpop.f32.mrf.mxu0
        %4759 = vmatprep.mubr.bf16.mxu0 0
        %4760 = vmatmul.mubr.bf16.gmra.mxu0 %v4538
        %v4761 = vpop.f32.mrf.mxu0
        %v4762 = vadd.f32 %v4558, %v4761
        %v4763 = vpop.f32.mrf.mxu0
        %v4764 = vpop.f32.mrf.mxu0
        %v4765 = vadd.f32 %v4558, %v4764
        %v4766 = vpop.f32.mrf.mxu0
        %4767 = vdwg.mxu0
        %v4768 = vtanh.pop %v4642
        %v4769 = vtanh.pop %v4645
        %v4770 = vtanh.pop %v4650
        %v4771 = vtanh.pop %v4653
        %v4772 = vtanh.pop %v4658
        %v4773 = vtanh.pop %v4661
        %v4774 = vtanh.pop %v4666
        %v4775 = vtanh.pop %v4669
        %v4776 = vtanh.pop %v4674
        %v4777 = vtanh.pop %v4677
        %v4778 = vtanh.pop %v4682
        %v4779 = vtanh.pop %v4685
        %v4780 = vtanh.pop %v4690
        %v4781 = vtanh.pop %v4693
        %v4782 = vtanh.pop %v4698
        %v4783 = vtanh.pop %v4701
        %v4784 = vtanh.pop %v4706
        %v4785 = vtanh.pop %v4709
        %v4786 = vtanh.pop %v4714
        %v4787 = vtanh.pop %v4717
        %v4788 = vtanh.pop %v4722
        %v4789 = vtanh.pop %v4725
        %v4790 = vtanh.pop %v4730
        %v4791 = vtanh.pop %v4733
        %v4792 = vtanh.pop %v4738
        %v4793 = vtanh.pop %v4741
        %v4794 = vtanh.pop %v4746
        %v4795 = vtanh.pop %v4749
        %v4796 = vtanh.pop %v4754
        %v4797 = vtanh.pop %v4757
        %v4798 = vtanh.pop %v4762
        %v4799 = vtanh.pop %v4765
        %4800 = vst [vmem:[%s549] sm:$0xff] %v4768
        %4801 = vst [vmem:[%s549 + $0x8] sm:$0xff] %v4769
        %4802 = vst [vmem:[%s549 + $0x10] sm:$0xff] %v4770
        %4803 = vst [vmem:[%s549 + $0x18] sm:$0xff] %v4771
        %4804 = vst [vmem:[%s549 + $0x20] sm:$0xff] %v4772
        %4805 = vst [vmem:[%s549 + $0x28] sm:$0xff] %v4773
        %4806 = vst [vmem:[%s549 + $0x30] sm:$0xff] %v4774
        %4807 = vst [vmem:[%s549 + $0x38] sm:$0xff] %v4775
        %4808 = vst [vmem:[%s549 + $0x40] sm:$0xff] %v4776
        %4809 = vst [vmem:[%s549 + $0x48] sm:$0xff] %v4777
        %4810 = vst [vmem:[%s549 + $0x50] sm:$0xff] %v4778
        %4811 = vst [vmem:[%s549 + $0x58] sm:$0xff] %v4779
        %4812 = vst [vmem:[%s549 + $0x60] sm:$0xff] %v4780
        %4813 = vst [vmem:[%s549 + $0x68] sm:$0xff] %v4781
        %4814 = vst [vmem:[%s549 + $0x70] sm:$0xff] %v4782
        %4815 = vst [vmem:[%s549 + $0x78] sm:$0xff] %v4783
        %4816 = vst [vmem:[%s549 + $0x80] sm:$0xff] %v4784
        %4817 = vst [vmem:[%s549 + $0x88] sm:$0xff] %v4785
        %4818 = vst [vmem:[%s549 + $0x90] sm:$0xff] %v4786
        %4819 = vst [vmem:[%s549 + $0x98] sm:$0xff] %v4787
        %4820 = vst [vmem:[%s549 + $0xa0] sm:$0xff] %v4788
        %4821 = vst [vmem:[%s549 + $0xa8] sm:$0xff] %v4789
        %4822 = vst [vmem:[%s549 + $0xb0] sm:$0xff] %v4790
        %4823 = vst [vmem:[%s549 + $0xb8] sm:$0xff] %v4791
        %4824 = vst [vmem:[%s549 + $0xc0] sm:$0xff] %v4792
        %4825 = vst [vmem:[%s549 + $0xc8] sm:$0xff] %v4793
        %4826 = vst [vmem:[%s549 + $0xd0] sm:$0xff] %v4794
        %4827 = vst [vmem:[%s549 + $0xd8] sm:$0xff] %v4795
        %4828 = vst [vmem:[%s549 + $0xe0] sm:$0xff] %v4796
        %4829 = vst [vmem:[%s549 + $0xe8] sm:$0xff] %v4797
        %4830 = vst [vmem:[%s549 + $0xf0] sm:$0xff] %v4798
        %4831 = vst [vmem:[%s549 + $0xf8] sm:$0xff] %v4799
        %s4832 = sand.u32 %s278, 1
        %s4833 = scalar_lea.sflag [#allocation4], %s4832
        %s4834 = sand.u32 %s278, 1
        %s4835 = smul.addr %s4834, 256
        %s4836 = scalar_lea.vmem [#allocation19], %s4835
        // Predicated region
        $region101: #{tpu_custom_call.1} parent=59 // pred_check
          %p4837 = pneg %p288
        $region102: #{tpu_custom_call.1} parent=59 // pred_check_branch
          %4839 = sbr.rel (%p4837) target = $region104
        $region103: #{tpu_custom_call.1} parent=59 // pred_region
          %s4840 = smul.u32 32, %s39
          %s4842 = ssub.s32 4096, 4096
          %4843 = vsyncadd %s4833, %s4842
          %s4844 = smul.addr %s38, 32
          %s4845 = sadd.s32 %s4840, %s4844
          %s4846 = smul.addr %s4845, 128
          %s4847 = scalar_lea.hbm %s10, %s4846
          %s4848 = sshll.u32 %s4836, 4
          %s4849 = int_to_ptr.vmem [resolvable:$true] %s4848
          %4854 = dma.vmem_to_hbm [thread:$0]  %s4849, 4096, %s4847, %s4833, 128, 128, 8
        $region104: #{tpu_custom_call.1} parent=59 // pred_fallthru
          _
      $region60: #{tpu_custom_call.1} parent=5 // pred_fallthru
        _
      %p4855 = scmp.le.s32.totalorder 2, %s29
      // Predicated region
      $region105: #{tpu_custom_call.1} parent=5 // pred_check
        %p4856 = pneg %p4855
      $region106: #{tpu_custom_call.1} parent=5 // pred_check_branch
        %4858 = sbr.rel (%p4856) target = $region108
      $region107: #{tpu_custom_call.1} parent=5 // pred_region
        %s4859 = ssub.s32 %s29, 2
        // Predicated region
        $region109: #{tpu_custom_call.1} parent=107 // pred_check
          %p4860 = pneg %p294
        $region110: #{tpu_custom_call.1} parent=107 // pred_check_branch
          %4862 = sbr.rel (%p4860) target = $region112
        $region111: #{tpu_custom_call.1} parent=107 // pred_region
          %s4863 = sand.u32 %s279, 1
          %s4864 = scalar_lea.sflag [#allocation4], %s4863
          %s4865 = sand.u32 %s279, 1
          %s4866 = smul.addr %s4865, 256
          %s4867 = scalar_lea.vmem [#allocation19], %s4866
          %4868 = dma.done %s4864, 4096
        $region112: #{tpu_custom_call.1} parent=107 // pred_fallthru
          _
      $region108: #{tpu_custom_call.1} parent=5 // pred_fallthru
        _
    $region6: #{tpu_custom_call.1} parent=1 // loop_footer
      %s33 = sadd.s32 1, %s29
    $region7: #{tpu_custom_call.1} parent=1 // loop_footer_branch
      %28 = sbr.rel target = $region3
    $region8: #{tpu_custom_call.1} parent=1 // loop_exit
      _
    %4869 = vsyncpa [#allocation3], 1
    %s4870 = scalar_lea.sflag [#allocation3], 1
    %4871 = vsyncpa %s4870, 1
    %4872 = vsyncpa [#allocation6], 1
    %s4873 = scalar_lea.sflag [#allocation6], 1
    %4874 = vsyncpa %s4873, 1
    %4875 = vsyncpa [#allocation9], 1
    %4876 = vsyncpa [#allocation12], 1
    %4877 = vsyncpa [#allocation15], 1
    %4878 = vsyncpa [#allocation18], 1
    %4879 = vsyncpa [#allocation4], 1
    %s4880 = scalar_lea.sflag [#allocation4], 1
    %4881 = vsyncpa %s4880, 1

</llo_original>
